<compile_context>
chip_gen: v7x
topology: tpu7x:2x2x1
jax: 0.10.0
libtpu: 0.0.40
codegen_flags: <defaults>
</compile_context>

<pallas_src>
import functools
import math

import jax
import jax.numpy as jnp
from jax.experimental import pallas as pl
from jax.experimental.pallas import tpu as pltpu


def _round_up(x, m):
    return ((x + m - 1) // m) * m


# ----------------------------- fused DRNN kernel -----------------------------

def _fused_drnn_kernel(x_ref, mask_ref, *rest, n_layers, Bp, T_pad, Hp):
    """Runs every dilated-GRU layer + the sentence mask in one kernel.

    x_ref    : (T_pad*Bp, Ep)  bf16  embedded tokens, time-major rows t*Bp+b
    mask_ref : (T_pad*Bp, 1)   f32   per-row sentence mask
    per layer i (4 refs each):
      wih  : (In_p, 3*Hp) bf16   gate-concatenated input weights  [r|z|n]
      whh  : (Hp,  3*Hp)  bf16   gate-concatenated hidden weights [r|z|n]
      bx   : (1, 3*Hp)    f32    b_ih with b_hh folded in for r,z gates
      bhn  : (1, Hp)      f32    b_hh of the n gate (stays inside r*(...))
    out_ref  : (T_pad*Bp, Hp) f32
    scratch  : h_slab (T_pad*Bp, Hp) f32, gx_slab (T_pad*Bp, 3*Hp) f32
    """
    out_ref = rest[4 * n_layers]
    h_slab = rest[4 * n_layers + 1]
    gx_slab = rest[4 * n_layers + 2]

    # Defined reads everywhere (also gives exact zero initial hidden state).
    h_slab[...] = jnp.zeros_like(h_slab)

    for layer in range(n_layers):
        wih_ref, whh_ref, bx_ref, bhn_ref = rest[4 * layer:4 * layer + 4]
        rate = 2 ** layer
        chunk = rate * Bp            # rows touched per dilated step
        n_steps = T_pad // rate      # serial dilated steps for this layer

        # ---- Phase 1: hoisted input projection (one MXU matmul, all steps) ----
        if layer == 0:
            xin = x_ref[...]                                   # already bf16
        else:
            xin = h_slab[...].astype(jnp.bfloat16)             # prev layer out
        gx_slab[...] = (
            jnp.dot(xin, wih_ref[...], preferred_element_type=jnp.float32)
            + bx_ref[...]
        )

        whh = whh_ref[...]
        bhn = bhn_ref[...]

        # ---- Phase 2: sequential recurrence over dilated steps ----
        def step(tp, carry=0):
            if isinstance(tp, int):                    # unrolled (static) path
                start = tp * chunk
                prev = max(tp - 1, 0) * chunk
            else:                                      # fori_loop path
                start = pl.multiple_of(tp * chunk, chunk)
                prev = pl.multiple_of(jnp.maximum(tp - 1, 0) * chunk, chunk)

            gx = gx_slab[pl.ds(start, chunk), :]                   # (chunk, 3Hp)
            h_prev = h_slab[pl.ds(prev, chunk), :]                 # (chunk, Hp)
            h_prev = jnp.where(tp > 0, h_prev, 0.0)                # zero init state

            gh = jnp.dot(h_prev.astype(jnp.bfloat16), whh,
                         preferred_element_type=jnp.float32)       # (chunk, 3Hp)

            r = jax.nn.sigmoid(gx[:, 0:Hp] + gh[:, 0:Hp])
            z = jax.nn.sigmoid(gx[:, Hp:2 * Hp] + gh[:, Hp:2 * Hp])
            n = jnp.tanh(gx[:, 2 * Hp:] + r * (gh[:, 2 * Hp:] + bhn))
            h_slab[pl.ds(start, chunk), :] = (1.0 - z) * n + z * h_prev
            return carry

        if n_steps <= 16:
            for tp in range(n_steps):        # fully unrolled: LLO sees all steps
                step(tp)
        else:                                # general path for long sequences
            jax.lax.fori_loop(0, n_steps, step, 0)

    # Sentence mask fused into the final (lane-dense) store.
    out_ref[...] = h_slab[...] * mask_ref[...]


def drnn_fused_forward(x, sent_mask, packed_params, hidden):
    """x: [B, T, E] f32, sent_mask: [B] f32 -> [B, T, hidden] f32."""
    B, T, _E = x.shape
    n_layers = len(packed_params)
    Ep = packed_params[0][0].shape[0]          # padded embed dim
    Hp = packed_params[0][1].shape[0]          # padded hidden dim
    max_rate = 2 ** (n_layers - 1)
    T_pad = _round_up(T, max_rate)
    Bp = _round_up(B, 8)                       # sublane-dense batch
    NB = T_pad * Bp

    # Time-major, padded, flattened rows (row index = t*Bp + b), bf16 operands.
    x_tm = jnp.transpose(x, (1, 0, 2))                                  # [T,B,E]
    x_tm = jnp.pad(x_tm, ((0, T_pad - T), (0, Bp - B), (0, Ep - x.shape[2])))
    x_flat = x_tm.reshape(NB, Ep).astype(jnp.bfloat16)

    mask_rows = jnp.tile(jnp.pad(sent_mask, (0, Bp - B)), (T_pad,))
    mask_rows = mask_rows.reshape(NB, 1).astype(jnp.float32)

    flat_params = []
    for p in packed_params:
        flat_params.extend(p)

    kernel = functools.partial(_fused_drnn_kernel,
                               n_layers=n_layers, Bp=Bp, T_pad=T_pad, Hp=Hp)

    out_flat = pl.pallas_call(
        kernel,
        out_shape=jax.ShapeDtypeStruct((NB, Hp), jnp.float32),
        scratch_shapes=[
            pltpu.VMEM((NB, Hp), jnp.float32),        # activation slab (all layers)
            pltpu.VMEM((NB, 3 * Hp), jnp.float32),    # hoisted gate pre-activations
        ],
        compiler_params=pltpu.CompilerParams(
            vmem_limit_bytes=32 * 1024 * 1024),       # safe on v5e/v6e/v7x
    )(x_flat, mask_rows, *flat_params)

    out = out_flat.reshape(T_pad, Bp, Hp)[:T, :B, :hidden]
    return jnp.transpose(out, (1, 0, 2))                                # [B,T,H]


# --------------------------- Encoder_DRNN.forward -----------------------------

def encoder_drnn_forward(text_inputs, embed_table, packed_params, hidden):
    # TODO(synk): embedding gather has no clean Pallas tile expression; stays in XLA.
    x_input = jnp.take(embed_table, text_inputs, axis=0)          # [B, T, E]
    tok_mask = jnp.sign(text_inputs)
    len_seq_sent = tok_mask.sum(axis=1)                           # [B]
    # NOTE: reference sorts by length then unsorts; it cancels exactly (no
    # packing happens), so the argsorts + gathers are removed.
    sent_mask = jnp.sign(len_seq_sent).astype(jnp.float32)        # [B]
    return drnn_fused_forward(x_input, sent_mask, packed_params, hidden)


# ----------------------------- deterministic params ---------------------------

def init_params(key, vocab, embed_dim, hidden, n_layers):
    keys = jax.random.split(key, 1 + 4 * n_layers)
    embed = jax.random.normal(keys[0], (vocab, embed_dim), jnp.float32)
    embed = embed.at[0].set(0.0)  # padding_idx = 0
    layers = []
    for i in range(n_layers):
        in_dim = embed_dim if i == 0 else hidden
        k = 1.0 / math.sqrt(hidden)
        k0, k1, k2, k3 = keys[1 + 4 * i: 1 + 4 * (i + 1)]
        wih = jax.random.uniform(k0, (3, in_dim, hidden), jnp.float32, -k, k)
        whh = jax.random.uniform(k1, (3, hidden, hidden), jnp.float32, -k, k)
        bih = jax.random.uniform(k2, (3, hidden), jnp.float32, -k, k)
        bhh = jax.random.uniform(k3, (3, hidden), jnp.float32, -k, k)
        layers.append((wih, whh, bih, bhh))
    return embed, layers


def pack_gru_params(layers, hidden):
    """Gate-concatenate, fold r/z hidden biases, zero-pad to 128-lane widths, bf16."""
    Hp = _round_up(hidden, 128)
    packed = []
    for (wih, whh, bih, bhh) in layers:
        in_dim = wih.shape[1]
        Ip = _round_up(in_dim, 128)
        wih_p = jnp.pad(wih, ((0, 0), (0, Ip - in_dim), (0, Hp - hidden)))
        whh_p = jnp.pad(whh, ((0, 0), (0, Hp - hidden), (0, Hp - hidden)))
        bih_p = jnp.pad(bih, ((0, 0), (0, Hp - hidden)))
        bhh_p = jnp.pad(bhh, ((0, 0), (0, Hp - hidden)))
        wih_cat = jnp.concatenate([wih_p[0], wih_p[1], wih_p[2]],
                                  axis=1).astype(jnp.bfloat16)      # (Ip, 3Hp)
        whh_cat = jnp.concatenate([whh_p[0], whh_p[1], whh_p[2]],
                                  axis=1).astype(jnp.bfloat16)      # (Hp, 3Hp)
        bx = jnp.concatenate([bih_p[0] + bhh_p[0],                  # r
                              bih_p[1] + bhh_p[1],                  # z
                              bih_p[2]], axis=0).reshape(1, 3 * Hp) # n (b_ih only)
        bhn = bhh_p[2].reshape(1, Hp)
        packed.append((wih_cat, whh_cat, bx.astype(jnp.float32),
                       bhn.astype(jnp.float32)))
    return packed


if __name__ == "__main__":
    B, T, E, H, N_LAYERS, VOCAB = 2, 8, 32, 32, 2, 50

    key = jax.random.PRNGKey(0)
    k_tok, k_param = jax.random.split(key)

    text_inputs = jax.random.randint(k_tok, (B, T), 1, VOCAB, dtype=jnp.int32)
    text_inputs = text_inputs.at[1, 5:].set(0)          # pad tail of 2nd sentence
    mask_input = (text_inputs != 0).astype(jnp.int32)   # unused by forward (fidelity)
    len_seq = mask_input.sum(axis=1)                    # unused by forward (fidelity)

    # TODO(synk): dropout from config is ignored, matching single-layer GRU behavior.
    embed_table, raw_layers = init_params(k_param, VOCAB, E, H, N_LAYERS)
    packed_params = pack_gru_params(raw_layers, H)

    fwd = jax.jit(functools.partial(encoder_drnn_forward, hidden=H))
    encoder_out = fwd(text_inputs, embed_table, packed_params)
    encoder_out = jax.block_until_ready(encoder_out)

    assert encoder_out.shape == (B, T, H)
    assert bool(jnp.all(jnp.isfinite(encoder_out)))
    print("KERNEL_OK")
</pallas_src>

<mosaic_0001>
module attributes {stable_mosaic.version = 11 : i64} {
  func.func @_fused_drnn_kernel(%arg0: memref<64x128xbf16, #tpu.memory_space<vmem>>, %arg1: memref<64x1xf32, #tpu.memory_space<vmem>>, %arg2: memref<128x384xbf16, #tpu.memory_space<vmem>>, %arg3: memref<128x384xbf16, #tpu.memory_space<vmem>>, %arg4: memref<1x384xf32, #tpu.memory_space<vmem>>, %arg5: memref<1x128xf32, #tpu.memory_space<vmem>>, %arg6: memref<128x384xbf16, #tpu.memory_space<vmem>>, %arg7: memref<128x384xbf16, #tpu.memory_space<vmem>>, %arg8: memref<1x384xf32, #tpu.memory_space<vmem>>, %arg9: memref<1x128xf32, #tpu.memory_space<vmem>>, %arg10: memref<64x128xf32, #tpu.memory_space<vmem>>, %arg11: memref<64x128xf32, #tpu.memory_space<vmem>>, %arg12: memref<64x384xf32, #tpu.memory_space<vmem>>) attributes {dimension_semantics = [], scalar_prefetch = 0 : i64, scratch_operands = 2 : i64, tpu.core_type = #tpu.core_type<tc>} {
    %cst = arith.constant 0.000000e+00 : f32
    %0 = vector.broadcast %cst : f32 to vector<64x128xf32>
    %c0 = arith.constant 0 : index
    %c0_0 = arith.constant 0 : index
    %1 = vector.load %arg11[%c0, %c0_0] : memref<64x128xf32, #tpu.memory_space<vmem>>, vector<64x128xf32>
    tpu.vector_store %arg11[%c0, %c0_0], %0 {strides = array<i32>} : memref<64x128xf32, #tpu.memory_space<vmem>>, vector<64x128xf32>,
    %c0_1 = arith.constant 0 : index
    %c0_2 = arith.constant 0 : index
    %2 = vector.load %arg0[%c0_1, %c0_2] : memref<64x128xbf16, #tpu.memory_space<vmem>>, vector<64x128xbf16>
    %c0_3 = arith.constant 0 : index
    %c0_4 = arith.constant 0 : index
    %3 = vector.load %arg2[%c0_3, %c0_4] : memref<128x384xbf16, #tpu.memory_space<vmem>>, vector<128x384xbf16>
    %cst_5 = arith.constant dense<0.000000e+00> : vector<64x384xf32>
    %4 = tpu.matmul %2, %3, %cst_5 {dimension_numbers = #tpu.dot_dimension_numbers<[1], [0], [0], [1], [0, 0, 1, 1], [], []>} : vector<64x128xbf16>, vector<128x384xbf16>, vector<64x384xf32> -> vector<64x384xf32>
    %c0_6 = arith.constant 0 : index
    %c0_7 = arith.constant 0 : index
    %5 = vector.load %arg4[%c0_6, %c0_7] : memref<1x384xf32, #tpu.memory_space<vmem>>, vector<1x384xf32>
    %6 = vector.broadcast %5 : vector<1x384xf32> to vector<64x384xf32>
    %7 = arith.addf %4, %6 : vector<64x384xf32>
    %c0_8 = arith.constant 0 : index
    %c0_9 = arith.constant 0 : index
    %8 = vector.load %arg12[%c0_8, %c0_9] : memref<64x384xf32, #tpu.memory_space<vmem>>, vector<64x384xf32>
    tpu.vector_store %arg12[%c0_8, %c0_9], %7 {strides = array<i32>} : memref<64x384xf32, #tpu.memory_space<vmem>>, vector<64x384xf32>,
    %c0_10 = arith.constant 0 : index
    %c0_11 = arith.constant 0 : index
    %9 = vector.load %arg3[%c0_10, %c0_11] : memref<128x384xbf16, #tpu.memory_space<vmem>>, vector<128x384xbf16>
    %c0_12 = arith.constant 0 : index
    %c0_13 = arith.constant 0 : index
    %10 = vector.load %arg5[%c0_12, %c0_13] : memref<1x128xf32, #tpu.memory_space<vmem>>, vector<1x128xf32>
    %c0_14 = arith.constant 0 : index
    %c0_15 = arith.constant 0 : index
    %11 = vector.load %arg12[%c0_14, %c0_15] : memref<64x384xf32, #tpu.memory_space<vmem>>, vector<8x384xf32>
    %c0_16 = arith.constant 0 : index
    %c0_17 = arith.constant 0 : index
    %12 = vector.load %arg11[%c0_16, %c0_17] : memref<64x128xf32, #tpu.memory_space<vmem>>, vector<8x128xf32>
    %false = arith.constant false
    %cst_18 = arith.constant 0.000000e+00 : f32
    %13 = vector.broadcast %cst_18 : f32 to vector<8x128xf32>
    %14 = arith.select %false, %12, %13 : vector<8x128xf32>
    %15 = arith.truncf %14 : vector<8x128xf32> to vector<8x128xbf16>
    %cst_19 = arith.constant dense<0.000000e+00> : vector<8x384xf32>
    %16 = tpu.matmul %15, %9, %cst_19 {dimension_numbers = #tpu.dot_dimension_numbers<[1], [0], [0], [1], [0, 0, 1, 1], [], []>} : vector<8x128xbf16>, vector<128x384xbf16>, vector<8x384xf32> -> vector<8x384xf32>
    %17 = vector.extract_strided_slice %11 {offsets = [0, 0], sizes = [8, 128], strides = [1, 1]} : vector<8x384xf32> to vector<8x128xf32>
    %18 = vector.extract_strided_slice %16 {offsets = [0, 0], sizes = [8, 128], strides = [1, 1]} : vector<8x384xf32> to vector<8x128xf32>
    %19 = arith.addf %17, %18 : vector<8x128xf32>
    %20 = arith.negf %19 : vector<8x128xf32>
    %21 = math.exp %20 : vector<8x128xf32>
    %cst_20 = arith.constant 1.000000e+00 : f32
    %22 = vector.broadcast %cst_20 : f32 to vector<8x128xf32>
    %23 = arith.addf %22, %21 : vector<8x128xf32>
    %24 = arith.divf %22, %23 : vector<8x128xf32>
    %25 = vector.extract_strided_slice %11 {offsets = [0, 128], sizes = [8, 128], strides = [1, 1]} : vector<8x384xf32> to vector<8x128xf32>
    %26 = vector.extract_strided_slice %16 {offsets = [0, 128], sizes = [8, 128], strides = [1, 1]} : vector<8x384xf32> to vector<8x128xf32>
    %27 = arith.addf %25, %26 : vector<8x128xf32>
    %28 = arith.negf %27 : vector<8x128xf32>
    %29 = math.exp %28 : vector<8x128xf32>
    %cst_21 = arith.constant 1.000000e+00 : f32
    %30 = vector.broadcast %cst_21 : f32 to vector<8x128xf32>
    %31 = arith.addf %30, %29 : vector<8x128xf32>
    %32 = arith.divf %30, %31 : vector<8x128xf32>
    %33 = vector.extract_strided_slice %11 {offsets = [0, 256], sizes = [8, 128], strides = [1, 1]} : vector<8x384xf32> to vector<8x128xf32>
    %34 = vector.extract_strided_slice %16 {offsets = [0, 256], sizes = [8, 128], strides = [1, 1]} : vector<8x384xf32> to vector<8x128xf32>
    %35 = vector.broadcast %10 : vector<1x128xf32> to vector<8x128xf32>
    %36 = arith.addf %34, %35 : vector<8x128xf32>
    %37 = arith.mulf %24, %36 : vector<8x128xf32>
    %38 = arith.addf %33, %37 : vector<8x128xf32>
    %39 = math.tanh %38 : vector<8x128xf32>
    %cst_22 = arith.constant 1.000000e+00 : f32
    %40 = vector.broadcast %cst_22 : f32 to vector<8x128xf32>
    %41 = arith.subf %40, %32 : vector<8x128xf32>
    %42 = arith.mulf %41, %39 : vector<8x128xf32>
    %43 = arith.mulf %32, %14 : vector<8x128xf32>
    %44 = arith.addf %42, %43 : vector<8x128xf32>
    %c0_23 = arith.constant 0 : index
    %c0_24 = arith.constant 0 : index
    %45 = vector.load %arg11[%c0_23, %c0_24] : memref<64x128xf32, #tpu.memory_space<vmem>>, vector<8x128xf32>
    tpu.vector_store %arg11[%c0_23, %c0_24], %44 {strides = array<i32>} : memref<64x128xf32, #tpu.memory_space<vmem>>, vector<8x128xf32>,
    %c8 = arith.constant 8 : index
    %c0_25 = arith.constant 0 : index
    %46 = vector.load %arg12[%c8, %c0_25] : memref<64x384xf32, #tpu.memory_space<vmem>>, vector<8x384xf32>
    %c0_26 = arith.constant 0 : index
    %c0_27 = arith.constant 0 : index
    %47 = vector.load %arg11[%c0_26, %c0_27] : memref<64x128xf32, #tpu.memory_space<vmem>>, vector<8x128xf32>
    %true = arith.constant true
    %cst_28 = arith.constant 0.000000e+00 : f32
    %48 = vector.broadcast %cst_28 : f32 to vector<8x128xf32>
    %49 = arith.select %true, %47, %48 : vector<8x128xf32>
    %50 = arith.truncf %49 : vector<8x128xf32> to vector<8x128xbf16>
    %cst_29 = arith.constant dense<0.000000e+00> : vector<8x384xf32>
    %51 = tpu.matmul %50, %9, %cst_29 {dimension_numbers = #tpu.dot_dimension_numbers<[1], [0], [0], [1], [0, 0, 1, 1], [], []>} : vector<8x128xbf16>, vector<128x384xbf16>, vector<8x384xf32> -> vector<8x384xf32>
    %52 = vector.extract_strided_slice %46 {offsets = [0, 0], sizes = [8, 128], strides = [1, 1]} : vector<8x384xf32> to vector<8x128xf32>
    %53 = vector.extract_strided_slice %51 {offsets = [0, 0], sizes = [8, 128], strides = [1, 1]} : vector<8x384xf32> to vector<8x128xf32>
    %54 = arith.addf %52, %53 : vector<8x128xf32>
    %55 = arith.negf %54 : vector<8x128xf32>
    %56 = math.exp %55 : vector<8x128xf32>
    %cst_30 = arith.constant 1.000000e+00 : f32
    %57 = vector.broadcast %cst_30 : f32 to vector<8x128xf32>
    %58 = arith.addf %57, %56 : vector<8x128xf32>
    %59 = arith.divf %57, %58 : vector<8x128xf32>
    %60 = vector.extract_strided_slice %46 {offsets = [0, 128], sizes = [8, 128], strides = [1, 1]} : vector<8x384xf32> to vector<8x128xf32>
    %61 = vector.extract_strided_slice %51 {offsets = [0, 128], sizes = [8, 128], strides = [1, 1]} : vector<8x384xf32> to vector<8x128xf32>
    %62 = arith.addf %60, %61 : vector<8x128xf32>
    %63 = arith.negf %62 : vector<8x128xf32>
    %64 = math.exp %63 : vector<8x128xf32>
    %cst_31 = arith.constant 1.000000e+00 : f32
    %65 = vector.broadcast %cst_31 : f32 to vector<8x128xf32>
    %66 = arith.addf %65, %64 : vector<8x128xf32>
    %67 = arith.divf %65, %66 : vector<8x128xf32>
    %68 = vector.extract_strided_slice %46 {offsets = [0, 256], sizes = [8, 128], strides = [1, 1]} : vector<8x384xf32> to vector<8x128xf32>
    %69 = vector.extract_strided_slice %51 {offsets = [0, 256], sizes = [8, 128], strides = [1, 1]} : vector<8x384xf32> to vector<8x128xf32>
    %70 = vector.broadcast %10 : vector<1x128xf32> to vector<8x128xf32>
    %71 = arith.addf %69, %70 : vector<8x128xf32>
    %72 = arith.mulf %59, %71 : vector<8x128xf32>
    %73 = arith.addf %68, %72 : vector<8x128xf32>
    %74 = math.tanh %73 : vector<8x128xf32>
    %cst_32 = arith.constant 1.000000e+00 : f32
    %75 = vector.broadcast %cst_32 : f32 to vector<8x128xf32>
    %76 = arith.subf %75, %67 : vector<8x128xf32>
    %77 = arith.mulf %76, %74 : vector<8x128xf32>
    %78 = arith.mulf %67, %49 : vector<8x128xf32>
    %79 = arith.addf %77, %78 : vector<8x128xf32>
    %c8_33 = arith.constant 8 : index
    %c0_34 = arith.constant 0 : index
    %80 = vector.load %arg11[%c8_33, %c0_34] : memref<64x128xf32, #tpu.memory_space<vmem>>, vector<8x128xf32>
    tpu.vector_store %arg11[%c8_33, %c0_34], %79 {strides = array<i32>} : memref<64x128xf32, #tpu.memory_space<vmem>>, vector<8x128xf32>,
    %c16 = arith.constant 16 : index
    %c0_35 = arith.constant 0 : index
    %81 = vector.load %arg12[%c16, %c0_35] : memref<64x384xf32, #tpu.memory_space<vmem>>, vector<8x384xf32>
    %c8_36 = arith.constant 8 : index
    %c0_37 = arith.constant 0 : index
    %82 = vector.load %arg11[%c8_36, %c0_37] : memref<64x128xf32, #tpu.memory_space<vmem>>, vector<8x128xf32>
    %true_38 = arith.constant true
    %cst_39 = arith.constant 0.000000e+00 : f32
    %83 = vector.broadcast %cst_39 : f32 to vector<8x128xf32>
    %84 = arith.select %true_38, %82, %83 : vector<8x128xf32>
    %85 = arith.truncf %84 : vector<8x128xf32> to vector<8x128xbf16>
    %cst_40 = arith.constant dense<0.000000e+00> : vector<8x384xf32>
    %86 = tpu.matmul %85, %9, %cst_40 {dimension_numbers = #tpu.dot_dimension_numbers<[1], [0], [0], [1], [0, 0, 1, 1], [], []>} : vector<8x128xbf16>, vector<128x384xbf16>, vector<8x384xf32> -> vector<8x384xf32>
    %87 = vector.extract_strided_slice %81 {offsets = [0, 0], sizes = [8, 128], strides = [1, 1]} : vector<8x384xf32> to vector<8x128xf32>
    %88 = vector.extract_strided_slice %86 {offsets = [0, 0], sizes = [8, 128], strides = [1, 1]} : vector<8x384xf32> to vector<8x128xf32>
    %89 = arith.addf %87, %88 : vector<8x128xf32>
    %90 = arith.negf %89 : vector<8x128xf32>
    %91 = math.exp %90 : vector<8x128xf32>
    %cst_41 = arith.constant 1.000000e+00 : f32
    %92 = vector.broadcast %cst_41 : f32 to vector<8x128xf32>
    %93 = arith.addf %92, %91 : vector<8x128xf32>
    %94 = arith.divf %92, %93 : vector<8x128xf32>
    %95 = vector.extract_strided_slice %81 {offsets = [0, 128], sizes = [8, 128], strides = [1, 1]} : vector<8x384xf32> to vector<8x128xf32>
    %96 = vector.extract_strided_slice %86 {offsets = [0, 128], sizes = [8, 128], strides = [1, 1]} : vector<8x384xf32> to vector<8x128xf32>
    %97 = arith.addf %95, %96 : vector<8x128xf32>
    %98 = arith.negf %97 : vector<8x128xf32>
    %99 = math.exp %98 : vector<8x128xf32>
    %cst_42 = arith.constant 1.000000e+00 : f32
    %100 = vector.broadcast %cst_42 : f32 to vector<8x128xf32>
    %101 = arith.addf %100, %99 : vector<8x128xf32>
    %102 = arith.divf %100, %101 : vector<8x128xf32>
    %103 = vector.extract_strided_slice %81 {offsets = [0, 256], sizes = [8, 128], strides = [1, 1]} : vector<8x384xf32> to vector<8x128xf32>
    %104 = vector.extract_strided_slice %86 {offsets = [0, 256], sizes = [8, 128], strides = [1, 1]} : vector<8x384xf32> to vector<8x128xf32>
    %105 = vector.broadcast %10 : vector<1x128xf32> to vector<8x128xf32>
    %106 = arith.addf %104, %105 : vector<8x128xf32>
    %107 = arith.mulf %94, %106 : vector<8x128xf32>
    %108 = arith.addf %103, %107 : vector<8x128xf32>
    %109 = math.tanh %108 : vector<8x128xf32>
    %cst_43 = arith.constant 1.000000e+00 : f32
    %110 = vector.broadcast %cst_43 : f32 to vector<8x128xf32>
    %111 = arith.subf %110, %102 : vector<8x128xf32>
    %112 = arith.mulf %111, %109 : vector<8x128xf32>
    %113 = arith.mulf %102, %84 : vector<8x128xf32>
    %114 = arith.addf %112, %113 : vector<8x128xf32>
    %c16_44 = arith.constant 16 : index
    %c0_45 = arith.constant 0 : index
    %115 = vector.load %arg11[%c16_44, %c0_45] : memref<64x128xf32, #tpu.memory_space<vmem>>, vector<8x128xf32>
    tpu.vector_store %arg11[%c16_44, %c0_45], %114 {strides = array<i32>} : memref<64x128xf32, #tpu.memory_space<vmem>>, vector<8x128xf32>,
    %c24 = arith.constant 24 : index
    %c0_46 = arith.constant 0 : index
    %116 = vector.load %arg12[%c24, %c0_46] : memref<64x384xf32, #tpu.memory_space<vmem>>, vector<8x384xf32>
    %c16_47 = arith.constant 16 : index
    %c0_48 = arith.constant 0 : index
    %117 = vector.load %arg11[%c16_47, %c0_48] : memref<64x128xf32, #tpu.memory_space<vmem>>, vector<8x128xf32>
    %true_49 = arith.constant true
    %cst_50 = arith.constant 0.000000e+00 : f32
    %118 = vector.broadcast %cst_50 : f32 to vector<8x128xf32>
    %119 = arith.select %true_49, %117, %118 : vector<8x128xf32>
    %120 = arith.truncf %119 : vector<8x128xf32> to vector<8x128xbf16>
    %cst_51 = arith.constant dense<0.000000e+00> : vector<8x384xf32>
    %121 = tpu.matmul %120, %9, %cst_51 {dimension_numbers = #tpu.dot_dimension_numbers<[1], [0], [0], [1], [0, 0, 1, 1], [], []>} : vector<8x128xbf16>, vector<128x384xbf16>, vector<8x384xf32> -> vector<8x384xf32>
    %122 = vector.extract_strided_slice %116 {offsets = [0, 0], sizes = [8, 128], strides = [1, 1]} : vector<8x384xf32> to vector<8x128xf32>
    %123 = vector.extract_strided_slice %121 {offsets = [0, 0], sizes = [8, 128], strides = [1, 1]} : vector<8x384xf32> to vector<8x128xf32>
    %124 = arith.addf %122, %123 : vector<8x128xf32>
    %125 = arith.negf %124 : vector<8x128xf32>
    %126 = math.exp %125 : vector<8x128xf32>
    %cst_52 = arith.constant 1.000000e+00 : f32
    %127 = vector.broadcast %cst_52 : f32 to vector<8x128xf32>
    %128 = arith.addf %127, %126 : vector<8x128xf32>
    %129 = arith.divf %127, %128 : vector<8x128xf32>
    %130 = vector.extract_strided_slice %116 {offsets = [0, 128], sizes = [8, 128], strides = [1, 1]} : vector<8x384xf32> to vector<8x128xf32>
    %131 = vector.extract_strided_slice %121 {offsets = [0, 128], sizes = [8, 128], strides = [1, 1]} : vector<8x384xf32> to vector<8x128xf32>
    %132 = arith.addf %130, %131 : vector<8x128xf32>
    %133 = arith.negf %132 : vector<8x128xf32>
    %134 = math.exp %133 : vector<8x128xf32>
    %cst_53 = arith.constant 1.000000e+00 : f32
    %135 = vector.broadcast %cst_53 : f32 to vector<8x128xf32>
    %136 = arith.addf %135, %134 : vector<8x128xf32>
    %137 = arith.divf %135, %136 : vector<8x128xf32>
    %138 = vector.extract_strided_slice %116 {offsets = [0, 256], sizes = [8, 128], strides = [1, 1]} : vector<8x384xf32> to vector<8x128xf32>
    %139 = vector.extract_strided_slice %121 {offsets = [0, 256], sizes = [8, 128], strides = [1, 1]} : vector<8x384xf32> to vector<8x128xf32>
    %140 = vector.broadcast %10 : vector<1x128xf32> to vector<8x128xf32>
    %141 = arith.addf %139, %140 : vector<8x128xf32>
    %142 = arith.mulf %129, %141 : vector<8x128xf32>
    %143 = arith.addf %138, %142 : vector<8x128xf32>
    %144 = math.tanh %143 : vector<8x128xf32>
    %cst_54 = arith.constant 1.000000e+00 : f32
    %145 = vector.broadcast %cst_54 : f32 to vector<8x128xf32>
    %146 = arith.subf %145, %137 : vector<8x128xf32>
    %147 = arith.mulf %146, %144 : vector<8x128xf32>
    %148 = arith.mulf %137, %119 : vector<8x128xf32>
    %149 = arith.addf %147, %148 : vector<8x128xf32>
    %c24_55 = arith.constant 24 : index
    %c0_56 = arith.constant 0 : index
    %150 = vector.load %arg11[%c24_55, %c0_56] : memref<64x128xf32, #tpu.memory_space<vmem>>, vector<8x128xf32>
    tpu.vector_store %arg11[%c24_55, %c0_56], %149 {strides = array<i32>} : memref<64x128xf32, #tpu.memory_space<vmem>>, vector<8x128xf32>,
    %c32 = arith.constant 32 : index
    %c0_57 = arith.constant 0 : index
    %151 = vector.load %arg12[%c32, %c0_57] : memref<64x384xf32, #tpu.memory_space<vmem>>, vector<8x384xf32>
    %c24_58 = arith.constant 24 : index
    %c0_59 = arith.constant 0 : index
    %152 = vector.load %arg11[%c24_58, %c0_59] : memref<64x128xf32, #tpu.memory_space<vmem>>, vector<8x128xf32>
    %true_60 = arith.constant true
    %cst_61 = arith.constant 0.000000e+00 : f32
    %153 = vector.broadcast %cst_61 : f32 to vector<8x128xf32>
    %154 = arith.select %true_60, %152, %153 : vector<8x128xf32>
    %155 = arith.truncf %154 : vector<8x128xf32> to vector<8x128xbf16>
    %cst_62 = arith.constant dense<0.000000e+00> : vector<8x384xf32>
    %156 = tpu.matmul %155, %9, %cst_62 {dimension_numbers = #tpu.dot_dimension_numbers<[1], [0], [0], [1], [0, 0, 1, 1], [], []>} : vector<8x128xbf16>, vector<128x384xbf16>, vector<8x384xf32> -> vector<8x384xf32>
    %157 = vector.extract_strided_slice %151 {offsets = [0, 0], sizes = [8, 128], strides = [1, 1]} : vector<8x384xf32> to vector<8x128xf32>
    %158 = vector.extract_strided_slice %156 {offsets = [0, 0], sizes = [8, 128], strides = [1, 1]} : vector<8x384xf32> to vector<8x128xf32>
    %159 = arith.addf %157, %158 : vector<8x128xf32>
    %160 = arith.negf %159 : vector<8x128xf32>
    %161 = math.exp %160 : vector<8x128xf32>
    %cst_63 = arith.constant 1.000000e+00 : f32
    %162 = vector.broadcast %cst_63 : f32 to vector<8x128xf32>
    %163 = arith.addf %162, %161 : vector<8x128xf32>
    %164 = arith.divf %162, %163 : vector<8x128xf32>
    %165 = vector.extract_strided_slice %151 {offsets = [0, 128], sizes = [8, 128], strides = [1, 1]} : vector<8x384xf32> to vector<8x128xf32>
    %166 = vector.extract_strided_slice %156 {offsets = [0, 128], sizes = [8, 128], strides = [1, 1]} : vector<8x384xf32> to vector<8x128xf32>
    %167 = arith.addf %165, %166 : vector<8x128xf32>
    %168 = arith.negf %167 : vector<8x128xf32>
    %169 = math.exp %168 : vector<8x128xf32>
    %cst_64 = arith.constant 1.000000e+00 : f32
    %170 = vector.broadcast %cst_64 : f32 to vector<8x128xf32>
    %171 = arith.addf %170, %169 : vector<8x128xf32>
    %172 = arith.divf %170, %171 : vector<8x128xf32>
    %173 = vector.extract_strided_slice %151 {offsets = [0, 256], sizes = [8, 128], strides = [1, 1]} : vector<8x384xf32> to vector<8x128xf32>
    %174 = vector.extract_strided_slice %156 {offsets = [0, 256], sizes = [8, 128], strides = [1, 1]} : vector<8x384xf32> to vector<8x128xf32>
    %175 = vector.broadcast %10 : vector<1x128xf32> to vector<8x128xf32>
    %176 = arith.addf %174, %175 : vector<8x128xf32>
    %177 = arith.mulf %164, %176 : vector<8x128xf32>
    %178 = arith.addf %173, %177 : vector<8x128xf32>
    %179 = math.tanh %178 : vector<8x128xf32>
    %cst_65 = arith.constant 1.000000e+00 : f32
    %180 = vector.broadcast %cst_65 : f32 to vector<8x128xf32>
    %181 = arith.subf %180, %172 : vector<8x128xf32>
    %182 = arith.mulf %181, %179 : vector<8x128xf32>
    %183 = arith.mulf %172, %154 : vector<8x128xf32>
    %184 = arith.addf %182, %183 : vector<8x128xf32>
    %c32_66 = arith.constant 32 : index
    %c0_67 = arith.constant 0 : index
    %185 = vector.load %arg11[%c32_66, %c0_67] : memref<64x128xf32, #tpu.memory_space<vmem>>, vector<8x128xf32>
    tpu.vector_store %arg11[%c32_66, %c0_67], %184 {strides = array<i32>} : memref<64x128xf32, #tpu.memory_space<vmem>>, vector<8x128xf32>,
    %c40 = arith.constant 40 : index
    %c0_68 = arith.constant 0 : index
    %186 = vector.load %arg12[%c40, %c0_68] : memref<64x384xf32, #tpu.memory_space<vmem>>, vector<8x384xf32>
    %c32_69 = arith.constant 32 : index
    %c0_70 = arith.constant 0 : index
    %187 = vector.load %arg11[%c32_69, %c0_70] : memref<64x128xf32, #tpu.memory_space<vmem>>, vector<8x128xf32>
    %true_71 = arith.constant true
    %cst_72 = arith.constant 0.000000e+00 : f32
    %188 = vector.broadcast %cst_72 : f32 to vector<8x128xf32>
    %189 = arith.select %true_71, %187, %188 : vector<8x128xf32>
    %190 = arith.truncf %189 : vector<8x128xf32> to vector<8x128xbf16>
    %cst_73 = arith.constant dense<0.000000e+00> : vector<8x384xf32>
    %191 = tpu.matmul %190, %9, %cst_73 {dimension_numbers = #tpu.dot_dimension_numbers<[1], [0], [0], [1], [0, 0, 1, 1], [], []>} : vector<8x128xbf16>, vector<128x384xbf16>, vector<8x384xf32> -> vector<8x384xf32>
    %192 = vector.extract_strided_slice %186 {offsets = [0, 0], sizes = [8, 128], strides = [1, 1]} : vector<8x384xf32> to vector<8x128xf32>
    %193 = vector.extract_strided_slice %191 {offsets = [0, 0], sizes = [8, 128], strides = [1, 1]} : vector<8x384xf32> to vector<8x128xf32>
    %194 = arith.addf %192, %193 : vector<8x128xf32>
    %195 = arith.negf %194 : vector<8x128xf32>
    %196 = math.exp %195 : vector<8x128xf32>
    %cst_74 = arith.constant 1.000000e+00 : f32
    %197 = vector.broadcast %cst_74 : f32 to vector<8x128xf32>
    %198 = arith.addf %197, %196 : vector<8x128xf32>
    %199 = arith.divf %197, %198 : vector<8x128xf32>
    %200 = vector.extract_strided_slice %186 {offsets = [0, 128], sizes = [8, 128], strides = [1, 1]} : vector<8x384xf32> to vector<8x128xf32>
    %201 = vector.extract_strided_slice %191 {offsets = [0, 128], sizes = [8, 128], strides = [1, 1]} : vector<8x384xf32> to vector<8x128xf32>
    %202 = arith.addf %200, %201 : vector<8x128xf32>
    %203 = arith.negf %202 : vector<8x128xf32>
    %204 = math.exp %203 : vector<8x128xf32>
    %cst_75 = arith.constant 1.000000e+00 : f32
    %205 = vector.broadcast %cst_75 : f32 to vector<8x128xf32>
    %206 = arith.addf %205, %204 : vector<8x128xf32>
    %207 = arith.divf %205, %206 : vector<8x128xf32>
    %208 = vector.extract_strided_slice %186 {offsets = [0, 256], sizes = [8, 128], strides = [1, 1]} : vector<8x384xf32> to vector<8x128xf32>
    %209 = vector.extract_strided_slice %191 {offsets = [0, 256], sizes = [8, 128], strides = [1, 1]} : vector<8x384xf32> to vector<8x128xf32>
    %210 = vector.broadcast %10 : vector<1x128xf32> to vector<8x128xf32>
    %211 = arith.addf %209, %210 : vector<8x128xf32>
    %212 = arith.mulf %199, %211 : vector<8x128xf32>
    %213 = arith.addf %208, %212 : vector<8x128xf32>
    %214 = math.tanh %213 : vector<8x128xf32>
    %cst_76 = arith.constant 1.000000e+00 : f32
    %215 = vector.broadcast %cst_76 : f32 to vector<8x128xf32>
    %216 = arith.subf %215, %207 : vector<8x128xf32>
    %217 = arith.mulf %216, %214 : vector<8x128xf32>
    %218 = arith.mulf %207, %189 : vector<8x128xf32>
    %219 = arith.addf %217, %218 : vector<8x128xf32>
    %c40_77 = arith.constant 40 : index
    %c0_78 = arith.constant 0 : index
    %220 = vector.load %arg11[%c40_77, %c0_78] : memref<64x128xf32, #tpu.memory_space<vmem>>, vector<8x128xf32>
    tpu.vector_store %arg11[%c40_77, %c0_78], %219 {strides = array<i32>} : memref<64x128xf32, #tpu.memory_space<vmem>>, vector<8x128xf32>,
    %c48 = arith.constant 48 : index
    %c0_79 = arith.constant 0 : index
    %221 = vector.load %arg12[%c48, %c0_79] : memref<64x384xf32, #tpu.memory_space<vmem>>, vector<8x384xf32>
    %c40_80 = arith.constant 40 : index
    %c0_81 = arith.constant 0 : index
    %222 = vector.load %arg11[%c40_80, %c0_81] : memref<64x128xf32, #tpu.memory_space<vmem>>, vector<8x128xf32>
    %true_82 = arith.constant true
    %cst_83 = arith.constant 0.000000e+00 : f32
    %223 = vector.broadcast %cst_83 : f32 to vector<8x128xf32>
    %224 = arith.select %true_82, %222, %223 : vector<8x128xf32>
    %225 = arith.truncf %224 : vector<8x128xf32> to vector<8x128xbf16>
    %cst_84 = arith.constant dense<0.000000e+00> : vector<8x384xf32>
    %226 = tpu.matmul %225, %9, %cst_84 {dimension_numbers = #tpu.dot_dimension_numbers<[1], [0], [0], [1], [0, 0, 1, 1], [], []>} : vector<8x128xbf16>, vector<128x384xbf16>, vector<8x384xf32> -> vector<8x384xf32>
    %227 = vector.extract_strided_slice %221 {offsets = [0, 0], sizes = [8, 128], strides = [1, 1]} : vector<8x384xf32> to vector<8x128xf32>
    %228 = vector.extract_strided_slice %226 {offsets = [0, 0], sizes = [8, 128], strides = [1, 1]} : vector<8x384xf32> to vector<8x128xf32>
    %229 = arith.addf %227, %228 : vector<8x128xf32>
    %230 = arith.negf %229 : vector<8x128xf32>
    %231 = math.exp %230 : vector<8x128xf32>
    %cst_85 = arith.constant 1.000000e+00 : f32
    %232 = vector.broadcast %cst_85 : f32 to vector<8x128xf32>
    %233 = arith.addf %232, %231 : vector<8x128xf32>
    %234 = arith.divf %232, %233 : vector<8x128xf32>
    %235 = vector.extract_strided_slice %221 {offsets = [0, 128], sizes = [8, 128], strides = [1, 1]} : vector<8x384xf32> to vector<8x128xf32>
    %236 = vector.extract_strided_slice %226 {offsets = [0, 128], sizes = [8, 128], strides = [1, 1]} : vector<8x384xf32> to vector<8x128xf32>
    %237 = arith.addf %235, %236 : vector<8x128xf32>
    %238 = arith.negf %237 : vector<8x128xf32>
    %239 = math.exp %238 : vector<8x128xf32>
    %cst_86 = arith.constant 1.000000e+00 : f32
    %240 = vector.broadcast %cst_86 : f32 to vector<8x128xf32>
    %241 = arith.addf %240, %239 : vector<8x128xf32>
    %242 = arith.divf %240, %241 : vector<8x128xf32>
    %243 = vector.extract_strided_slice %221 {offsets = [0, 256], sizes = [8, 128], strides = [1, 1]} : vector<8x384xf32> to vector<8x128xf32>
    %244 = vector.extract_strided_slice %226 {offsets = [0, 256], sizes = [8, 128], strides = [1, 1]} : vector<8x384xf32> to vector<8x128xf32>
    %245 = vector.broadcast %10 : vector<1x128xf32> to vector<8x128xf32>
    %246 = arith.addf %244, %245 : vector<8x128xf32>
    %247 = arith.mulf %234, %246 : vector<8x128xf32>
    %248 = arith.addf %243, %247 : vector<8x128xf32>
    %249 = math.tanh %248 : vector<8x128xf32>
    %cst_87 = arith.constant 1.000000e+00 : f32
    %250 = vector.broadcast %cst_87 : f32 to vector<8x128xf32>
    %251 = arith.subf %250, %242 : vector<8x128xf32>
    %252 = arith.mulf %251, %249 : vector<8x128xf32>
    %253 = arith.mulf %242, %224 : vector<8x128xf32>
    %254 = arith.addf %252, %253 : vector<8x128xf32>
    %c48_88 = arith.constant 48 : index
    %c0_89 = arith.constant 0 : index
    %255 = vector.load %arg11[%c48_88, %c0_89] : memref<64x128xf32, #tpu.memory_space<vmem>>, vector<8x128xf32>
    tpu.vector_store %arg11[%c48_88, %c0_89], %254 {strides = array<i32>} : memref<64x128xf32, #tpu.memory_space<vmem>>, vector<8x128xf32>,
    %c56 = arith.constant 56 : index
    %c0_90 = arith.constant 0 : index
    %256 = vector.load %arg12[%c56, %c0_90] : memref<64x384xf32, #tpu.memory_space<vmem>>, vector<8x384xf32>
    %c48_91 = arith.constant 48 : index
    %c0_92 = arith.constant 0 : index
    %257 = vector.load %arg11[%c48_91, %c0_92] : memref<64x128xf32, #tpu.memory_space<vmem>>, vector<8x128xf32>
    %true_93 = arith.constant true
    %cst_94 = arith.constant 0.000000e+00 : f32
    %258 = vector.broadcast %cst_94 : f32 to vector<8x128xf32>
    %259 = arith.select %true_93, %257, %258 : vector<8x128xf32>
    %260 = arith.truncf %259 : vector<8x128xf32> to vector<8x128xbf16>
    %cst_95 = arith.constant dense<0.000000e+00> : vector<8x384xf32>
    %261 = tpu.matmul %260, %9, %cst_95 {dimension_numbers = #tpu.dot_dimension_numbers<[1], [0], [0], [1], [0, 0, 1, 1], [], []>} : vector<8x128xbf16>, vector<128x384xbf16>, vector<8x384xf32> -> vector<8x384xf32>
    %262 = vector.extract_strided_slice %256 {offsets = [0, 0], sizes = [8, 128], strides = [1, 1]} : vector<8x384xf32> to vector<8x128xf32>
    %263 = vector.extract_strided_slice %261 {offsets = [0, 0], sizes = [8, 128], strides = [1, 1]} : vector<8x384xf32> to vector<8x128xf32>
    %264 = arith.addf %262, %263 : vector<8x128xf32>
    %265 = arith.negf %264 : vector<8x128xf32>
    %266 = math.exp %265 : vector<8x128xf32>
    %cst_96 = arith.constant 1.000000e+00 : f32
    %267 = vector.broadcast %cst_96 : f32 to vector<8x128xf32>
    %268 = arith.addf %267, %266 : vector<8x128xf32>
    %269 = arith.divf %267, %268 : vector<8x128xf32>
    %270 = vector.extract_strided_slice %256 {offsets = [0, 128], sizes = [8, 128], strides = [1, 1]} : vector<8x384xf32> to vector<8x128xf32>
    %271 = vector.extract_strided_slice %261 {offsets = [0, 128], sizes = [8, 128], strides = [1, 1]} : vector<8x384xf32> to vector<8x128xf32>
    %272 = arith.addf %270, %271 : vector<8x128xf32>
    %273 = arith.negf %272 : vector<8x128xf32>
    %274 = math.exp %273 : vector<8x128xf32>
    %cst_97 = arith.constant 1.000000e+00 : f32
    %275 = vector.broadcast %cst_97 : f32 to vector<8x128xf32>
    %276 = arith.addf %275, %274 : vector<8x128xf32>
    %277 = arith.divf %275, %276 : vector<8x128xf32>
    %278 = vector.extract_strided_slice %256 {offsets = [0, 256], sizes = [8, 128], strides = [1, 1]} : vector<8x384xf32> to vector<8x128xf32>
    %279 = vector.extract_strided_slice %261 {offsets = [0, 256], sizes = [8, 128], strides = [1, 1]} : vector<8x384xf32> to vector<8x128xf32>
    %280 = vector.broadcast %10 : vector<1x128xf32> to vector<8x128xf32>
    %281 = arith.addf %279, %280 : vector<8x128xf32>
    %282 = arith.mulf %269, %281 : vector<8x128xf32>
    %283 = arith.addf %278, %282 : vector<8x128xf32>
    %284 = math.tanh %283 : vector<8x128xf32>
    %cst_98 = arith.constant 1.000000e+00 : f32
    %285 = vector.broadcast %cst_98 : f32 to vector<8x128xf32>
    %286 = arith.subf %285, %277 : vector<8x128xf32>
    %287 = arith.mulf %286, %284 : vector<8x128xf32>
    %288 = arith.mulf %277, %259 : vector<8x128xf32>
    %289 = arith.addf %287, %288 : vector<8x128xf32>
    %c56_99 = arith.constant 56 : index
    %c0_100 = arith.constant 0 : index
    %290 = vector.load %arg11[%c56_99, %c0_100] : memref<64x128xf32, #tpu.memory_space<vmem>>, vector<8x128xf32>
    tpu.vector_store %arg11[%c56_99, %c0_100], %289 {strides = array<i32>} : memref<64x128xf32, #tpu.memory_space<vmem>>, vector<8x128xf32>,
    %c0_101 = arith.constant 0 : index
    %c0_102 = arith.constant 0 : index
    %291 = vector.load %arg11[%c0_101, %c0_102] : memref<64x128xf32, #tpu.memory_space<vmem>>, vector<64x128xf32>
    %292 = arith.truncf %291 : vector<64x128xf32> to vector<64x128xbf16>
    %c0_103 = arith.constant 0 : index
    %c0_104 = arith.constant 0 : index
    %293 = vector.load %arg6[%c0_103, %c0_104] : memref<128x384xbf16, #tpu.memory_space<vmem>>, vector<128x384xbf16>
    %cst_105 = arith.constant dense<0.000000e+00> : vector<64x384xf32>
    %294 = tpu.matmul %292, %293, %cst_105 {dimension_numbers = #tpu.dot_dimension_numbers<[1], [0], [0], [1], [0, 0, 1, 1], [], []>} : vector<64x128xbf16>, vector<128x384xbf16>, vector<64x384xf32> -> vector<64x384xf32>
    %c0_106 = arith.constant 0 : index
    %c0_107 = arith.constant 0 : index
    %295 = vector.load %arg8[%c0_106, %c0_107] : memref<1x384xf32, #tpu.memory_space<vmem>>, vector<1x384xf32>
    %296 = vector.broadcast %295 : vector<1x384xf32> to vector<64x384xf32>
    %297 = arith.addf %294, %296 : vector<64x384xf32>
    %c0_108 = arith.constant 0 : index
    %c0_109 = arith.constant 0 : index
    %298 = vector.load %arg12[%c0_108, %c0_109] : memref<64x384xf32, #tpu.memory_space<vmem>>, vector<64x384xf32>
    tpu.vector_store %arg12[%c0_108, %c0_109], %297 {strides = array<i32>} : memref<64x384xf32, #tpu.memory_space<vmem>>, vector<64x384xf32>,
    %c0_110 = arith.constant 0 : index
    %c0_111 = arith.constant 0 : index
    %299 = vector.load %arg7[%c0_110, %c0_111] : memref<128x384xbf16, #tpu.memory_space<vmem>>, vector<128x384xbf16>
    %c0_112 = arith.constant 0 : index
    %c0_113 = arith.constant 0 : index
    %300 = vector.load %arg9[%c0_112, %c0_113] : memref<1x128xf32, #tpu.memory_space<vmem>>, vector<1x128xf32>
    %c0_114 = arith.constant 0 : index
    %c0_115 = arith.constant 0 : index
    %301 = vector.load %arg12[%c0_114, %c0_115] : memref<64x384xf32, #tpu.memory_space<vmem>>, vector<16x384xf32>
    %c0_116 = arith.constant 0 : index
    %c0_117 = arith.constant 0 : index
    %302 = vector.load %arg11[%c0_116, %c0_117] : memref<64x128xf32, #tpu.memory_space<vmem>>, vector<16x128xf32>
    %false_118 = arith.constant false
    %cst_119 = arith.constant 0.000000e+00 : f32
    %303 = vector.broadcast %cst_119 : f32 to vector<16x128xf32>
    %304 = arith.select %false_118, %302, %303 : vector<16x128xf32>
    %305 = arith.truncf %304 : vector<16x128xf32> to vector<16x128xbf16>
    %cst_120 = arith.constant dense<0.000000e+00> : vector<16x384xf32>
    %306 = tpu.matmul %305, %299, %cst_120 {dimension_numbers = #tpu.dot_dimension_numbers<[1], [0], [0], [1], [0, 0, 1, 1], [], []>} : vector<16x128xbf16>, vector<128x384xbf16>, vector<16x384xf32> -> vector<16x384xf32>
    %307 = vector.extract_strided_slice %301 {offsets = [0, 0], sizes = [16, 128], strides = [1, 1]} : vector<16x384xf32> to vector<16x128xf32>
    %308 = vector.extract_strided_slice %306 {offsets = [0, 0], sizes = [16, 128], strides = [1, 1]} : vector<16x384xf32> to vector<16x128xf32>
    %309 = arith.addf %307, %308 : vector<16x128xf32>
    %310 = arith.negf %309 : vector<16x128xf32>
    %311 = math.exp %310 : vector<16x128xf32>
    %cst_121 = arith.constant 1.000000e+00 : f32
    %312 = vector.broadcast %cst_121 : f32 to vector<16x128xf32>
    %313 = arith.addf %312, %311 : vector<16x128xf32>
    %314 = arith.divf %312, %313 : vector<16x128xf32>
    %315 = vector.extract_strided_slice %301 {offsets = [0, 128], sizes = [16, 128], strides = [1, 1]} : vector<16x384xf32> to vector<16x128xf32>
    %316 = vector.extract_strided_slice %306 {offsets = [0, 128], sizes = [16, 128], strides = [1, 1]} : vector<16x384xf32> to vector<16x128xf32>
    %317 = arith.addf %315, %316 : vector<16x128xf32>
    %318 = arith.negf %317 : vector<16x128xf32>
    %319 = math.exp %318 : vector<16x128xf32>
    %cst_122 = arith.constant 1.000000e+00 : f32
    %320 = vector.broadcast %cst_122 : f32 to vector<16x128xf32>
    %321 = arith.addf %320, %319 : vector<16x128xf32>
    %322 = arith.divf %320, %321 : vector<16x128xf32>
    %323 = vector.extract_strided_slice %301 {offsets = [0, 256], sizes = [16, 128], strides = [1, 1]} : vector<16x384xf32> to vector<16x128xf32>
    %324 = vector.extract_strided_slice %306 {offsets = [0, 256], sizes = [16, 128], strides = [1, 1]} : vector<16x384xf32> to vector<16x128xf32>
    %325 = vector.broadcast %300 : vector<1x128xf32> to vector<16x128xf32>
    %326 = arith.addf %324, %325 : vector<16x128xf32>
    %327 = arith.mulf %314, %326 : vector<16x128xf32>
    %328 = arith.addf %323, %327 : vector<16x128xf32>
    %329 = math.tanh %328 : vector<16x128xf32>
    %cst_123 = arith.constant 1.000000e+00 : f32
    %330 = vector.broadcast %cst_123 : f32 to vector<16x128xf32>
    %331 = arith.subf %330, %322 : vector<16x128xf32>
    %332 = arith.mulf %331, %329 : vector<16x128xf32>
    %333 = arith.mulf %322, %304 : vector<16x128xf32>
    %334 = arith.addf %332, %333 : vector<16x128xf32>
    %c0_124 = arith.constant 0 : index
    %c0_125 = arith.constant 0 : index
    %335 = vector.load %arg11[%c0_124, %c0_125] : memref<64x128xf32, #tpu.memory_space<vmem>>, vector<16x128xf32>
    tpu.vector_store %arg11[%c0_124, %c0_125], %334 {strides = array<i32>} : memref<64x128xf32, #tpu.memory_space<vmem>>, vector<16x128xf32>,
    %c16_126 = arith.constant 16 : index
    %c0_127 = arith.constant 0 : index
    %336 = vector.load %arg12[%c16_126, %c0_127] : memref<64x384xf32, #tpu.memory_space<vmem>>, vector<16x384xf32>
    %c0_128 = arith.constant 0 : index
    %c0_129 = arith.constant 0 : index
    %337 = vector.load %arg11[%c0_128, %c0_129] : memref<64x128xf32, #tpu.memory_space<vmem>>, vector<16x128xf32>
    %true_130 = arith.constant true
    %cst_131 = arith.constant 0.000000e+00 : f32
    %338 = vector.broadcast %cst_131 : f32 to vector<16x128xf32>
    %339 = arith.select %true_130, %337, %338 : vector<16x128xf32>
    %340 = arith.truncf %339 : vector<16x128xf32> to vector<16x128xbf16>
    %cst_132 = arith.constant dense<0.000000e+00> : vector<16x384xf32>
    %341 = tpu.matmul %340, %299, %cst_132 {dimension_numbers = #tpu.dot_dimension_numbers<[1], [0], [0], [1], [0, 0, 1, 1], [], []>} : vector<16x128xbf16>, vector<128x384xbf16>, vector<16x384xf32> -> vector<16x384xf32>
    %342 = vector.extract_strided_slice %336 {offsets = [0, 0], sizes = [16, 128], strides = [1, 1]} : vector<16x384xf32> to vector<16x128xf32>
    %343 = vector.extract_strided_slice %341 {offsets = [0, 0], sizes = [16, 128], strides = [1, 1]} : vector<16x384xf32> to vector<16x128xf32>
    %344 = arith.addf %342, %343 : vector<16x128xf32>
    %345 = arith.negf %344 : vector<16x128xf32>
    %346 = math.exp %345 : vector<16x128xf32>
    %cst_133 = arith.constant 1.000000e+00 : f32
    %347 = vector.broadcast %cst_133 : f32 to vector<16x128xf32>
    %348 = arith.addf %347, %346 : vector<16x128xf32>
    %349 = arith.divf %347, %348 : vector<16x128xf32>
    %350 = vector.extract_strided_slice %336 {offsets = [0, 128], sizes = [16, 128], strides = [1, 1]} : vector<16x384xf32> to vector<16x128xf32>
    %351 = vector.extract_strided_slice %341 {offsets = [0, 128], sizes = [16, 128], strides = [1, 1]} : vector<16x384xf32> to vector<16x128xf32>
    %352 = arith.addf %350, %351 : vector<16x128xf32>
    %353 = arith.negf %352 : vector<16x128xf32>
    %354 = math.exp %353 : vector<16x128xf32>
    %cst_134 = arith.constant 1.000000e+00 : f32
    %355 = vector.broadcast %cst_134 : f32 to vector<16x128xf32>
    %356 = arith.addf %355, %354 : vector<16x128xf32>
    %357 = arith.divf %355, %356 : vector<16x128xf32>
    %358 = vector.extract_strided_slice %336 {offsets = [0, 256], sizes = [16, 128], strides = [1, 1]} : vector<16x384xf32> to vector<16x128xf32>
    %359 = vector.extract_strided_slice %341 {offsets = [0, 256], sizes = [16, 128], strides = [1, 1]} : vector<16x384xf32> to vector<16x128xf32>
    %360 = vector.broadcast %300 : vector<1x128xf32> to vector<16x128xf32>
    %361 = arith.addf %359, %360 : vector<16x128xf32>
    %362 = arith.mulf %349, %361 : vector<16x128xf32>
    %363 = arith.addf %358, %362 : vector<16x128xf32>
    %364 = math.tanh %363 : vector<16x128xf32>
    %cst_135 = arith.constant 1.000000e+00 : f32
    %365 = vector.broadcast %cst_135 : f32 to vector<16x128xf32>
    %366 = arith.subf %365, %357 : vector<16x128xf32>
    %367 = arith.mulf %366, %364 : vector<16x128xf32>
    %368 = arith.mulf %357, %339 : vector<16x128xf32>
    %369 = arith.addf %367, %368 : vector<16x128xf32>
    %c16_136 = arith.constant 16 : index
    %c0_137 = arith.constant 0 : index
    %370 = vector.load %arg11[%c16_136, %c0_137] : memref<64x128xf32, #tpu.memory_space<vmem>>, vector<16x128xf32>
    tpu.vector_store %arg11[%c16_136, %c0_137], %369 {strides = array<i32>} : memref<64x128xf32, #tpu.memory_space<vmem>>, vector<16x128xf32>,
    %c32_138 = arith.constant 32 : index
    %c0_139 = arith.constant 0 : index
    %371 = vector.load %arg12[%c32_138, %c0_139] : memref<64x384xf32, #tpu.memory_space<vmem>>, vector<16x384xf32>
    %c16_140 = arith.constant 16 : index
    %c0_141 = arith.constant 0 : index
    %372 = vector.load %arg11[%c16_140, %c0_141] : memref<64x128xf32, #tpu.memory_space<vmem>>, vector<16x128xf32>
    %true_142 = arith.constant true
    %cst_143 = arith.constant 0.000000e+00 : f32
    %373 = vector.broadcast %cst_143 : f32 to vector<16x128xf32>
    %374 = arith.select %true_142, %372, %373 : vector<16x128xf32>
    %375 = arith.truncf %374 : vector<16x128xf32> to vector<16x128xbf16>
    %cst_144 = arith.constant dense<0.000000e+00> : vector<16x384xf32>
    %376 = tpu.matmul %375, %299, %cst_144 {dimension_numbers = #tpu.dot_dimension_numbers<[1], [0], [0], [1], [0, 0, 1, 1], [], []>} : vector<16x128xbf16>, vector<128x384xbf16>, vector<16x384xf32> -> vector<16x384xf32>
    %377 = vector.extract_strided_slice %371 {offsets = [0, 0], sizes = [16, 128], strides = [1, 1]} : vector<16x384xf32> to vector<16x128xf32>
    %378 = vector.extract_strided_slice %376 {offsets = [0, 0], sizes = [16, 128], strides = [1, 1]} : vector<16x384xf32> to vector<16x128xf32>
    %379 = arith.addf %377, %378 : vector<16x128xf32>
    %380 = arith.negf %379 : vector<16x128xf32>
    %381 = math.exp %380 : vector<16x128xf32>
    %cst_145 = arith.constant 1.000000e+00 : f32
    %382 = vector.broadcast %cst_145 : f32 to vector<16x128xf32>
    %383 = arith.addf %382, %381 : vector<16x128xf32>
    %384 = arith.divf %382, %383 : vector<16x128xf32>
    %385 = vector.extract_strided_slice %371 {offsets = [0, 128], sizes = [16, 128], strides = [1, 1]} : vector<16x384xf32> to vector<16x128xf32>
    %386 = vector.extract_strided_slice %376 {offsets = [0, 128], sizes = [16, 128], strides = [1, 1]} : vector<16x384xf32> to vector<16x128xf32>
    %387 = arith.addf %385, %386 : vector<16x128xf32>
    %388 = arith.negf %387 : vector<16x128xf32>
    %389 = math.exp %388 : vector<16x128xf32>
    %cst_146 = arith.constant 1.000000e+00 : f32
    %390 = vector.broadcast %cst_146 : f32 to vector<16x128xf32>
    %391 = arith.addf %390, %389 : vector<16x128xf32>
    %392 = arith.divf %390, %391 : vector<16x128xf32>
    %393 = vector.extract_strided_slice %371 {offsets = [0, 256], sizes = [16, 128], strides = [1, 1]} : vector<16x384xf32> to vector<16x128xf32>
    %394 = vector.extract_strided_slice %376 {offsets = [0, 256], sizes = [16, 128], strides = [1, 1]} : vector<16x384xf32> to vector<16x128xf32>
    %395 = vector.broadcast %300 : vector<1x128xf32> to vector<16x128xf32>
    %396 = arith.addf %394, %395 : vector<16x128xf32>
    %397 = arith.mulf %384, %396 : vector<16x128xf32>
    %398 = arith.addf %393, %397 : vector<16x128xf32>
    %399 = math.tanh %398 : vector<16x128xf32>
    %cst_147 = arith.constant 1.000000e+00 : f32
    %400 = vector.broadcast %cst_147 : f32 to vector<16x128xf32>
    %401 = arith.subf %400, %392 : vector<16x128xf32>
    %402 = arith.mulf %401, %399 : vector<16x128xf32>
    %403 = arith.mulf %392, %374 : vector<16x128xf32>
    %404 = arith.addf %402, %403 : vector<16x128xf32>
    %c32_148 = arith.constant 32 : index
    %c0_149 = arith.constant 0 : index
    %405 = vector.load %arg11[%c32_148, %c0_149] : memref<64x128xf32, #tpu.memory_space<vmem>>, vector<16x128xf32>
    tpu.vector_store %arg11[%c32_148, %c0_149], %404 {strides = array<i32>} : memref<64x128xf32, #tpu.memory_space<vmem>>, vector<16x128xf32>,
    %c48_150 = arith.constant 48 : index
    %c0_151 = arith.constant 0 : index
    %406 = vector.load %arg12[%c48_150, %c0_151] : memref<64x384xf32, #tpu.memory_space<vmem>>, vector<16x384xf32>
    %c32_152 = arith.constant 32 : index
    %c0_153 = arith.constant 0 : index
    %407 = vector.load %arg11[%c32_152, %c0_153] : memref<64x128xf32, #tpu.memory_space<vmem>>, vector<16x128xf32>
    %true_154 = arith.constant true
    %cst_155 = arith.constant 0.000000e+00 : f32
    %408 = vector.broadcast %cst_155 : f32 to vector<16x128xf32>
    %409 = arith.select %true_154, %407, %408 : vector<16x128xf32>
    %410 = arith.truncf %409 : vector<16x128xf32> to vector<16x128xbf16>
    %cst_156 = arith.constant dense<0.000000e+00> : vector<16x384xf32>
    %411 = tpu.matmul %410, %299, %cst_156 {dimension_numbers = #tpu.dot_dimension_numbers<[1], [0], [0], [1], [0, 0, 1, 1], [], []>} : vector<16x128xbf16>, vector<128x384xbf16>, vector<16x384xf32> -> vector<16x384xf32>
    %412 = vector.extract_strided_slice %406 {offsets = [0, 0], sizes = [16, 128], strides = [1, 1]} : vector<16x384xf32> to vector<16x128xf32>
    %413 = vector.extract_strided_slice %411 {offsets = [0, 0], sizes = [16, 128], strides = [1, 1]} : vector<16x384xf32> to vector<16x128xf32>
    %414 = arith.addf %412, %413 : vector<16x128xf32>
    %415 = arith.negf %414 : vector<16x128xf32>
    %416 = math.exp %415 : vector<16x128xf32>
    %cst_157 = arith.constant 1.000000e+00 : f32
    %417 = vector.broadcast %cst_157 : f32 to vector<16x128xf32>
    %418 = arith.addf %417, %416 : vector<16x128xf32>
    %419 = arith.divf %417, %418 : vector<16x128xf32>
    %420 = vector.extract_strided_slice %406 {offsets = [0, 128], sizes = [16, 128], strides = [1, 1]} : vector<16x384xf32> to vector<16x128xf32>
    %421 = vector.extract_strided_slice %411 {offsets = [0, 128], sizes = [16, 128], strides = [1, 1]} : vector<16x384xf32> to vector<16x128xf32>
    %422 = arith.addf %420, %421 : vector<16x128xf32>
    %423 = arith.negf %422 : vector<16x128xf32>
    %424 = math.exp %423 : vector<16x128xf32>
    %cst_158 = arith.constant 1.000000e+00 : f32
    %425 = vector.broadcast %cst_158 : f32 to vector<16x128xf32>
    %426 = arith.addf %425, %424 : vector<16x128xf32>
    %427 = arith.divf %425, %426 : vector<16x128xf32>
    %428 = vector.extract_strided_slice %406 {offsets = [0, 256], sizes = [16, 128], strides = [1, 1]} : vector<16x384xf32> to vector<16x128xf32>
    %429 = vector.extract_strided_slice %411 {offsets = [0, 256], sizes = [16, 128], strides = [1, 1]} : vector<16x384xf32> to vector<16x128xf32>
    %430 = vector.broadcast %300 : vector<1x128xf32> to vector<16x128xf32>
    %431 = arith.addf %429, %430 : vector<16x128xf32>
    %432 = arith.mulf %419, %431 : vector<16x128xf32>
    %433 = arith.addf %428, %432 : vector<16x128xf32>
    %434 = math.tanh %433 : vector<16x128xf32>
    %cst_159 = arith.constant 1.000000e+00 : f32
    %435 = vector.broadcast %cst_159 : f32 to vector<16x128xf32>
    %436 = arith.subf %435, %427 : vector<16x128xf32>
    %437 = arith.mulf %436, %434 : vector<16x128xf32>
    %438 = arith.mulf %427, %409 : vector<16x128xf32>
    %439 = arith.addf %437, %438 : vector<16x128xf32>
    %c48_160 = arith.constant 48 : index
    %c0_161 = arith.constant 0 : index
    %440 = vector.load %arg11[%c48_160, %c0_161] : memref<64x128xf32, #tpu.memory_space<vmem>>, vector<16x128xf32>
    tpu.vector_store %arg11[%c48_160, %c0_161], %439 {strides = array<i32>} : memref<64x128xf32, #tpu.memory_space<vmem>>, vector<16x128xf32>,
    %c0_162 = arith.constant 0 : index
    %c0_163 = arith.constant 0 : index
    %441 = vector.load %arg11[%c0_162, %c0_163] : memref<64x128xf32, #tpu.memory_space<vmem>>, vector<64x128xf32>
    %c0_164 = arith.constant 0 : index
    %c0_165 = arith.constant 0 : index
    %442 = vector.load %arg1[%c0_164, %c0_165] : memref<64x1xf32, #tpu.memory_space<vmem>>, vector<64x1xf32>
    %443 = vector.broadcast %442 : vector<64x1xf32> to vector<64x128xf32>
    %444 = arith.mulf %441, %443 : vector<64x128xf32>
    %c0_166 = arith.constant 0 : index
    %c0_167 = arith.constant 0 : index
    %445 = vector.load %arg10[%c0_166, %c0_167] : memref<64x128xf32, #tpu.memory_space<vmem>>, vector<64x128xf32>
    tpu.vector_store %arg10[%c0_166, %c0_167], %444 {strides = array<i32>} : memref<64x128xf32, #tpu.memory_space<vmem>>, vector<64x128xf32>,
    return
  }
}

</mosaic_0001>

<llo_original>
// kernel: tile.8
$region0: #{tile.8}
  #allocation0 [shape = 's32[1]{0}', space=sflag, size = 0x4, scoped, tag = 'scoped memory for tile.8']
  %s0 = inlined_call_operand.vmem [shape: f32[8], index: 0, kind: input, shape index: {}]
  %s1 = inlined_call_operand.vmem [shape: f32[8,8], index: 1, kind: output, shape index: {}]
  // Predicated region
  $region2: #{tile.8} parent=0 // pred_check
    _
  $region3: #{tile.8} parent=0 // pred_check_branch
    %3 = sbr.rel (0) target = $region5
  $region4: #{tile.8} parent=0 // pred_region
    _
  $region5: #{tile.8} parent=0 // pred_fallthru
    _
  %v4 = vld [vmem:[%s0] ss:$0 sm:$0xff]
  %5 = vst [vmem:[%s1] sm:$0xff] %v4

// kernel: tile.0
$region0: #{tile.0}
  %s0 = inlined_call_operand.vmem [shape: f32[8,8], index: 0, kind: input, shape index: {}]
  %s1 = inlined_call_operand.vmem [shape: f32[64,1], index: 1, kind: output, shape index: {}]
  %v2 = vld [vmem:[%s0] sm:$0xff]
  %vm3 = vcmask 7168
  %4 = vst.msk [vmem:[%s1] ss:$8 sm:$0xf] %vm3, %v2
  %5 = vst.msk [vmem:[%s1] ss:$8 sm:$0xf0] %vm3, %v2
  %v6 = vld [vmem:[%s0] sm:$0xff]
  %7 = vrot.lane.b32.xlu0 %v6, 127
  %v8 = vpop.permute.xlu0 %7
  %vm9 = vcmask 7168
  %s10 = scalar_lea.vmem %s1, 1
  %11 = vst.msk [vmem:[%s10] ss:$8 sm:$0xf] %vm9, %v8
  %s12 = scalar_lea.vmem %s1, 1
  %13 = vst.msk [vmem:[%s12] ss:$8 sm:$0xf0] %vm9, %v8
  %v14 = vld [vmem:[%s0] sm:$0xff]
  %15 = vrot.lane.b32.xlu0 %v14, 126
  %v16 = vpop.permute.xlu0 %15
  %vm17 = vcmask 7168
  %s18 = scalar_lea.vmem %s1, 2
  %19 = vst.msk [vmem:[%s18] ss:$8 sm:$0xf] %vm17, %v16
  %s20 = scalar_lea.vmem %s1, 2
  %21 = vst.msk [vmem:[%s20] ss:$8 sm:$0xf0] %vm17, %v16
  %v22 = vld [vmem:[%s0] sm:$0xff]
  %23 = vrot.lane.b32.xlu0 %v22, 125
  %v24 = vpop.permute.xlu0 %23
  %vm25 = vcmask 7168
  %s26 = scalar_lea.vmem %s1, 3
  %27 = vst.msk [vmem:[%s26] ss:$8 sm:$0xf] %vm25, %v24
  %s28 = scalar_lea.vmem %s1, 3
  %29 = vst.msk [vmem:[%s28] ss:$8 sm:$0xf0] %vm25, %v24
  %v30 = vld [vmem:[%s0] sm:$0xff]
  %31 = vrot.lane.b32.xlu0 %v30, 124
  %v32 = vpop.permute.xlu0 %31
  %vm33 = vcmask 7168
  %s34 = scalar_lea.vmem %s1, 4
  %35 = vst.msk [vmem:[%s34] ss:$8 sm:$0xf] %vm33, %v32
  %s36 = scalar_lea.vmem %s1, 4
  %37 = vst.msk [vmem:[%s36] ss:$8 sm:$0xf0] %vm33, %v32
  %v38 = vld [vmem:[%s0] sm:$0xff]
  %39 = vrot.lane.b32.xlu0 %v38, 123
  %v40 = vpop.permute.xlu0 %39
  %vm41 = vcmask 7168
  %s42 = scalar_lea.vmem %s1, 5
  %43 = vst.msk [vmem:[%s42] ss:$8 sm:$0xf] %vm41, %v40
  %s44 = scalar_lea.vmem %s1, 5
  %45 = vst.msk [vmem:[%s44] ss:$8 sm:$0xf0] %vm41, %v40
  %v46 = vld [vmem:[%s0] sm:$0xff]
  %47 = vrot.lane.b32.xlu0 %v46, 122
  %v48 = vpop.permute.xlu0 %47
  %vm49 = vcmask 7168
  %s50 = scalar_lea.vmem %s1, 6
  %51 = vst.msk [vmem:[%s50] ss:$8 sm:$0xf] %vm49, %v48
  %s52 = scalar_lea.vmem %s1, 6
  %53 = vst.msk [vmem:[%s52] ss:$8 sm:$0xf0] %vm49, %v48
  %v54 = vld [vmem:[%s0] sm:$0xff]
  %55 = vrot.lane.b32.xlu0 %v54, 121
  %v56 = vpop.permute.xlu0 %55
  %vm57 = vcmask 7168
  %s58 = scalar_lea.vmem %s1, 7
  %59 = vst.msk [vmem:[%s58] ss:$8 sm:$0xf] %vm57, %v56
  %s60 = scalar_lea.vmem %s1, 7
  %61 = vst.msk [vmem:[%s60] ss:$8 sm:$0xf0] %vm57, %v56

// kernel: encoder_drnn_forward.1
$region0: #{encoder_drnn_forward.1}
  #allocation0 [shape = 'u32[]', space=smem, size = 0x4, offset = 0x4, fixed_abs, tag = 'smem constant byte address 0x4 - core index']
  #allocation1 [shape = 'u32[144,128]{1,0:T(1,128)}', space=vmem, size = 0x12000, scoped, tag = 'internal scratch']
  #allocation2 [shape = 'f32[64,128]{1,0:T(8,128)}', space=vmem, size = 0x8000, scoped, tag = 'scratch operand']
  #allocation3 [shape = 'f32[64,384]{1,0:T(8,128)}', space=vmem, size = 0x18000, scoped, tag = 'scratch operand']
  %s0 = inlined_call_operand.vmem [shape: bf16[64,128], index: 0, kind: input, shape index: {}]
  %s1 = inlined_call_operand.vmem [shape: f32[64,1], index: 1, kind: input, shape index: {}]
  %s2 = inlined_call_operand.vmem [shape: bf16[128,384], index: 2, kind: input, shape index: {}]
  %s3 = inlined_call_operand.hbm [shape: bf16[128,384], index: 3, kind: input, shape index: {}]
  %s4 = inlined_call_operand.vmem [shape: f32[1,384], index: 4, kind: input, shape index: {}]
  %s5 = inlined_call_operand.vmem [shape: f32[1,128], index: 5, kind: input, shape index: {}]
  %s6 = inlined_call_operand.hbm [shape: bf16[128,384], index: 6, kind: input, shape index: {}]
  %s7 = inlined_call_operand.hbm [shape: bf16[128,384], index: 7, kind: input, shape index: {}]
  %s8 = inlined_call_operand.vmem [shape: f32[1,384], index: 8, kind: input, shape index: {}]
  %s9 = inlined_call_operand.vmem [shape: f32[1,128], index: 9, kind: input, shape index: {}]
  %s10 = inlined_call_operand.vmem [shape: f32[64,128], index: 10, kind: output, shape index: {}]
  %s11 = sld [smem:[#allocation0]]
  $region62: #{encoder_drnn_forward.1} parent=0
    _
  %s13 = ssub.s32 1, %s11
  %s14 = scalar_select 0, %s13, %s11
  $region1: #{encoder_drnn_forward.1} parent=0
    #allocation4 [shape = 'u8[98304]{0}', space=vmem, size = 0x18000, scoped, tag = 'input window, operand 3, single buffered']
    #allocation5 [shape = 's32[1]{0}', space=sflag, size = 0x4, scoped, tag = 'scoped memory for encoder_drnn_forward.1']
    #allocation6 [shape = 'u8[98304]{0}', space=vmem, size = 0x18000, scoped, tag = 'input window, operand 6, single buffered']
    #allocation7 [shape = 's32[1]{0}', space=sflag, size = 0x4, scoped, tag = 'scoped memory for encoder_drnn_forward.1']
    #allocation8 [shape = 'u8[98304]{0}', space=vmem, size = 0x18000, scoped, tag = 'input window, operand 7, single buffered']
    %15 = vsyncpa [#allocation5], 0
    %16 = vsyncpa [#allocation7], 0
    // Predicated region
    $region2: #{encoder_drnn_forward.1} parent=1 // pred_check
      _
    $region3: #{encoder_drnn_forward.1} parent=1 // pred_check_branch
      %18 = sbr.rel (0) target = $region5
    $region4: #{encoder_drnn_forward.1} parent=1 // pred_region
      _
    $region5: #{encoder_drnn_forward.1} parent=1 // pred_fallthru
      _
    // Predicated region
    $region6: #{encoder_drnn_forward.1} parent=1 // pred_check
      _
    $region7: #{encoder_drnn_forward.1} parent=1 // pred_check_branch
      %20 = sbr.rel (0) target = $region9
    $region8: #{encoder_drnn_forward.1} parent=1 // pred_region
      _
    $region9: #{encoder_drnn_forward.1} parent=1 // pred_fallthru
      _
    // Predicated region
    $region10: #{encoder_drnn_forward.1} parent=1 // pred_check
      _
    $region11: #{encoder_drnn_forward.1} parent=1 // pred_check_branch
      %22 = sbr.rel (0) target = $region13
    $region12: #{encoder_drnn_forward.1} parent=1 // pred_region
      _
    $region13: #{encoder_drnn_forward.1} parent=1 // pred_fallthru
      _
    // Predicated region
    $region14: #{encoder_drnn_forward.1} parent=1 // pred_check
      _
    $region15: #{encoder_drnn_forward.1} parent=1 // pred_check_branch
      %24 = sbr.rel (0) target = $region17
    $region16: #{encoder_drnn_forward.1} parent=1 // pred_region
      %s26 = ssub.s32 3072, 3072
      %27 = vsyncadd [#allocation5], %s26
      %s28 = sshll.u32 [#allocation4], 4
      %s29 = int_to_ptr.vmem [resolvable:$true] %s28
      %34 = dma.hbm_to_vmem [thread:$0]  %s3, 3072, %s29, [#allocation5], 192, 192, 12
    $region17: #{encoder_drnn_forward.1} parent=1 // pred_fallthru
      _
    // Predicated region
    $region18: #{encoder_drnn_forward.1} parent=1 // pred_check
      _
    $region19: #{encoder_drnn_forward.1} parent=1 // pred_check_branch
      %36 = sbr.rel (0) target = $region21
    $region20: #{encoder_drnn_forward.1} parent=1 // pred_region
      _
    $region21: #{encoder_drnn_forward.1} parent=1 // pred_fallthru
      _
    // Predicated region
    $region22: #{encoder_drnn_forward.1} parent=1 // pred_check
      _
    $region23: #{encoder_drnn_forward.1} parent=1 // pred_check_branch
      %38 = sbr.rel (0) target = $region25
    $region24: #{encoder_drnn_forward.1} parent=1 // pred_region
      _
    $region25: #{encoder_drnn_forward.1} parent=1 // pred_fallthru
      _
    // Predicated region
    $region26: #{encoder_drnn_forward.1} parent=1 // pred_check
      _
    $region27: #{encoder_drnn_forward.1} parent=1 // pred_check_branch
      %40 = sbr.rel (0) target = $region29
    $region28: #{encoder_drnn_forward.1} parent=1 // pred_region
      %s42 = ssub.s32 3072, 3072
      %43 = vsyncadd [#allocation7], %s42
      %s44 = sshll.u32 [#allocation6], 4
      %s45 = int_to_ptr.vmem [resolvable:$true] %s44
      %50 = dma.hbm_to_vmem [thread:$0]  %s6, 3072, %s45, [#allocation7], 192, 192, 12
    $region29: #{encoder_drnn_forward.1} parent=1 // pred_fallthru
      _
    // Predicated region
    $region30: #{encoder_drnn_forward.1} parent=1 // pred_check
      _
    $region31: #{encoder_drnn_forward.1} parent=1 // pred_check_branch
      %52 = sbr.rel (0) target = $region33
    $region32: #{encoder_drnn_forward.1} parent=1 // pred_region
      %s54 = ssub.s32 3072, 3072
      %55 = vsyncadd [#allocation7], %s54
      %s56 = sshll.u32 [#allocation8], 4
      %s57 = int_to_ptr.vmem [resolvable:$true] %s56
      %62 = dma.hbm_to_vmem [thread:$0]  %s7, 3072, %s57, [#allocation7], 192, 192, 12
    $region33: #{encoder_drnn_forward.1} parent=1 // pred_fallthru
      _
    // Predicated region
    $region34: #{encoder_drnn_forward.1} parent=1 // pred_check
      _
    $region35: #{encoder_drnn_forward.1} parent=1 // pred_check_branch
      %64 = sbr.rel (0) target = $region37
    $region36: #{encoder_drnn_forward.1} parent=1 // pred_region
      _
    $region37: #{encoder_drnn_forward.1} parent=1 // pred_fallthru
      _
    // Predicated region
    $region38: #{encoder_drnn_forward.1} parent=1 // pred_check
      _
    $region39: #{encoder_drnn_forward.1} parent=1 // pred_check_branch
      %66 = sbr.rel (0) target = $region41
    $region40: #{encoder_drnn_forward.1} parent=1 // pred_region
      _
    $region41: #{encoder_drnn_forward.1} parent=1 // pred_fallthru
      _
    // Predicated region
    $region42: #{encoder_drnn_forward.1} parent=1 // pred_check
      _
    $region43: #{encoder_drnn_forward.1} parent=1 // pred_check_branch
      %68 = sbr.rel (0) target = $region45
    $region44: #{encoder_drnn_forward.1} parent=1 // pred_region
      %69 = dma.done [#allocation5], 3072
    $region45: #{encoder_drnn_forward.1} parent=1 // pred_fallthru
      _
    // Predicated region
    $region46: #{encoder_drnn_forward.1} parent=1 // pred_check
      _
    $region47: #{encoder_drnn_forward.1} parent=1 // pred_check_branch
      %71 = sbr.rel (0) target = $region49
    $region48: #{encoder_drnn_forward.1} parent=1 // pred_region
      %72 = dma.done [#allocation7], 3072
    $region49: #{encoder_drnn_forward.1} parent=1 // pred_fallthru
      _
    // Predicated region
    $region50: #{encoder_drnn_forward.1} parent=1 // pred_check
      _
    $region51: #{encoder_drnn_forward.1} parent=1 // pred_check_branch
      %74 = sbr.rel (0) target = $region53
    $region52: #{encoder_drnn_forward.1} parent=1 // pred_region
      %75 = dma.done [#allocation7], 3072
    $region53: #{encoder_drnn_forward.1} parent=1 // pred_fallthru
      _
    %77 = vst [vmem:[#allocation2] sm:$0xff] 0.0
    %78 = vst [vmem:[#allocation2 + $0x8] sm:$0xff] 0.0
    %79 = vst [vmem:[#allocation2 + $0x10] sm:$0xff] 0.0
    %80 = vst [vmem:[#allocation2 + $0x18] sm:$0xff] 0.0
    %81 = vst [vmem:[#allocation2 + $0x20] sm:$0xff] 0.0
    %82 = vst [vmem:[#allocation2 + $0x28] sm:$0xff] 0.0
    %83 = vst [vmem:[#allocation2 + $0x30] sm:$0xff] 0.0
    %84 = vst [vmem:[#allocation2 + $0x38] sm:$0xff] 0.0
    %v85 = vld [vmem:[%s0] sm:$0xf]
    %v86 = vld [vmem:[%s0 + $0x4] sm:$0xf]
    %v87 = vld [vmem:[%s0 + $0x8] sm:$0xf]
    %v88 = vld [vmem:[%s0 + $0xc] sm:$0xf]
    %v89 = vld [vmem:[%s0 + $0x10] sm:$0xf]
    %v90 = vld [vmem:[%s0 + $0x14] sm:$0xf]
    %v91 = vld [vmem:[%s0 + $0x18] sm:$0xf]
    %v92 = vld [vmem:[%s0 + $0x1c] sm:$0xf]
    %v93 = vld [vmem:[%s2] sm:$0xff]
    %v94 = vld [vmem:[%s2 + $0x8] sm:$0xf]
    %v95 = vld [vmem:[%s2 + $0xc] sm:$0xff]
    %v96 = vld [vmem:[%s2 + $0x14] sm:$0xf]
    %v97 = vld [vmem:[%s2 + $0x18] sm:$0xff]
    %v98 = vld [vmem:[%s2 + $0x20] sm:$0xf]
    %v99 = vld [vmem:[%s2 + $0x24] sm:$0xff]
    %v100 = vld [vmem:[%s2 + $0x2c] sm:$0xf]
    %v101 = vld [vmem:[%s2 + $0x30] sm:$0xff]
    %v102 = vld [vmem:[%s2 + $0x38] sm:$0xf]
    %v103 = vld [vmem:[%s2 + $0x3c] sm:$0xff]
    %v104 = vld [vmem:[%s2 + $0x44] sm:$0xf]
    %v105 = vld [vmem:[%s2 + $0x48] sm:$0xff]
    %v106 = vld [vmem:[%s2 + $0x50] sm:$0xf]
    %v107 = vld [vmem:[%s2 + $0x54] sm:$0xff]
    %v108 = vld [vmem:[%s2 + $0x5c] sm:$0xf]
    %v109 = vld [vmem:[%s2 + $0x60] sm:$0xff]
    %v110 = vld [vmem:[%s2 + $0x68] sm:$0xf]
    %v111 = vld [vmem:[%s2 + $0x6c] sm:$0xff]
    %v112 = vld [vmem:[%s2 + $0x74] sm:$0xf]
    %v113 = vld [vmem:[%s2 + $0x78] sm:$0xff]
    %v114 = vld [vmem:[%s2 + $0x80] sm:$0xf]
    %v115 = vld [vmem:[%s2 + $0x84] sm:$0xff]
    %v116 = vld [vmem:[%s2 + $0x8c] sm:$0xf]
    %v117 = vld [vmem:[%s2 + $0x90] sm:$0xff]
    %v118 = vld [vmem:[%s2 + $0x98] sm:$0xf]
    %v119 = vld [vmem:[%s2 + $0x9c] sm:$0xff]
    %v120 = vld [vmem:[%s2 + $0xa4] sm:$0xf]
    %v121 = vld [vmem:[%s2 + $0xa8] sm:$0xff]
    %v122 = vld [vmem:[%s2 + $0xb0] sm:$0xf]
    %v123 = vld [vmem:[%s2 + $0xb4] sm:$0xff]
    %v124 = vld [vmem:[%s2 + $0xbc] sm:$0xf]
    %v125 = vld [vmem:[%s4] sm:$0x7]
    %v127 = vlaneseq
    %v128 = vshrl.u32 %v127, 7
    %v129 = vsub.s32 0, %v128
    %v130 = vrot.slane %v125, %v129
    %v131 = vlaneseq
    %v132 = vshrl.u32 %v131, 7
    %v133 = vsub.s32 1, %v132
    %v134 = vrot.slane %v125, %v133
    %v135 = vlaneseq
    %v136 = vshrl.u32 %v135, 7
    %v137 = vsub.s32 2, %v136
    %v138 = vrot.slane %v125, %v137
    %v150 = vunpack.c.l.b16 %v85
    %v151 = vunpack.c.l.b16 %v86
    %v152 = vunpack.c.l.b16 %v87
    %v153 = vunpack.c.l.b16 %v88
    %v154 = vunpack.c.l.b16 %v89
    %v155 = vunpack.c.l.b16 %v90
    %v156 = vunpack.c.l.b16 %v91
    %v157 = vunpack.c.l.b16 %v92
    %v158 = vpack.c.b16 %v151, %v150
    %v159 = vpack.c.b16 %v153, %v152
    %v160 = vpack.c.b16 %v155, %v154
    %v161 = vpack.c.b16 %v157, %v156
    %v198 = vunpack.c.l.b16 %v93
    %v199 = vunpack.c.h.b16 %v93
    %v200 = vunpack.c.l.b16 %v94
    %v201 = vunpack.c.l.b16 %v95
    %v202 = vunpack.c.h.b16 %v95
    %v203 = vunpack.c.l.b16 %v96
    %v204 = vunpack.c.l.b16 %v97
    %v205 = vunpack.c.h.b16 %v97
    %v206 = vunpack.c.l.b16 %v98
    %v207 = vunpack.c.l.b16 %v99
    %v208 = vunpack.c.h.b16 %v99
    %v209 = vunpack.c.l.b16 %v100
    %v210 = vunpack.c.l.b16 %v101
    %v211 = vunpack.c.h.b16 %v101
    %v212 = vunpack.c.l.b16 %v102
    %v213 = vunpack.c.l.b16 %v103
    %v214 = vunpack.c.h.b16 %v103
    %v215 = vunpack.c.l.b16 %v104
    %v216 = vunpack.c.l.b16 %v105
    %v217 = vunpack.c.h.b16 %v105
    %v218 = vunpack.c.l.b16 %v106
    %v219 = vunpack.c.l.b16 %v107
    %v220 = vunpack.c.h.b16 %v107
    %v221 = vunpack.c.l.b16 %v108
    %v222 = vunpack.c.l.b16 %v109
    %v223 = vunpack.c.h.b16 %v109
    %v224 = vunpack.c.l.b16 %v110
    %v225 = vunpack.c.l.b16 %v111
    %v226 = vunpack.c.h.b16 %v111
    %v227 = vunpack.c.l.b16 %v112
    %v228 = vunpack.c.l.b16 %v113
    %v229 = vunpack.c.h.b16 %v113
    %v230 = vunpack.c.l.b16 %v114
    %v231 = vunpack.c.l.b16 %v115
    %v232 = vunpack.c.h.b16 %v115
    %v233 = vunpack.c.l.b16 %v116
    %v234 = vunpack.c.l.b16 %v117
    %v235 = vunpack.c.h.b16 %v117
    %v236 = vunpack.c.l.b16 %v118
    %v237 = vunpack.c.l.b16 %v119
    %v238 = vunpack.c.h.b16 %v119
    %v239 = vunpack.c.l.b16 %v120
    %v240 = vunpack.c.l.b16 %v121
    %v241 = vunpack.c.h.b16 %v121
    %v242 = vunpack.c.l.b16 %v122
    %v243 = vunpack.c.l.b16 %v123
    %v244 = vunpack.c.h.b16 %v123
    %v245 = vunpack.c.l.b16 %v124
    %v246 = vpack.c.b16 %v201, %v198
    %v247 = vpack.c.b16 %v202, %v199
    %v248 = vpack.c.b16 %v203, %v200
    %v249 = vpack.c.b16 %v207, %v204
    %v250 = vpack.c.b16 %v208, %v205
    %v251 = vpack.c.b16 %v209, %v206
    %v252 = vpack.c.b16 %v213, %v210
    %v253 = vpack.c.b16 %v214, %v211
    %v254 = vpack.c.b16 %v215, %v212
    %v255 = vpack.c.b16 %v219, %v216
    %v256 = vpack.c.b16 %v220, %v217
    %v257 = vpack.c.b16 %v221, %v218
    %v258 = vpack.c.b16 %v225, %v222
    %v259 = vpack.c.b16 %v226, %v223
    %v260 = vpack.c.b16 %v227, %v224
    %v261 = vpack.c.b16 %v231, %v228
    %v262 = vpack.c.b16 %v232, %v229
    %v263 = vpack.c.b16 %v233, %v230
    %v264 = vpack.c.b16 %v237, %v234
    %v265 = vpack.c.b16 %v238, %v235
    %v266 = vpack.c.b16 %v239, %v236
    %v267 = vpack.c.b16 %v243, %v240
    %v268 = vpack.c.b16 %v244, %v241
    %v269 = vpack.c.b16 %v245, %v242
    %294 = vmatprep.subr.bf16.mxu0 %v247
    %295 = vmatpush1.bf16.msra.mxu0 %v246
    %296 = vmatprep.subr.bf16.mxu0 %v250
    %297 = vmatpush1.bf16.msra.mxu0 %v249
    %298 = vmatprep.subr.bf16.mxu0 %v253
    %299 = vmatpush1.bf16.msra.mxu0 %v252
    %300 = vmatprep.subr.bf16.mxu0 %v256
    %301 = vmatpush1.bf16.msra.mxu0 %v255
    %302 = vmatprep.subr.bf16.mxu0 %v259
    %303 = vmatpush1.bf16.msra.mxu0 %v258
    %304 = vmatprep.subr.bf16.mxu0 %v262
    %305 = vmatpush1.bf16.msra.mxu0 %v261
    %306 = vmatprep.subr.bf16.mxu0 %v265
    %307 = vmatpush1.bf16.msra.mxu0 %v264
    %308 = vmatprep.subr.bf16.mxu0 %v268
    %309 = vmatpush1.bf16.msra.mxu0 %v267
    %310 = vmatprep.subr.bf16.mxu0 0
    %311 = vmatpush1.bf16.msra.mxu0 0
    %312 = vmatprep.subr.bf16.mxu0 0
    %313 = vmatpush1.bf16.msra.mxu0 0
    %314 = vmatprep.subr.bf16.mxu0 0
    %315 = vmatpush1.bf16.msra.mxu0 0
    %316 = vmatprep.subr.bf16.mxu0 0
    %317 = vmatpush1.bf16.msra.mxu0 0
    %318 = vmatprep.subr.bf16.mxu0 0
    %319 = vmatpush1.bf16.msra.mxu0 0
    %320 = vmatprep.subr.bf16.mxu0 0
    %321 = vmatpush1.bf16.msra.mxu0 0
    %322 = vmatprep.subr.bf16.mxu0 0
    %323 = vmatpush1.bf16.msra.mxu0 0
    %324 = vmatprep.subr.bf16.mxu0 0
    %325 = vmatpush1.bf16.msra.mxu0 0
    %326 = vmatprep.mubr.bf16.mxu0 0
    %327 = vmatmul.mubr.bf16.gmra.mrb[0].mxu0 %v158
    %v328 = vpop.f32.mrb[0].mxu0
    %v329 = vadd.f32 %v130, %v328
    %v330 = vpop.f32.mrb[0].mxu0
    %v331 = vadd.f32 %v134, %v330
    %v332 = vpop.f32.mrb[0].mxu0
    %v333 = vadd.f32 %v130, %v332
    %v334 = vpop.f32.mrb[0].mxu0
    %v335 = vadd.f32 %v134, %v334
    %336 = vmatprep.mubr.bf16.mxu0 0
    %337 = vmatmul.mubr.bf16.gmra.mrb[0].mxu0 %v159
    %v338 = vpop.f32.mrb[0].mxu0
    %v339 = vadd.f32 %v130, %v338
    %v340 = vpop.f32.mrb[0].mxu0
    %v341 = vadd.f32 %v134, %v340
    %v342 = vpop.f32.mrb[0].mxu0
    %v343 = vadd.f32 %v130, %v342
    %v344 = vpop.f32.mrb[0].mxu0
    %v345 = vadd.f32 %v134, %v344
    %346 = vmatprep.mubr.bf16.mxu0 0
    %347 = vmatmul.mubr.bf16.gmra.mrb[0].mxu0 %v160
    %v348 = vpop.f32.mrb[0].mxu0
    %v349 = vadd.f32 %v130, %v348
    %v350 = vpop.f32.mrb[0].mxu0
    %v351 = vadd.f32 %v134, %v350
    %v352 = vpop.f32.mrb[0].mxu0
    %v353 = vadd.f32 %v130, %v352
    %v354 = vpop.f32.mrb[0].mxu0
    %v355 = vadd.f32 %v134, %v354
    %356 = vmatprep.mubr.bf16.mxu0 0
    %357 = vmatmul.mubr.bf16.gmra.mrb[0].mxu0 %v161
    %v358 = vpop.f32.mrb[0].mxu0
    %v359 = vadd.f32 %v130, %v358
    %v360 = vpop.f32.mrb[0].mxu0
    %v361 = vadd.f32 %v134, %v360
    %v362 = vpop.f32.mrb[0].mxu0
    %v363 = vadd.f32 %v130, %v362
    %v364 = vpop.f32.mrb[0].mxu0
    %v365 = vadd.f32 %v134, %v364
    %366 = vdwg.mxu0
    %367 = vmatprep.subr.bf16.mxu0 0
    %368 = vmatpush1.bf16.msra.mxu0 %v248
    %369 = vmatprep.subr.bf16.mxu0 0
    %370 = vmatpush1.bf16.msra.mxu0 %v251
    %371 = vmatprep.subr.bf16.mxu0 0
    %372 = vmatpush1.bf16.msra.mxu0 %v254
    %373 = vmatprep.subr.bf16.mxu0 0
    %374 = vmatpush1.bf16.msra.mxu0 %v257
    %375 = vmatprep.subr.bf16.mxu0 0
    %376 = vmatpush1.bf16.msra.mxu0 %v260
    %377 = vmatprep.subr.bf16.mxu0 0
    %378 = vmatpush1.bf16.msra.mxu0 %v263
    %379 = vmatprep.subr.bf16.mxu0 0
    %380 = vmatpush1.bf16.msra.mxu0 %v266
    %381 = vmatprep.subr.bf16.mxu0 0
    %382 = vmatpush1.bf16.msra.mxu0 %v269
    %383 = vmatprep.subr.bf16.mxu0 0
    %384 = vmatpush1.bf16.msra.mxu0 0
    %385 = vmatprep.subr.bf16.mxu0 0
    %386 = vmatpush1.bf16.msra.mxu0 0
    %387 = vmatprep.subr.bf16.mxu0 0
    %388 = vmatpush1.bf16.msra.mxu0 0
    %389 = vmatprep.subr.bf16.mxu0 0
    %390 = vmatpush1.bf16.msra.mxu0 0
    %391 = vmatprep.subr.bf16.mxu0 0
    %392 = vmatpush1.bf16.msra.mxu0 0
    %393 = vmatprep.subr.bf16.mxu0 0
    %394 = vmatpush1.bf16.msra.mxu0 0
    %395 = vmatprep.subr.bf16.mxu0 0
    %396 = vmatpush1.bf16.msra.mxu0 0
    %397 = vmatprep.subr.bf16.mxu0 0
    %398 = vmatpush1.bf16.msra.mxu0 0
    %399 = vmatprep.mubr.bf16.mxu0 0
    %400 = vmatmul.mubr.bf16.gmra.mrb[0].mxu0 %v158
    %v401 = vpop.f32.mrb[0].mxu0
    %v402 = vadd.f32 %v138, %v401
    %v403 = vpop.f32.mrb[0].mxu0
    %v404 = vpop.f32.mrb[0].mxu0
    %v405 = vadd.f32 %v138, %v404
    %v406 = vpop.f32.mrb[0].mxu0
    %407 = vmatprep.mubr.bf16.mxu0 0
    %408 = vmatmul.mubr.bf16.gmra.mrb[0].mxu0 %v159
    %v409 = vpop.f32.mrb[0].mxu0
    %v410 = vadd.f32 %v138, %v409
    %v411 = vpop.f32.mrb[0].mxu0
    %v412 = vpop.f32.mrb[0].mxu0
    %v413 = vadd.f32 %v138, %v412
    %v414 = vpop.f32.mrb[0].mxu0
    %415 = vmatprep.mubr.bf16.mxu0 0
    %416 = vmatmul.mubr.bf16.gmra.mrb[0].mxu0 %v160
    %v417 = vpop.f32.mrb[0].mxu0
    %v418 = vadd.f32 %v138, %v417
    %v419 = vpop.f32.mrb[0].mxu0
    %v420 = vpop.f32.mrb[0].mxu0
    %v421 = vadd.f32 %v138, %v420
    %v422 = vpop.f32.mrb[0].mxu0
    %423 = vmatprep.mubr.bf16.mxu0 0
    %424 = vmatmul.mubr.bf16.gmra.mrb[0].mxu0 %v161
    %v425 = vpop.f32.mrb[0].mxu0
    %v426 = vadd.f32 %v138, %v425
    %v427 = vpop.f32.mrb[0].mxu0
    %v428 = vpop.f32.mrb[0].mxu0
    %v429 = vadd.f32 %v138, %v428
    %v430 = vpop.f32.mrb[0].mxu0
    %431 = vdwg.mxu0
    %432 = vst [vmem:[#allocation3] sm:$0xff] %v329
    %433 = vst [vmem:[#allocation3 + $0x8] sm:$0xff] %v331
    %434 = vst [vmem:[#allocation3 + $0x10] sm:$0xff] %v402
    %435 = vst [vmem:[#allocation3 + $0x18] sm:$0xff] %v333
    %436 = vst [vmem:[#allocation3 + $0x20] sm:$0xff] %v335
    %437 = vst [vmem:[#allocation3 + $0x28] sm:$0xff] %v405
    %438 = vst [vmem:[#allocation3 + $0x30] sm:$0xff] %v339
    %439 = vst [vmem:[#allocation3 + $0x38] sm:$0xff] %v341
    %440 = vst [vmem:[#allocation3 + $0x40] sm:$0xff] %v410
    %441 = vst [vmem:[#allocation3 + $0x48] sm:$0xff] %v343
    %442 = vst [vmem:[#allocation3 + $0x50] sm:$0xff] %v345
    %443 = vst [vmem:[#allocation3 + $0x58] sm:$0xff] %v413
    %444 = vst [vmem:[#allocation3 + $0x60] sm:$0xff] %v349
    %445 = vst [vmem:[#allocation3 + $0x68] sm:$0xff] %v351
    %446 = vst [vmem:[#allocation3 + $0x70] sm:$0xff] %v418
    %447 = vst [vmem:[#allocation3 + $0x78] sm:$0xff] %v353
    %448 = vst [vmem:[#allocation3 + $0x80] sm:$0xff] %v355
    %449 = vst [vmem:[#allocation3 + $0x88] sm:$0xff] %v421
    %450 = vst [vmem:[#allocation3 + $0x90] sm:$0xff] %v359
    %451 = vst [vmem:[#allocation3 + $0x98] sm:$0xff] %v361
    %452 = vst [vmem:[#allocation3 + $0xa0] sm:$0xff] %v426
    %453 = vst [vmem:[#allocation3 + $0xa8] sm:$0xff] %v363
    %454 = vst [vmem:[#allocation3 + $0xb0] sm:$0xff] %v365
    %455 = vst [vmem:[#allocation3 + $0xb8] sm:$0xff] %v429
    %v456 = vld [vmem:[#allocation4] sm:$0xff]
    %v457 = vld [vmem:[#allocation4 + $0x8] sm:$0xf]
    %v458 = vld [vmem:[#allocation4 + $0xc] sm:$0xff]
    %v459 = vld [vmem:[#allocation4 + $0x14] sm:$0xf]
    %v460 = vld [vmem:[#allocation4 + $0x18] sm:$0xff]
    %v461 = vld [vmem:[#allocation4 + $0x20] sm:$0xf]
    %v462 = vld [vmem:[#allocation4 + $0x24] sm:$0xff]
    %v463 = vld [vmem:[#allocation4 + $0x2c] sm:$0xf]
    %v464 = vld [vmem:[#allocation4 + $0x30] sm:$0xff]
    %v465 = vld [vmem:[#allocation4 + $0x38] sm:$0xf]
    %v466 = vld [vmem:[#allocation4 + $0x3c] sm:$0xff]
    %v467 = vld [vmem:[#allocation4 + $0x44] sm:$0xf]
    %v468 = vld [vmem:[#allocation4 + $0x48] sm:$0xff]
    %v469 = vld [vmem:[#allocation4 + $0x50] sm:$0xf]
    %v470 = vld [vmem:[#allocation4 + $0x54] sm:$0xff]
    %v471 = vld [vmem:[#allocation4 + $0x5c] sm:$0xf]
    %v472 = vld [vmem:[#allocation4 + $0x60] sm:$0xff]
    %v473 = vld [vmem:[#allocation4 + $0x68] sm:$0xf]
    %v474 = vld [vmem:[#allocation4 + $0x6c] sm:$0xff]
    %v475 = vld [vmem:[#allocation4 + $0x74] sm:$0xf]
    %v476 = vld [vmem:[#allocation4 + $0x78] sm:$0xff]
    %v477 = vld [vmem:[#allocation4 + $0x80] sm:$0xf]
    %v478 = vld [vmem:[#allocation4 + $0x84] sm:$0xff]
    %v479 = vld [vmem:[#allocation4 + $0x8c] sm:$0xf]
    %v480 = vld [vmem:[#allocation4 + $0x90] sm:$0xff]
    %v481 = vld [vmem:[#allocation4 + $0x98] sm:$0xf]
    %v482 = vld [vmem:[#allocation4 + $0x9c] sm:$0xff]
    %v483 = vld [vmem:[#allocation4 + $0xa4] sm:$0xf]
    %v484 = vld [vmem:[#allocation4 + $0xa8] sm:$0xff]
    %v485 = vld [vmem:[#allocation4 + $0xb0] sm:$0xf]
    %v486 = vld [vmem:[#allocation4 + $0xb4] sm:$0xff]
    %v487 = vld [vmem:[#allocation4 + $0xbc] sm:$0xf]
    %v488 = vld [vmem:[%s5] sm:$0x1]
    %v489 = vld [vmem:[#allocation3] sm:$0xff]
    %v490 = vld [vmem:[#allocation3 + $0x8] sm:$0xff]
    %v491 = vld [vmem:[#allocation3 + $0x10] sm:$0xff]
    %v524 = vunpack.c.l.b16 %v456
    %v525 = vunpack.c.h.b16 %v456
    %v526 = vunpack.c.l.b16 %v457
    %v527 = vunpack.c.l.b16 %v458
    %v528 = vunpack.c.h.b16 %v458
    %v529 = vunpack.c.l.b16 %v459
    %v530 = vunpack.c.l.b16 %v460
    %v531 = vunpack.c.h.b16 %v460
    %v532 = vunpack.c.l.b16 %v461
    %v533 = vunpack.c.l.b16 %v462
    %v534 = vunpack.c.h.b16 %v462
    %v535 = vunpack.c.l.b16 %v463
    %v536 = vunpack.c.l.b16 %v464
    %v537 = vunpack.c.h.b16 %v464
    %v538 = vunpack.c.l.b16 %v465
    %v539 = vunpack.c.l.b16 %v466
    %v540 = vunpack.c.h.b16 %v466
    %v541 = vunpack.c.l.b16 %v467
    %v542 = vunpack.c.l.b16 %v468
    %v543 = vunpack.c.h.b16 %v468
    %v544 = vunpack.c.l.b16 %v469
    %v545 = vunpack.c.l.b16 %v470
    %v546 = vunpack.c.h.b16 %v470
    %v547 = vunpack.c.l.b16 %v471
    %v548 = vunpack.c.l.b16 %v472
    %v549 = vunpack.c.h.b16 %v472
    %v550 = vunpack.c.l.b16 %v473
    %v551 = vunpack.c.l.b16 %v474
    %v552 = vunpack.c.h.b16 %v474
    %v553 = vunpack.c.l.b16 %v475
    %v554 = vunpack.c.l.b16 %v476
    %v555 = vunpack.c.h.b16 %v476
    %v556 = vunpack.c.l.b16 %v477
    %v557 = vunpack.c.l.b16 %v478
    %v558 = vunpack.c.h.b16 %v478
    %v559 = vunpack.c.l.b16 %v479
    %v560 = vunpack.c.l.b16 %v480
    %v561 = vunpack.c.h.b16 %v480
    %v562 = vunpack.c.l.b16 %v481
    %v563 = vunpack.c.l.b16 %v482
    %v564 = vunpack.c.h.b16 %v482
    %v565 = vunpack.c.l.b16 %v483
    %v566 = vunpack.c.l.b16 %v484
    %v567 = vunpack.c.h.b16 %v484
    %v568 = vunpack.c.l.b16 %v485
    %v569 = vunpack.c.l.b16 %v486
    %v570 = vunpack.c.h.b16 %v486
    %v571 = vunpack.c.l.b16 %v487
    %v572 = vpack.c.b16 %v527, %v524
    %v573 = vpack.c.b16 %v528, %v525
    %v574 = vpack.c.b16 %v529, %v526
    %v575 = vpack.c.b16 %v533, %v530
    %v576 = vpack.c.b16 %v534, %v531
    %v577 = vpack.c.b16 %v535, %v532
    %v578 = vpack.c.b16 %v539, %v536
    %v579 = vpack.c.b16 %v540, %v537
    %v580 = vpack.c.b16 %v541, %v538
    %v581 = vpack.c.b16 %v545, %v542
    %v582 = vpack.c.b16 %v546, %v543
    %v583 = vpack.c.b16 %v547, %v544
    %v584 = vpack.c.b16 %v551, %v548
    %v585 = vpack.c.b16 %v552, %v549
    %v586 = vpack.c.b16 %v553, %v550
    %v587 = vpack.c.b16 %v557, %v554
    %v588 = vpack.c.b16 %v558, %v555
    %v589 = vpack.c.b16 %v559, %v556
    %v590 = vpack.c.b16 %v563, %v560
    %v591 = vpack.c.b16 %v564, %v561
    %v592 = vpack.c.b16 %v565, %v562
    %v593 = vpack.c.b16 %v569, %v566
    %v594 = vpack.c.b16 %v570, %v567
    %v595 = vpack.c.b16 %v571, %v568
    %620 = vmatprep.subr.bf16.mxu0 %v573
    %621 = vmatpush1.bf16.msra.mxu0 %v572
    %622 = vmatprep.subr.bf16.mxu0 %v576
    %623 = vmatpush1.bf16.msra.mxu0 %v575
    %624 = vmatprep.subr.bf16.mxu0 %v579
    %625 = vmatpush1.bf16.msra.mxu0 %v578
    %626 = vmatprep.subr.bf16.mxu0 %v582
    %627 = vmatpush1.bf16.msra.mxu0 %v581
    %628 = vmatprep.subr.bf16.mxu0 %v585
    %629 = vmatpush1.bf16.msra.mxu0 %v584
    %630 = vmatprep.subr.bf16.mxu0 %v588
    %631 = vmatpush1.bf16.msra.mxu0 %v587
    %632 = vmatprep.subr.bf16.mxu0 %v591
    %633 = vmatpush1.bf16.msra.mxu0 %v590
    %634 = vmatprep.subr.bf16.mxu0 %v594
    %635 = vmatpush1.bf16.msra.mxu0 %v593
    %636 = vmatprep.subr.bf16.mxu0 0
    %637 = vmatpush1.bf16.msra.mxu0 0
    %638 = vmatprep.subr.bf16.mxu0 0
    %639 = vmatpush1.bf16.msra.mxu0 0
    %640 = vmatprep.subr.bf16.mxu0 0
    %641 = vmatpush1.bf16.msra.mxu0 0
    %642 = vmatprep.subr.bf16.mxu0 0
    %643 = vmatpush1.bf16.msra.mxu0 0
    %644 = vmatprep.subr.bf16.mxu0 0
    %645 = vmatpush1.bf16.msra.mxu0 0
    %646 = vmatprep.subr.bf16.mxu0 0
    %647 = vmatpush1.bf16.msra.mxu0 0
    %648 = vmatprep.subr.bf16.mxu0 0
    %649 = vmatpush1.bf16.msra.mxu0 0
    %650 = vmatprep.subr.bf16.mxu0 0
    %651 = vmatpush1.bf16.msra.mxu0 0
    %652 = vmatprep.mubr.bf16.mxu0 0
    %653 = vmatmul.mubr.bf16.gmra.mrb[0].mxu0 0
    %v654 = vpop.f32.mrb[0].mxu0
    %v655 = vadd.f32 0.0, %v654
    %v656 = vpop.f32.mrb[0].mxu0
    %v657 = vadd.f32 0.0, %v656
    %v658 = vpop.f32.mrb[0].mxu0
    %v659 = vpop.f32.mrb[0].mxu0
    %660 = vdwg.mxu0
    %661 = vmatprep.subr.bf16.mxu0 0
    %662 = vmatpush1.bf16.msra.mxu0 %v574
    %663 = vmatprep.subr.bf16.mxu0 0
    %664 = vmatpush1.bf16.msra.mxu0 %v577
    %665 = vmatprep.subr.bf16.mxu0 0
    %666 = vmatpush1.bf16.msra.mxu0 %v580
    %667 = vmatprep.subr.bf16.mxu0 0
    %668 = vmatpush1.bf16.msra.mxu0 %v583
    %669 = vmatprep.subr.bf16.mxu0 0
    %670 = vmatpush1.bf16.msra.mxu0 %v586
    %671 = vmatprep.subr.bf16.mxu0 0
    %672 = vmatpush1.bf16.msra.mxu0 %v589
    %673 = vmatprep.subr.bf16.mxu0 0
    %674 = vmatpush1.bf16.msra.mxu0 %v592
    %675 = vmatprep.subr.bf16.mxu0 0
    %676 = vmatpush1.bf16.msra.mxu0 %v595
    %677 = vmatprep.subr.bf16.mxu0 0
    %678 = vmatpush1.bf16.msra.mxu0 0
    %679 = vmatprep.subr.bf16.mxu0 0
    %680 = vmatpush1.bf16.msra.mxu0 0
    %681 = vmatprep.subr.bf16.mxu0 0
    %682 = vmatpush1.bf16.msra.mxu0 0
    %683 = vmatprep.subr.bf16.mxu0 0
    %684 = vmatpush1.bf16.msra.mxu0 0
    %685 = vmatprep.subr.bf16.mxu0 0
    %686 = vmatpush1.bf16.msra.mxu0 0
    %687 = vmatprep.subr.bf16.mxu0 0
    %688 = vmatpush1.bf16.msra.mxu0 0
    %689 = vmatprep.subr.bf16.mxu0 0
    %690 = vmatpush1.bf16.msra.mxu0 0
    %691 = vmatprep.subr.bf16.mxu0 0
    %692 = vmatpush1.bf16.msra.mxu0 0
    %693 = vmatprep.mubr.bf16.mxu0 0
    %694 = vmatmul.mubr.bf16.gmra.mrb[0].mxu0 0
    %v695 = vpop.f32.mrb[0].mxu0
    %v696 = vadd.f32 0.0, %v695
    %v697 = vpop.f32.mrb[0].mxu0
    %v698 = vpop.f32.mrb[0].mxu0
    %v699 = vpop.f32.mrb[0].mxu0
    %700 = vdwg.mxu0
    %v701 = vadd.f32 %v489, %v655
    %v702 = vxor.u32 %v701, 2147483648
    %v703 = vmul.f32 %v702, 1.442695
    %v704 = vpow.pop %v703
    %v705 = vadd.f32 %v704, 1.0
    %v706 = vrcp.pop %v705
    %v707 = vmul.f32 1.0, %v706
    %v708 = vadd.f32 %v490, %v657
    %v709 = vxor.u32 %v708, 2147483648
    %v710 = vmul.f32 %v709, 1.442695
    %v711 = vpow.pop %v710
    %v712 = vadd.f32 %v711, 1.0
    %v713 = vrcp.pop %v712
    %v714 = vmul.f32 1.0, %v713
    %v716 = vlaneseq
    %v717 = vshrl.u32 %v716, 7
    %v718 = vsub.s32 0, %v717
    %v719 = vrot.slane %v488, %v718
    %v721 = vadd.f32 %v696, %v719
    %v722 = vmul.f32 %v707, %v721
    %v723 = vadd.f32 %v491, %v722
    %v724 = vtanh.pop %v723
    %v725 = vsub.f32 1.0, %v714
    %v726 = vmul.f32 %v725, %v724
    %v727 = vmul.f32 %v714, 0.0
    %v728 = vadd.f32 %v726, %v727
    %729 = vst [vmem:[#allocation2] sm:$0xff] %v728
    %v730 = vld [vmem:[#allocation3 + $0x18] sm:$0xff]
    %v731 = vld [vmem:[#allocation3 + $0x20] sm:$0xff]
    %v732 = vld [vmem:[#allocation3 + $0x28] sm:$0xff]
    %v733 = vld [vmem:[#allocation2] sm:$0xff]
    %v734 = vpack.c.bf16 %v733, %v733
    %735 = vmatprep.subr.bf16.mxu0 %v573
    %736 = vmatpush1.bf16.msra.mxu0 %v572
    %737 = vmatprep.subr.bf16.mxu0 %v576
    %738 = vmatpush1.bf16.msra.mxu0 %v575
    %739 = vmatprep.subr.bf16.mxu0 %v579
    %740 = vmatpush1.bf16.msra.mxu0 %v578
    %741 = vmatprep.subr.bf16.mxu0 %v582
    %742 = vmatpush1.bf16.msra.mxu0 %v581
    %743 = vmatprep.subr.bf16.mxu0 %v585
    %744 = vmatpush1.bf16.msra.mxu0 %v584
    %745 = vmatprep.subr.bf16.mxu0 %v588
    %746 = vmatpush1.bf16.msra.mxu0 %v587
    %747 = vmatprep.subr.bf16.mxu0 %v591
    %748 = vmatpush1.bf16.msra.mxu0 %v590
    %749 = vmatprep.subr.bf16.mxu0 %v594
    %750 = vmatpush1.bf16.msra.mxu0 %v593
    %751 = vmatprep.subr.bf16.mxu0 0
    %752 = vmatpush1.bf16.msra.mxu0 0
    %753 = vmatprep.subr.bf16.mxu0 0
    %754 = vmatpush1.bf16.msra.mxu0 0
    %755 = vmatprep.subr.bf16.mxu0 0
    %756 = vmatpush1.bf16.msra.mxu0 0
    %757 = vmatprep.subr.bf16.mxu0 0
    %758 = vmatpush1.bf16.msra.mxu0 0
    %759 = vmatprep.subr.bf16.mxu0 0
    %760 = vmatpush1.bf16.msra.mxu0 0
    %761 = vmatprep.subr.bf16.mxu0 0
    %762 = vmatpush1.bf16.msra.mxu0 0
    %763 = vmatprep.subr.bf16.mxu0 0
    %764 = vmatpush1.bf16.msra.mxu0 0
    %765 = vmatprep.subr.bf16.mxu0 0
    %766 = vmatpush1.bf16.msra.mxu0 0
    %767 = vmatprep.mubr.bf16.mxu0 0
    %768 = vmatmul.mubr.bf16.gmra.mrb[0].mxu0 %v734
    %v769 = vpop.f32.mrb[0].mxu0
    %v770 = vadd.f32 0.0, %v769
    %v771 = vpop.f32.mrb[0].mxu0
    %v772 = vadd.f32 0.0, %v771
    %v773 = vpop.f32.mrb[0].mxu0
    %v774 = vpop.f32.mrb[0].mxu0
    %775 = vdwg.mxu0
    %776 = vmatprep.subr.bf16.mxu0 0
    %777 = vmatpush1.bf16.msra.mxu0 %v574
    %778 = vmatprep.subr.bf16.mxu0 0
    %779 = vmatpush1.bf16.msra.mxu0 %v577
    %780 = vmatprep.subr.bf16.mxu0 0
    %781 = vmatpush1.bf16.msra.mxu0 %v580
    %782 = vmatprep.subr.bf16.mxu0 0
    %783 = vmatpush1.bf16.msra.mxu0 %v583
    %784 = vmatprep.subr.bf16.mxu0 0
    %785 = vmatpush1.bf16.msra.mxu0 %v586
    %786 = vmatprep.subr.bf16.mxu0 0
    %787 = vmatpush1.bf16.msra.mxu0 %v589
    %788 = vmatprep.subr.bf16.mxu0 0
    %789 = vmatpush1.bf16.msra.mxu0 %v592
    %790 = vmatprep.subr.bf16.mxu0 0
    %791 = vmatpush1.bf16.msra.mxu0 %v595
    %792 = vmatprep.subr.bf16.mxu0 0
    %793 = vmatpush1.bf16.msra.mxu0 0
    %794 = vmatprep.subr.bf16.mxu0 0
    %795 = vmatpush1.bf16.msra.mxu0 0
    %796 = vmatprep.subr.bf16.mxu0 0
    %797 = vmatpush1.bf16.msra.mxu0 0
    %798 = vmatprep.subr.bf16.mxu0 0
    %799 = vmatpush1.bf16.msra.mxu0 0
    %800 = vmatprep.subr.bf16.mxu0 0
    %801 = vmatpush1.bf16.msra.mxu0 0
    %802 = vmatprep.subr.bf16.mxu0 0
    %803 = vmatpush1.bf16.msra.mxu0 0
    %804 = vmatprep.subr.bf16.mxu0 0
    %805 = vmatpush1.bf16.msra.mxu0 0
    %806 = vmatprep.subr.bf16.mxu0 0
    %807 = vmatpush1.bf16.msra.mxu0 0
    %808 = vmatprep.mubr.bf16.mxu0 0
    %809 = vmatmul.mubr.bf16.gmra.mrb[0].mxu0 %v734
    %v810 = vpop.f32.mrb[0].mxu0
    %v811 = vadd.f32 0.0, %v810
    %v812 = vpop.f32.mrb[0].mxu0
    %v813 = vpop.f32.mrb[0].mxu0
    %v814 = vpop.f32.mrb[0].mxu0
    %815 = vdwg.mxu0
    %v816 = vadd.f32 %v730, %v770
    %v817 = vxor.u32 %v816, 2147483648
    %v818 = vmul.f32 %v817, 1.442695
    %v819 = vpow.pop %v818
    %v820 = vadd.f32 %v819, 1.0
    %v821 = vrcp.pop %v820
    %v822 = vmul.f32 1.0, %v821
    %v823 = vadd.f32 %v731, %v772
    %v824 = vxor.u32 %v823, 2147483648
    %v825 = vmul.f32 %v824, 1.442695
    %v826 = vpow.pop %v825
    %v827 = vadd.f32 %v826, 1.0
    %v828 = vrcp.pop %v827
    %v829 = vmul.f32 1.0, %v828
    %v830 = vadd.f32 %v811, %v719
    %v831 = vmul.f32 %v822, %v830
    %v832 = vadd.f32 %v732, %v831
    %v833 = vtanh.pop %v832
    %v834 = vsub.f32 1.0, %v829
    %v835 = vmul.f32 %v834, %v833
    %v836 = vmul.f32 %v829, %v733
    %v837 = vadd.f32 %v835, %v836
    %838 = vst [vmem:[#allocation2 + $0x8] sm:$0xff] %v837
    %v839 = vld [vmem:[#allocation3 + $0x30] sm:$0xff]
    %v840 = vld [vmem:[#allocation3 + $0x38] sm:$0xff]
    %v841 = vld [vmem:[#allocation3 + $0x40] sm:$0xff]
    %v842 = vld [vmem:[#allocation2 + $0x8] sm:$0xff]
    %v843 = vpack.c.bf16 %v842, %v842
    %844 = vmatprep.subr.bf16.mxu0 %v573
    %845 = vmatpush1.bf16.msra.mxu0 %v572
    %846 = vmatprep.subr.bf16.mxu0 %v576
    %847 = vmatpush1.bf16.msra.mxu0 %v575
    %848 = vmatprep.subr.bf16.mxu0 %v579
    %849 = vmatpush1.bf16.msra.mxu0 %v578
    %850 = vmatprep.subr.bf16.mxu0 %v582
    %851 = vmatpush1.bf16.msra.mxu0 %v581
    %852 = vmatprep.subr.bf16.mxu0 %v585
    %853 = vmatpush1.bf16.msra.mxu0 %v584
    %854 = vmatprep.subr.bf16.mxu0 %v588
    %855 = vmatpush1.bf16.msra.mxu0 %v587
    %856 = vmatprep.subr.bf16.mxu0 %v591
    %857 = vmatpush1.bf16.msra.mxu0 %v590
    %858 = vmatprep.subr.bf16.mxu0 %v594
    %859 = vmatpush1.bf16.msra.mxu0 %v593
    %860 = vmatprep.subr.bf16.mxu0 0
    %861 = vmatpush1.bf16.msra.mxu0 0
    %862 = vmatprep.subr.bf16.mxu0 0
    %863 = vmatpush1.bf16.msra.mxu0 0
    %864 = vmatprep.subr.bf16.mxu0 0
    %865 = vmatpush1.bf16.msra.mxu0 0
    %866 = vmatprep.subr.bf16.mxu0 0
    %867 = vmatpush1.bf16.msra.mxu0 0
    %868 = vmatprep.subr.bf16.mxu0 0
    %869 = vmatpush1.bf16.msra.mxu0 0
    %870 = vmatprep.subr.bf16.mxu0 0
    %871 = vmatpush1.bf16.msra.mxu0 0
    %872 = vmatprep.subr.bf16.mxu0 0
    %873 = vmatpush1.bf16.msra.mxu0 0
    %874 = vmatprep.subr.bf16.mxu0 0
    %875 = vmatpush1.bf16.msra.mxu0 0
    %876 = vmatprep.mubr.bf16.mxu0 0
    %877 = vmatmul.mubr.bf16.gmra.mrb[0].mxu0 %v843
    %v878 = vpop.f32.mrb[0].mxu0
    %v879 = vadd.f32 0.0, %v878
    %v880 = vpop.f32.mrb[0].mxu0
    %v881 = vadd.f32 0.0, %v880
    %v882 = vpop.f32.mrb[0].mxu0
    %v883 = vpop.f32.mrb[0].mxu0
    %884 = vdwg.mxu0
    %885 = vmatprep.subr.bf16.mxu0 0
    %886 = vmatpush1.bf16.msra.mxu0 %v574
    %887 = vmatprep.subr.bf16.mxu0 0
    %888 = vmatpush1.bf16.msra.mxu0 %v577
    %889 = vmatprep.subr.bf16.mxu0 0
    %890 = vmatpush1.bf16.msra.mxu0 %v580
    %891 = vmatprep.subr.bf16.mxu0 0
    %892 = vmatpush1.bf16.msra.mxu0 %v583
    %893 = vmatprep.subr.bf16.mxu0 0
    %894 = vmatpush1.bf16.msra.mxu0 %v586
    %895 = vmatprep.subr.bf16.mxu0 0
    %896 = vmatpush1.bf16.msra.mxu0 %v589
    %897 = vmatprep.subr.bf16.mxu0 0
    %898 = vmatpush1.bf16.msra.mxu0 %v592
    %899 = vmatprep.subr.bf16.mxu0 0
    %900 = vmatpush1.bf16.msra.mxu0 %v595
    %901 = vmatprep.subr.bf16.mxu0 0
    %902 = vmatpush1.bf16.msra.mxu0 0
    %903 = vmatprep.subr.bf16.mxu0 0
    %904 = vmatpush1.bf16.msra.mxu0 0
    %905 = vmatprep.subr.bf16.mxu0 0
    %906 = vmatpush1.bf16.msra.mxu0 0
    %907 = vmatprep.subr.bf16.mxu0 0
    %908 = vmatpush1.bf16.msra.mxu0 0
    %909 = vmatprep.subr.bf16.mxu0 0
    %910 = vmatpush1.bf16.msra.mxu0 0
    %911 = vmatprep.subr.bf16.mxu0 0
    %912 = vmatpush1.bf16.msra.mxu0 0
    %913 = vmatprep.subr.bf16.mxu0 0
    %914 = vmatpush1.bf16.msra.mxu0 0
    %915 = vmatprep.subr.bf16.mxu0 0
    %916 = vmatpush1.bf16.msra.mxu0 0
    %917 = vmatprep.mubr.bf16.mxu0 0
    %918 = vmatmul.mubr.bf16.gmra.mrb[0].mxu0 %v843
    %v919 = vpop.f32.mrb[0].mxu0
    %v920 = vadd.f32 0.0, %v919
    %v921 = vpop.f32.mrb[0].mxu0
    %v922 = vpop.f32.mrb[0].mxu0
    %v923 = vpop.f32.mrb[0].mxu0
    %924 = vdwg.mxu0
    %v925 = vadd.f32 %v839, %v879
    %v926 = vxor.u32 %v925, 2147483648
    %v927 = vmul.f32 %v926, 1.442695
    %v928 = vpow.pop %v927
    %v929 = vadd.f32 %v928, 1.0
    %v930 = vrcp.pop %v929
    %v931 = vmul.f32 1.0, %v930
    %v932 = vadd.f32 %v840, %v881
    %v933 = vxor.u32 %v932, 2147483648
    %v934 = vmul.f32 %v933, 1.442695
    %v935 = vpow.pop %v934
    %v936 = vadd.f32 %v935, 1.0
    %v937 = vrcp.pop %v936
    %v938 = vmul.f32 1.0, %v937
    %v939 = vadd.f32 %v920, %v719
    %v940 = vmul.f32 %v931, %v939
    %v941 = vadd.f32 %v841, %v940
    %v942 = vtanh.pop %v941
    %v943 = vsub.f32 1.0, %v938
    %v944 = vmul.f32 %v943, %v942
    %v945 = vmul.f32 %v938, %v842
    %v946 = vadd.f32 %v944, %v945
    %947 = vst [vmem:[#allocation2 + $0x10] sm:$0xff] %v946
    %v948 = vld [vmem:[#allocation3 + $0x48] sm:$0xff]
    %v949 = vld [vmem:[#allocation3 + $0x50] sm:$0xff]
    %v950 = vld [vmem:[#allocation3 + $0x58] sm:$0xff]
    %v951 = vld [vmem:[#allocation2 + $0x10] sm:$0xff]
    %v952 = vpack.c.bf16 %v951, %v951
    %953 = vmatprep.subr.bf16.mxu0 %v573
    %954 = vmatpush1.bf16.msra.mxu0 %v572
    %955 = vmatprep.subr.bf16.mxu0 %v576
    %956 = vmatpush1.bf16.msra.mxu0 %v575
    %957 = vmatprep.subr.bf16.mxu0 %v579
    %958 = vmatpush1.bf16.msra.mxu0 %v578
    %959 = vmatprep.subr.bf16.mxu0 %v582
    %960 = vmatpush1.bf16.msra.mxu0 %v581
    %961 = vmatprep.subr.bf16.mxu0 %v585
    %962 = vmatpush1.bf16.msra.mxu0 %v584
    %963 = vmatprep.subr.bf16.mxu0 %v588
    %964 = vmatpush1.bf16.msra.mxu0 %v587
    %965 = vmatprep.subr.bf16.mxu0 %v591
    %966 = vmatpush1.bf16.msra.mxu0 %v590
    %967 = vmatprep.subr.bf16.mxu0 %v594
    %968 = vmatpush1.bf16.msra.mxu0 %v593
    %969 = vmatprep.subr.bf16.mxu0 0
    %970 = vmatpush1.bf16.msra.mxu0 0
    %971 = vmatprep.subr.bf16.mxu0 0
    %972 = vmatpush1.bf16.msra.mxu0 0
    %973 = vmatprep.subr.bf16.mxu0 0
    %974 = vmatpush1.bf16.msra.mxu0 0
    %975 = vmatprep.subr.bf16.mxu0 0
    %976 = vmatpush1.bf16.msra.mxu0 0
    %977 = vmatprep.subr.bf16.mxu0 0
    %978 = vmatpush1.bf16.msra.mxu0 0
    %979 = vmatprep.subr.bf16.mxu0 0
    %980 = vmatpush1.bf16.msra.mxu0 0
    %981 = vmatprep.subr.bf16.mxu0 0
    %982 = vmatpush1.bf16.msra.mxu0 0
    %983 = vmatprep.subr.bf16.mxu0 0
    %984 = vmatpush1.bf16.msra.mxu0 0
    %985 = vmatprep.mubr.bf16.mxu0 0
    %986 = vmatmul.mubr.bf16.gmra.mrb[0].mxu0 %v952
    %v987 = vpop.f32.mrb[0].mxu0
    %v988 = vadd.f32 0.0, %v987
    %v989 = vpop.f32.mrb[0].mxu0
    %v990 = vadd.f32 0.0, %v989
    %v991 = vpop.f32.mrb[0].mxu0
    %v992 = vpop.f32.mrb[0].mxu0
    %993 = vdwg.mxu0
    %994 = vmatprep.subr.bf16.mxu0 0
    %995 = vmatpush1.bf16.msra.mxu0 %v574
    %996 = vmatprep.subr.bf16.mxu0 0
    %997 = vmatpush1.bf16.msra.mxu0 %v577
    %998 = vmatprep.subr.bf16.mxu0 0
    %999 = vmatpush1.bf16.msra.mxu0 %v580
    %1000 = vmatprep.subr.bf16.mxu0 0
    %1001 = vmatpush1.bf16.msra.mxu0 %v583
    %1002 = vmatprep.subr.bf16.mxu0 0
    %1003 = vmatpush1.bf16.msra.mxu0 %v586
    %1004 = vmatprep.subr.bf16.mxu0 0
    %1005 = vmatpush1.bf16.msra.mxu0 %v589
    %1006 = vmatprep.subr.bf16.mxu0 0
    %1007 = vmatpush1.bf16.msra.mxu0 %v592
    %1008 = vmatprep.subr.bf16.mxu0 0
    %1009 = vmatpush1.bf16.msra.mxu0 %v595
    %1010 = vmatprep.subr.bf16.mxu0 0
    %1011 = vmatpush1.bf16.msra.mxu0 0
    %1012 = vmatprep.subr.bf16.mxu0 0
    %1013 = vmatpush1.bf16.msra.mxu0 0
    %1014 = vmatprep.subr.bf16.mxu0 0
    %1015 = vmatpush1.bf16.msra.mxu0 0
    %1016 = vmatprep.subr.bf16.mxu0 0
    %1017 = vmatpush1.bf16.msra.mxu0 0
    %1018 = vmatprep.subr.bf16.mxu0 0
    %1019 = vmatpush1.bf16.msra.mxu0 0
    %1020 = vmatprep.subr.bf16.mxu0 0
    %1021 = vmatpush1.bf16.msra.mxu0 0
    %1022 = vmatprep.subr.bf16.mxu0 0
    %1023 = vmatpush1.bf16.msra.mxu0 0
    %1024 = vmatprep.subr.bf16.mxu0 0
    %1025 = vmatpush1.bf16.msra.mxu0 0
    %1026 = vmatprep.mubr.bf16.mxu0 0
    %1027 = vmatmul.mubr.bf16.gmra.mrb[0].mxu0 %v952
    %v1028 = vpop.f32.mrb[0].mxu0
    %v1029 = vadd.f32 0.0, %v1028
    %v1030 = vpop.f32.mrb[0].mxu0
    %v1031 = vpop.f32.mrb[0].mxu0
    %v1032 = vpop.f32.mrb[0].mxu0
    %1033 = vdwg.mxu0
    %v1034 = vadd.f32 %v948, %v988
    %v1035 = vxor.u32 %v1034, 2147483648
    %v1036 = vmul.f32 %v1035, 1.442695
    %v1037 = vpow.pop %v1036
    %v1038 = vadd.f32 %v1037, 1.0
    %v1039 = vrcp.pop %v1038
    %v1040 = vmul.f32 1.0, %v1039
    %v1041 = vadd.f32 %v949, %v990
    %v1042 = vxor.u32 %v1041, 2147483648
    %v1043 = vmul.f32 %v1042, 1.442695
    %v1044 = vpow.pop %v1043
    %v1045 = vadd.f32 %v1044, 1.0
    %v1046 = vrcp.pop %v1045
    %v1047 = vmul.f32 1.0, %v1046
    %v1048 = vadd.f32 %v1029, %v719
    %v1049 = vmul.f32 %v1040, %v1048
    %v1050 = vadd.f32 %v950, %v1049
    %v1051 = vtanh.pop %v1050
    %v1052 = vsub.f32 1.0, %v1047
    %v1053 = vmul.f32 %v1052, %v1051
    %v1054 = vmul.f32 %v1047, %v951
    %v1055 = vadd.f32 %v1053, %v1054
    %1056 = vst [vmem:[#allocation2 + $0x18] sm:$0xff] %v1055
    %v1057 = vld [vmem:[#allocation3 + $0x60] sm:$0xff]
    %v1058 = vld [vmem:[#allocation3 + $0x68] sm:$0xff]
    %v1059 = vld [vmem:[#allocation3 + $0x70] sm:$0xff]
    %v1060 = vld [vmem:[#allocation2 + $0x18] sm:$0xff]
    %v1061 = vpack.c.bf16 %v1060, %v1060
    %1062 = vmatprep.subr.bf16.mxu0 %v573
    %1063 = vmatpush1.bf16.msra.mxu0 %v572
    %1064 = vmatprep.subr.bf16.mxu0 %v576
    %1065 = vmatpush1.bf16.msra.mxu0 %v575
    %1066 = vmatprep.subr.bf16.mxu0 %v579
    %1067 = vmatpush1.bf16.msra.mxu0 %v578
    %1068 = vmatprep.subr.bf16.mxu0 %v582
    %1069 = vmatpush1.bf16.msra.mxu0 %v581
    %1070 = vmatprep.subr.bf16.mxu0 %v585
    %1071 = vmatpush1.bf16.msra.mxu0 %v584
    %1072 = vmatprep.subr.bf16.mxu0 %v588
    %1073 = vmatpush1.bf16.msra.mxu0 %v587
    %1074 = vmatprep.subr.bf16.mxu0 %v591
    %1075 = vmatpush1.bf16.msra.mxu0 %v590
    %1076 = vmatprep.subr.bf16.mxu0 %v594
    %1077 = vmatpush1.bf16.msra.mxu0 %v593
    %1078 = vmatprep.subr.bf16.mxu0 0
    %1079 = vmatpush1.bf16.msra.mxu0 0
    %1080 = vmatprep.subr.bf16.mxu0 0
    %1081 = vmatpush1.bf16.msra.mxu0 0
    %1082 = vmatprep.subr.bf16.mxu0 0
    %1083 = vmatpush1.bf16.msra.mxu0 0
    %1084 = vmatprep.subr.bf16.mxu0 0
    %1085 = vmatpush1.bf16.msra.mxu0 0
    %1086 = vmatprep.subr.bf16.mxu0 0
    %1087 = vmatpush1.bf16.msra.mxu0 0
    %1088 = vmatprep.subr.bf16.mxu0 0
    %1089 = vmatpush1.bf16.msra.mxu0 0
    %1090 = vmatprep.subr.bf16.mxu0 0
    %1091 = vmatpush1.bf16.msra.mxu0 0
    %1092 = vmatprep.subr.bf16.mxu0 0
    %1093 = vmatpush1.bf16.msra.mxu0 0
    %1094 = vmatprep.mubr.bf16.mxu0 0
    %1095 = vmatmul.mubr.bf16.gmra.mrb[0].mxu0 %v1061
    %v1096 = vpop.f32.mrb[0].mxu0
    %v1097 = vadd.f32 0.0, %v1096
    %v1098 = vpop.f32.mrb[0].mxu0
    %v1099 = vadd.f32 0.0, %v1098
    %v1100 = vpop.f32.mrb[0].mxu0
    %v1101 = vpop.f32.mrb[0].mxu0
    %1102 = vdwg.mxu0
    %1103 = vmatprep.subr.bf16.mxu0 0
    %1104 = vmatpush1.bf16.msra.mxu0 %v574
    %1105 = vmatprep.subr.bf16.mxu0 0
    %1106 = vmatpush1.bf16.msra.mxu0 %v577
    %1107 = vmatprep.subr.bf16.mxu0 0
    %1108 = vmatpush1.bf16.msra.mxu0 %v580
    %1109 = vmatprep.subr.bf16.mxu0 0
    %1110 = vmatpush1.bf16.msra.mxu0 %v583
    %1111 = vmatprep.subr.bf16.mxu0 0
    %1112 = vmatpush1.bf16.msra.mxu0 %v586
    %1113 = vmatprep.subr.bf16.mxu0 0
    %1114 = vmatpush1.bf16.msra.mxu0 %v589
    %1115 = vmatprep.subr.bf16.mxu0 0
    %1116 = vmatpush1.bf16.msra.mxu0 %v592
    %1117 = vmatprep.subr.bf16.mxu0 0
    %1118 = vmatpush1.bf16.msra.mxu0 %v595
    %1119 = vmatprep.subr.bf16.mxu0 0
    %1120 = vmatpush1.bf16.msra.mxu0 0
    %1121 = vmatprep.subr.bf16.mxu0 0
    %1122 = vmatpush1.bf16.msra.mxu0 0
    %1123 = vmatprep.subr.bf16.mxu0 0
    %1124 = vmatpush1.bf16.msra.mxu0 0
    %1125 = vmatprep.subr.bf16.mxu0 0
    %1126 = vmatpush1.bf16.msra.mxu0 0
    %1127 = vmatprep.subr.bf16.mxu0 0
    %1128 = vmatpush1.bf16.msra.mxu0 0
    %1129 = vmatprep.subr.bf16.mxu0 0
    %1130 = vmatpush1.bf16.msra.mxu0 0
    %1131 = vmatprep.subr.bf16.mxu0 0
    %1132 = vmatpush1.bf16.msra.mxu0 0
    %1133 = vmatprep.subr.bf16.mxu0 0
    %1134 = vmatpush1.bf16.msra.mxu0 0
    %1135 = vmatprep.mubr.bf16.mxu0 0
    %1136 = vmatmul.mubr.bf16.gmra.mrb[0].mxu0 %v1061
    %v1137 = vpop.f32.mrb[0].mxu0
    %v1138 = vadd.f32 0.0, %v1137
    %v1139 = vpop.f32.mrb[0].mxu0
    %v1140 = vpop.f32.mrb[0].mxu0
    %v1141 = vpop.f32.mrb[0].mxu0
    %1142 = vdwg.mxu0
    %v1143 = vadd.f32 %v1057, %v1097
    %v1144 = vxor.u32 %v1143, 2147483648
    %v1145 = vmul.f32 %v1144, 1.442695
    %v1146 = vpow.pop %v1145
    %v1147 = vadd.f32 %v1146, 1.0
    %v1148 = vrcp.pop %v1147
    %v1149 = vmul.f32 1.0, %v1148
    %v1150 = vadd.f32 %v1058, %v1099
    %v1151 = vxor.u32 %v1150, 2147483648
    %v1152 = vmul.f32 %v1151, 1.442695
    %v1153 = vpow.pop %v1152
    %v1154 = vadd.f32 %v1153, 1.0
    %v1155 = vrcp.pop %v1154
    %v1156 = vmul.f32 1.0, %v1155
    %v1157 = vadd.f32 %v1138, %v719
    %v1158 = vmul.f32 %v1149, %v1157
    %v1159 = vadd.f32 %v1059, %v1158
    %v1160 = vtanh.pop %v1159
    %v1161 = vsub.f32 1.0, %v1156
    %v1162 = vmul.f32 %v1161, %v1160
    %v1163 = vmul.f32 %v1156, %v1060
    %v1164 = vadd.f32 %v1162, %v1163
    %1165 = vst [vmem:[#allocation2 + $0x20] sm:$0xff] %v1164
    %v1166 = vld [vmem:[#allocation3 + $0x78] sm:$0xff]
    %v1167 = vld [vmem:[#allocation3 + $0x80] sm:$0xff]
    %v1168 = vld [vmem:[#allocation3 + $0x88] sm:$0xff]
    %v1169 = vld [vmem:[#allocation2 + $0x20] sm:$0xff]
    %v1170 = vpack.c.bf16 %v1169, %v1169
    %1171 = vmatprep.subr.bf16.mxu0 %v573
    %1172 = vmatpush1.bf16.msra.mxu0 %v572
    %1173 = vmatprep.subr.bf16.mxu0 %v576
    %1174 = vmatpush1.bf16.msra.mxu0 %v575
    %1175 = vmatprep.subr.bf16.mxu0 %v579
    %1176 = vmatpush1.bf16.msra.mxu0 %v578
    %1177 = vmatprep.subr.bf16.mxu0 %v582
    %1178 = vmatpush1.bf16.msra.mxu0 %v581
    %1179 = vmatprep.subr.bf16.mxu0 %v585
    %1180 = vmatpush1.bf16.msra.mxu0 %v584
    %1181 = vmatprep.subr.bf16.mxu0 %v588
    %1182 = vmatpush1.bf16.msra.mxu0 %v587
    %1183 = vmatprep.subr.bf16.mxu0 %v591
    %1184 = vmatpush1.bf16.msra.mxu0 %v590
    %1185 = vmatprep.subr.bf16.mxu0 %v594
    %1186 = vmatpush1.bf16.msra.mxu0 %v593
    %1187 = vmatprep.subr.bf16.mxu0 0
    %1188 = vmatpush1.bf16.msra.mxu0 0
    %1189 = vmatprep.subr.bf16.mxu0 0
    %1190 = vmatpush1.bf16.msra.mxu0 0
    %1191 = vmatprep.subr.bf16.mxu0 0
    %1192 = vmatpush1.bf16.msra.mxu0 0
    %1193 = vmatprep.subr.bf16.mxu0 0
    %1194 = vmatpush1.bf16.msra.mxu0 0
    %1195 = vmatprep.subr.bf16.mxu0 0
    %1196 = vmatpush1.bf16.msra.mxu0 0
    %1197 = vmatprep.subr.bf16.mxu0 0
    %1198 = vmatpush1.bf16.msra.mxu0 0
    %1199 = vmatprep.subr.bf16.mxu0 0
    %1200 = vmatpush1.bf16.msra.mxu0 0
    %1201 = vmatprep.subr.bf16.mxu0 0
    %1202 = vmatpush1.bf16.msra.mxu0 0
    %1203 = vmatprep.mubr.bf16.mxu0 0
    %1204 = vmatmul.mubr.bf16.gmra.mrb[0].mxu0 %v1170
    %v1205 = vpop.f32.mrb[0].mxu0
    %v1206 = vadd.f32 0.0, %v1205
    %v1207 = vpop.f32.mrb[0].mxu0
    %v1208 = vadd.f32 0.0, %v1207
    %v1209 = vpop.f32.mrb[0].mxu0
    %v1210 = vpop.f32.mrb[0].mxu0
    %1211 = vdwg.mxu0
    %1212 = vmatprep.subr.bf16.mxu0 0
    %1213 = vmatpush1.bf16.msra.mxu0 %v574
    %1214 = vmatprep.subr.bf16.mxu0 0
    %1215 = vmatpush1.bf16.msra.mxu0 %v577
    %1216 = vmatprep.subr.bf16.mxu0 0
    %1217 = vmatpush1.bf16.msra.mxu0 %v580
    %1218 = vmatprep.subr.bf16.mxu0 0
    %1219 = vmatpush1.bf16.msra.mxu0 %v583
    %1220 = vmatprep.subr.bf16.mxu0 0
    %1221 = vmatpush1.bf16.msra.mxu0 %v586
    %1222 = vmatprep.subr.bf16.mxu0 0
    %1223 = vmatpush1.bf16.msra.mxu0 %v589
    %1224 = vmatprep.subr.bf16.mxu0 0
    %1225 = vmatpush1.bf16.msra.mxu0 %v592
    %1226 = vmatprep.subr.bf16.mxu0 0
    %1227 = vmatpush1.bf16.msra.mxu0 %v595
    %1228 = vmatprep.subr.bf16.mxu0 0
    %1229 = vmatpush1.bf16.msra.mxu0 0
    %1230 = vmatprep.subr.bf16.mxu0 0
    %1231 = vmatpush1.bf16.msra.mxu0 0
    %1232 = vmatprep.subr.bf16.mxu0 0
    %1233 = vmatpush1.bf16.msra.mxu0 0
    %1234 = vmatprep.subr.bf16.mxu0 0
    %1235 = vmatpush1.bf16.msra.mxu0 0
    %1236 = vmatprep.subr.bf16.mxu0 0
    %1237 = vmatpush1.bf16.msra.mxu0 0
    %1238 = vmatprep.subr.bf16.mxu0 0
    %1239 = vmatpush1.bf16.msra.mxu0 0
    %1240 = vmatprep.subr.bf16.mxu0 0
    %1241 = vmatpush1.bf16.msra.mxu0 0
    %1242 = vmatprep.subr.bf16.mxu0 0
    %1243 = vmatpush1.bf16.msra.mxu0 0
    %1244 = vmatprep.mubr.bf16.mxu0 0
    %1245 = vmatmul.mubr.bf16.gmra.mrb[0].mxu0 %v1170
    %v1246 = vpop.f32.mrb[0].mxu0
    %v1247 = vadd.f32 0.0, %v1246
    %v1248 = vpop.f32.mrb[0].mxu0
    %v1249 = vpop.f32.mrb[0].mxu0
    %v1250 = vpop.f32.mrb[0].mxu0
    %1251 = vdwg.mxu0
    %v1252 = vadd.f32 %v1166, %v1206
    %v1253 = vxor.u32 %v1252, 2147483648
    %v1254 = vmul.f32 %v1253, 1.442695
    %v1255 = vpow.pop %v1254
    %v1256 = vadd.f32 %v1255, 1.0
    %v1257 = vrcp.pop %v1256
    %v1258 = vmul.f32 1.0, %v1257
    %v1259 = vadd.f32 %v1167, %v1208
    %v1260 = vxor.u32 %v1259, 2147483648
    %v1261 = vmul.f32 %v1260, 1.442695
    %v1262 = vpow.pop %v1261
    %v1263 = vadd.f32 %v1262, 1.0
    %v1264 = vrcp.pop %v1263
    %v1265 = vmul.f32 1.0, %v1264
    %v1266 = vadd.f32 %v1247, %v719
    %v1267 = vmul.f32 %v1258, %v1266
    %v1268 = vadd.f32 %v1168, %v1267
    %v1269 = vtanh.pop %v1268
    %v1270 = vsub.f32 1.0, %v1265
    %v1271 = vmul.f32 %v1270, %v1269
    %v1272 = vmul.f32 %v1265, %v1169
    %v1273 = vadd.f32 %v1271, %v1272
    %1274 = vst [vmem:[#allocation2 + $0x28] sm:$0xff] %v1273
    %v1275 = vld [vmem:[#allocation3 + $0x90] sm:$0xff]
    %v1276 = vld [vmem:[#allocation3 + $0x98] sm:$0xff]
    %v1277 = vld [vmem:[#allocation3 + $0xa0] sm:$0xff]
    %v1278 = vld [vmem:[#allocation2 + $0x28] sm:$0xff]
    %v1279 = vpack.c.bf16 %v1278, %v1278
    %1280 = vmatprep.subr.bf16.mxu0 %v573
    %1281 = vmatpush1.bf16.msra.mxu0 %v572
    %1282 = vmatprep.subr.bf16.mxu0 %v576
    %1283 = vmatpush1.bf16.msra.mxu0 %v575
    %1284 = vmatprep.subr.bf16.mxu0 %v579
    %1285 = vmatpush1.bf16.msra.mxu0 %v578
    %1286 = vmatprep.subr.bf16.mxu0 %v582
    %1287 = vmatpush1.bf16.msra.mxu0 %v581
    %1288 = vmatprep.subr.bf16.mxu0 %v585
    %1289 = vmatpush1.bf16.msra.mxu0 %v584
    %1290 = vmatprep.subr.bf16.mxu0 %v588
    %1291 = vmatpush1.bf16.msra.mxu0 %v587
    %1292 = vmatprep.subr.bf16.mxu0 %v591
    %1293 = vmatpush1.bf16.msra.mxu0 %v590
    %1294 = vmatprep.subr.bf16.mxu0 %v594
    %1295 = vmatpush1.bf16.msra.mxu0 %v593
    %1296 = vmatprep.subr.bf16.mxu0 0
    %1297 = vmatpush1.bf16.msra.mxu0 0
    %1298 = vmatprep.subr.bf16.mxu0 0
    %1299 = vmatpush1.bf16.msra.mxu0 0
    %1300 = vmatprep.subr.bf16.mxu0 0
    %1301 = vmatpush1.bf16.msra.mxu0 0
    %1302 = vmatprep.subr.bf16.mxu0 0
    %1303 = vmatpush1.bf16.msra.mxu0 0
    %1304 = vmatprep.subr.bf16.mxu0 0
    %1305 = vmatpush1.bf16.msra.mxu0 0
    %1306 = vmatprep.subr.bf16.mxu0 0
    %1307 = vmatpush1.bf16.msra.mxu0 0
    %1308 = vmatprep.subr.bf16.mxu0 0
    %1309 = vmatpush1.bf16.msra.mxu0 0
    %1310 = vmatprep.subr.bf16.mxu0 0
    %1311 = vmatpush1.bf16.msra.mxu0 0
    %1312 = vmatprep.mubr.bf16.mxu0 0
    %1313 = vmatmul.mubr.bf16.gmra.mrb[0].mxu0 %v1279
    %v1314 = vpop.f32.mrb[0].mxu0
    %v1315 = vadd.f32 0.0, %v1314
    %v1316 = vpop.f32.mrb[0].mxu0
    %v1317 = vadd.f32 0.0, %v1316
    %v1318 = vpop.f32.mrb[0].mxu0
    %v1319 = vpop.f32.mrb[0].mxu0
    %1320 = vdwg.mxu0
    %1321 = vmatprep.subr.bf16.mxu0 0
    %1322 = vmatpush1.bf16.msra.mxu0 %v574
    %1323 = vmatprep.subr.bf16.mxu0 0
    %1324 = vmatpush1.bf16.msra.mxu0 %v577
    %1325 = vmatprep.subr.bf16.mxu0 0
    %1326 = vmatpush1.bf16.msra.mxu0 %v580
    %1327 = vmatprep.subr.bf16.mxu0 0
    %1328 = vmatpush1.bf16.msra.mxu0 %v583
    %1329 = vmatprep.subr.bf16.mxu0 0
    %1330 = vmatpush1.bf16.msra.mxu0 %v586
    %1331 = vmatprep.subr.bf16.mxu0 0
    %1332 = vmatpush1.bf16.msra.mxu0 %v589
    %1333 = vmatprep.subr.bf16.mxu0 0
    %1334 = vmatpush1.bf16.msra.mxu0 %v592
    %1335 = vmatprep.subr.bf16.mxu0 0
    %1336 = vmatpush1.bf16.msra.mxu0 %v595
    %1337 = vmatprep.subr.bf16.mxu0 0
    %1338 = vmatpush1.bf16.msra.mxu0 0
    %1339 = vmatprep.subr.bf16.mxu0 0
    %1340 = vmatpush1.bf16.msra.mxu0 0
    %1341 = vmatprep.subr.bf16.mxu0 0
    %1342 = vmatpush1.bf16.msra.mxu0 0
    %1343 = vmatprep.subr.bf16.mxu0 0
    %1344 = vmatpush1.bf16.msra.mxu0 0
    %1345 = vmatprep.subr.bf16.mxu0 0
    %1346 = vmatpush1.bf16.msra.mxu0 0
    %1347 = vmatprep.subr.bf16.mxu0 0
    %1348 = vmatpush1.bf16.msra.mxu0 0
    %1349 = vmatprep.subr.bf16.mxu0 0
    %1350 = vmatpush1.bf16.msra.mxu0 0
    %1351 = vmatprep.subr.bf16.mxu0 0
    %1352 = vmatpush1.bf16.msra.mxu0 0
    %1353 = vmatprep.mubr.bf16.mxu0 0
    %1354 = vmatmul.mubr.bf16.gmra.mrb[0].mxu0 %v1279
    %v1355 = vpop.f32.mrb[0].mxu0
    %v1356 = vadd.f32 0.0, %v1355
    %v1357 = vpop.f32.mrb[0].mxu0
    %v1358 = vpop.f32.mrb[0].mxu0
    %v1359 = vpop.f32.mrb[0].mxu0
    %1360 = vdwg.mxu0
    %v1361 = vadd.f32 %v1275, %v1315
    %v1362 = vxor.u32 %v1361, 2147483648
    %v1363 = vmul.f32 %v1362, 1.442695
    %v1364 = vpow.pop %v1363
    %v1365 = vadd.f32 %v1364, 1.0
    %v1366 = vrcp.pop %v1365
    %v1367 = vmul.f32 1.0, %v1366
    %v1368 = vadd.f32 %v1276, %v1317
    %v1369 = vxor.u32 %v1368, 2147483648
    %v1370 = vmul.f32 %v1369, 1.442695
    %v1371 = vpow.pop %v1370
    %v1372 = vadd.f32 %v1371, 1.0
    %v1373 = vrcp.pop %v1372
    %v1374 = vmul.f32 1.0, %v1373
    %v1375 = vadd.f32 %v1356, %v719
    %v1376 = vmul.f32 %v1367, %v1375
    %v1377 = vadd.f32 %v1277, %v1376
    %v1378 = vtanh.pop %v1377
    %v1379 = vsub.f32 1.0, %v1374
    %v1380 = vmul.f32 %v1379, %v1378
    %v1381 = vmul.f32 %v1374, %v1278
    %v1382 = vadd.f32 %v1380, %v1381
    %1383 = vst [vmem:[#allocation2 + $0x30] sm:$0xff] %v1382
    %v1384 = vld [vmem:[#allocation3 + $0xa8] sm:$0xff]
    %v1385 = vld [vmem:[#allocation3 + $0xb0] sm:$0xff]
    %v1386 = vld [vmem:[#allocation3 + $0xb8] sm:$0xff]
    %v1387 = vld [vmem:[#allocation2 + $0x30] sm:$0xff]
    %v1388 = vpack.c.bf16 %v1387, %v1387
    %1389 = vmatprep.subr.bf16.mxu0 %v573
    %1390 = vmatpush1.bf16.msra.mxu0 %v572
    %1391 = vmatprep.subr.bf16.mxu0 %v576
    %1392 = vmatpush1.bf16.msra.mxu0 %v575
    %1393 = vmatprep.subr.bf16.mxu0 %v579
    %1394 = vmatpush1.bf16.msra.mxu0 %v578
    %1395 = vmatprep.subr.bf16.mxu0 %v582
    %1396 = vmatpush1.bf16.msra.mxu0 %v581
    %1397 = vmatprep.subr.bf16.mxu0 %v585
    %1398 = vmatpush1.bf16.msra.mxu0 %v584
    %1399 = vmatprep.subr.bf16.mxu0 %v588
    %1400 = vmatpush1.bf16.msra.mxu0 %v587
    %1401 = vmatprep.subr.bf16.mxu0 %v591
    %1402 = vmatpush1.bf16.msra.mxu0 %v590
    %1403 = vmatprep.subr.bf16.mxu0 %v594
    %1404 = vmatpush1.bf16.msra.mxu0 %v593
    %1405 = vmatprep.subr.bf16.mxu0 0
    %1406 = vmatpush1.bf16.msra.mxu0 0
    %1407 = vmatprep.subr.bf16.mxu0 0
    %1408 = vmatpush1.bf16.msra.mxu0 0
    %1409 = vmatprep.subr.bf16.mxu0 0
    %1410 = vmatpush1.bf16.msra.mxu0 0
    %1411 = vmatprep.subr.bf16.mxu0 0
    %1412 = vmatpush1.bf16.msra.mxu0 0
    %1413 = vmatprep.subr.bf16.mxu0 0
    %1414 = vmatpush1.bf16.msra.mxu0 0
    %1415 = vmatprep.subr.bf16.mxu0 0
    %1416 = vmatpush1.bf16.msra.mxu0 0
    %1417 = vmatprep.subr.bf16.mxu0 0
    %1418 = vmatpush1.bf16.msra.mxu0 0
    %1419 = vmatprep.subr.bf16.mxu0 0
    %1420 = vmatpush1.bf16.msra.mxu0 0
    %1421 = vmatprep.mubr.bf16.mxu0 0
    %1422 = vmatmul.mubr.bf16.gmra.mrb[0].mxu0 %v1388
    %v1423 = vpop.f32.mrb[0].mxu0
    %v1424 = vadd.f32 0.0, %v1423
    %v1425 = vpop.f32.mrb[0].mxu0
    %v1426 = vadd.f32 0.0, %v1425
    %v1427 = vpop.f32.mrb[0].mxu0
    %v1428 = vpop.f32.mrb[0].mxu0
    %1429 = vdwg.mxu0
    %1430 = vmatprep.subr.bf16.mxu0 0
    %1431 = vmatpush1.bf16.msra.mxu0 %v574
    %1432 = vmatprep.subr.bf16.mxu0 0
    %1433 = vmatpush1.bf16.msra.mxu0 %v577
    %1434 = vmatprep.subr.bf16.mxu0 0
    %1435 = vmatpush1.bf16.msra.mxu0 %v580
    %1436 = vmatprep.subr.bf16.mxu0 0
    %1437 = vmatpush1.bf16.msra.mxu0 %v583
    %1438 = vmatprep.subr.bf16.mxu0 0
    %1439 = vmatpush1.bf16.msra.mxu0 %v586
    %1440 = vmatprep.subr.bf16.mxu0 0
    %1441 = vmatpush1.bf16.msra.mxu0 %v589
    %1442 = vmatprep.subr.bf16.mxu0 0
    %1443 = vmatpush1.bf16.msra.mxu0 %v592
    %1444 = vmatprep.subr.bf16.mxu0 0
    %1445 = vmatpush1.bf16.msra.mxu0 %v595
    %1446 = vmatprep.subr.bf16.mxu0 0
    %1447 = vmatpush1.bf16.msra.mxu0 0
    %1448 = vmatprep.subr.bf16.mxu0 0
    %1449 = vmatpush1.bf16.msra.mxu0 0
    %1450 = vmatprep.subr.bf16.mxu0 0
    %1451 = vmatpush1.bf16.msra.mxu0 0
    %1452 = vmatprep.subr.bf16.mxu0 0
    %1453 = vmatpush1.bf16.msra.mxu0 0
    %1454 = vmatprep.subr.bf16.mxu0 0
    %1455 = vmatpush1.bf16.msra.mxu0 0
    %1456 = vmatprep.subr.bf16.mxu0 0
    %1457 = vmatpush1.bf16.msra.mxu0 0
    %1458 = vmatprep.subr.bf16.mxu0 0
    %1459 = vmatpush1.bf16.msra.mxu0 0
    %1460 = vmatprep.subr.bf16.mxu0 0
    %1461 = vmatpush1.bf16.msra.mxu0 0
    %1462 = vmatprep.mubr.bf16.mxu0 0
    %1463 = vmatmul.mubr.bf16.gmra.mrb[0].mxu0 %v1388
    %v1464 = vpop.f32.mrb[0].mxu0
    %v1465 = vadd.f32 0.0, %v1464
    %v1466 = vpop.f32.mrb[0].mxu0
    %v1467 = vpop.f32.mrb[0].mxu0
    %v1468 = vpop.f32.mrb[0].mxu0
    %1469 = vdwg.mxu0
    %v1470 = vadd.f32 %v1384, %v1424
    %v1471 = vxor.u32 %v1470, 2147483648
    %v1472 = vmul.f32 %v1471, 1.442695
    %v1473 = vpow.pop %v1472
    %v1474 = vadd.f32 %v1473, 1.0
    %v1475 = vrcp.pop %v1474
    %v1476 = vmul.f32 1.0, %v1475
    %v1477 = vadd.f32 %v1385, %v1426
    %v1478 = vxor.u32 %v1477, 2147483648
    %v1479 = vmul.f32 %v1478, 1.442695
    %v1480 = vpow.pop %v1479
    %v1481 = vadd.f32 %v1480, 1.0
    %v1482 = vrcp.pop %v1481
    %v1483 = vmul.f32 1.0, %v1482
    %v1484 = vadd.f32 %v1465, %v719
    %v1485 = vmul.f32 %v1476, %v1484
    %v1486 = vadd.f32 %v1386, %v1485
    %v1487 = vtanh.pop %v1486
    %v1488 = vsub.f32 1.0, %v1483
    %v1489 = vmul.f32 %v1488, %v1487
    %v1490 = vmul.f32 %v1483, %v1387
    %v1491 = vadd.f32 %v1489, %v1490
    %1492 = vst [vmem:[#allocation2 + $0x38] sm:$0xff] %v1491
    %v1493 = vld [vmem:[#allocation2] sm:$0xff]
    %v1494 = vld [vmem:[#allocation2 + $0x8] sm:$0xff]
    %v1495 = vld [vmem:[#allocation2 + $0x10] sm:$0xff]
    %v1496 = vld [vmem:[#allocation2 + $0x18] sm:$0xff]
    %v1497 = vld [vmem:[#allocation2 + $0x20] sm:$0xff]
    %v1498 = vld [vmem:[#allocation2 + $0x28] sm:$0xff]
    %v1499 = vld [vmem:[#allocation2 + $0x30] sm:$0xff]
    %v1500 = vld [vmem:[#allocation2 + $0x38] sm:$0xff]
    %v1501 = vpack.c.bf16 %v1494, %v1493
    %v1502 = vpack.c.bf16 %v1496, %v1495
    %v1503 = vpack.c.bf16 %v1498, %v1497
    %v1504 = vpack.c.bf16 %v1500, %v1499
    %v1505 = vld [vmem:[#allocation6] sm:$0xff]
    %v1506 = vld [vmem:[#allocation6 + $0x8] sm:$0xf]
    %v1507 = vld [vmem:[#allocation6 + $0xc] sm:$0xff]
    %v1508 = vld [vmem:[#allocation6 + $0x14] sm:$0xf]
    %v1509 = vld [vmem:[#allocation6 + $0x18] sm:$0xff]
    %v1510 = vld [vmem:[#allocation6 + $0x20] sm:$0xf]
    %v1511 = vld [vmem:[#allocation6 + $0x24] sm:$0xff]
    %v1512 = vld [vmem:[#allocation6 + $0x2c] sm:$0xf]
    %v1513 = vld [vmem:[#allocation6 + $0x30] sm:$0xff]
    %v1514 = vld [vmem:[#allocation6 + $0x38] sm:$0xf]
    %v1515 = vld [vmem:[#allocation6 + $0x3c] sm:$0xff]
    %v1516 = vld [vmem:[#allocation6 + $0x44] sm:$0xf]
    %v1517 = vld [vmem:[#allocation6 + $0x48] sm:$0xff]
    %v1518 = vld [vmem:[#allocation6 + $0x50] sm:$0xf]
    %v1519 = vld [vmem:[#allocation6 + $0x54] sm:$0xff]
    %v1520 = vld [vmem:[#allocation6 + $0x5c] sm:$0xf]
    %v1521 = vld [vmem:[#allocation6 + $0x60] sm:$0xff]
    %v1522 = vld [vmem:[#allocation6 + $0x68] sm:$0xf]
    %v1523 = vld [vmem:[#allocation6 + $0x6c] sm:$0xff]
    %v1524 = vld [vmem:[#allocation6 + $0x74] sm:$0xf]
    %v1525 = vld [vmem:[#allocation6 + $0x78] sm:$0xff]
    %v1526 = vld [vmem:[#allocation6 + $0x80] sm:$0xf]
    %v1527 = vld [vmem:[#allocation6 + $0x84] sm:$0xff]
    %v1528 = vld [vmem:[#allocation6 + $0x8c] sm:$0xf]
    %v1529 = vld [vmem:[#allocation6 + $0x90] sm:$0xff]
    %v1530 = vld [vmem:[#allocation6 + $0x98] sm:$0xf]
    %v1531 = vld [vmem:[#allocation6 + $0x9c] sm:$0xff]
    %v1532 = vld [vmem:[#allocation6 + $0xa4] sm:$0xf]
    %v1533 = vld [vmem:[#allocation6 + $0xa8] sm:$0xff]
    %v1534 = vld [vmem:[#allocation6 + $0xb0] sm:$0xf]
    %v1535 = vld [vmem:[#allocation6 + $0xb4] sm:$0xff]
    %v1536 = vld [vmem:[#allocation6 + $0xbc] sm:$0xf]
    %v1537 = vld [vmem:[%s8] sm:$0x7]
    %v1539 = vlaneseq
    %v1540 = vshrl.u32 %v1539, 7
    %v1541 = vsub.s32 0, %v1540
    %v1542 = vrot.slane %v1537, %v1541
    %v1543 = vlaneseq
    %v1544 = vshrl.u32 %v1543, 7
    %v1545 = vsub.s32 1, %v1544
    %v1546 = vrot.slane %v1537, %v1545
    %v1547 = vlaneseq
    %v1548 = vshrl.u32 %v1547, 7
    %v1549 = vsub.s32 2, %v1548
    %v1550 = vrot.slane %v1537, %v1549
    %v1586 = vunpack.c.l.b16 %v1505
    %v1587 = vunpack.c.h.b16 %v1505
    %v1588 = vunpack.c.l.b16 %v1506
    %v1589 = vunpack.c.l.b16 %v1507
    %v1590 = vunpack.c.h.b16 %v1507
    %v1591 = vunpack.c.l.b16 %v1508
    %v1592 = vunpack.c.l.b16 %v1509
    %v1593 = vunpack.c.h.b16 %v1509
    %v1594 = vunpack.c.l.b16 %v1510
    %v1595 = vunpack.c.l.b16 %v1511
    %v1596 = vunpack.c.h.b16 %v1511
    %v1597 = vunpack.c.l.b16 %v1512
    %v1598 = vunpack.c.l.b16 %v1513
    %v1599 = vunpack.c.h.b16 %v1513
    %v1600 = vunpack.c.l.b16 %v1514
    %v1601 = vunpack.c.l.b16 %v1515
    %v1602 = vunpack.c.h.b16 %v1515
    %v1603 = vunpack.c.l.b16 %v1516
    %v1604 = vunpack.c.l.b16 %v1517
    %v1605 = vunpack.c.h.b16 %v1517
    %v1606 = vunpack.c.l.b16 %v1518
    %v1607 = vunpack.c.l.b16 %v1519
    %v1608 = vunpack.c.h.b16 %v1519
    %v1609 = vunpack.c.l.b16 %v1520
    %v1610 = vunpack.c.l.b16 %v1521
    %v1611 = vunpack.c.h.b16 %v1521
    %v1612 = vunpack.c.l.b16 %v1522
    %v1613 = vunpack.c.l.b16 %v1523
    %v1614 = vunpack.c.h.b16 %v1523
    %v1615 = vunpack.c.l.b16 %v1524
    %v1616 = vunpack.c.l.b16 %v1525
    %v1617 = vunpack.c.h.b16 %v1525
    %v1618 = vunpack.c.l.b16 %v1526
    %v1619 = vunpack.c.l.b16 %v1527
    %v1620 = vunpack.c.h.b16 %v1527
    %v1621 = vunpack.c.l.b16 %v1528
    %v1622 = vunpack.c.l.b16 %v1529
    %v1623 = vunpack.c.h.b16 %v1529
    %v1624 = vunpack.c.l.b16 %v1530
    %v1625 = vunpack.c.l.b16 %v1531
    %v1626 = vunpack.c.h.b16 %v1531
    %v1627 = vunpack.c.l.b16 %v1532
    %v1628 = vunpack.c.l.b16 %v1533
    %v1629 = vunpack.c.h.b16 %v1533
    %v1630 = vunpack.c.l.b16 %v1534
    %v1631 = vunpack.c.l.b16 %v1535
    %v1632 = vunpack.c.h.b16 %v1535
    %v1633 = vunpack.c.l.b16 %v1536
    %v1634 = vpack.c.b16 %v1589, %v1586
    %v1635 = vpack.c.b16 %v1590, %v1587
    %v1636 = vpack.c.b16 %v1591, %v1588
    %v1637 = vpack.c.b16 %v1595, %v1592
    %v1638 = vpack.c.b16 %v1596, %v1593
    %v1639 = vpack.c.b16 %v1597, %v1594
    %v1640 = vpack.c.b16 %v1601, %v1598
    %v1641 = vpack.c.b16 %v1602, %v1599
    %v1642 = vpack.c.b16 %v1603, %v1600
    %v1643 = vpack.c.b16 %v1607, %v1604
    %v1644 = vpack.c.b16 %v1608, %v1605
    %v1645 = vpack.c.b16 %v1609, %v1606
    %v1646 = vpack.c.b16 %v1613, %v1610
    %v1647 = vpack.c.b16 %v1614, %v1611
    %v1648 = vpack.c.b16 %v1615, %v1612
    %v1649 = vpack.c.b16 %v1619, %v1616
    %v1650 = vpack.c.b16 %v1620, %v1617
    %v1651 = vpack.c.b16 %v1621, %v1618
    %v1652 = vpack.c.b16 %v1625, %v1622
    %v1653 = vpack.c.b16 %v1626, %v1623
    %v1654 = vpack.c.b16 %v1627, %v1624
    %v1655 = vpack.c.b16 %v1631, %v1628
    %v1656 = vpack.c.b16 %v1632, %v1629
    %v1657 = vpack.c.b16 %v1633, %v1630
    %1682 = vmatprep.subr.bf16.mxu0 %v1635
    %1683 = vmatpush1.bf16.msra.mxu0 %v1634
    %1684 = vmatprep.subr.bf16.mxu0 %v1638
    %1685 = vmatpush1.bf16.msra.mxu0 %v1637
    %1686 = vmatprep.subr.bf16.mxu0 %v1641
    %1687 = vmatpush1.bf16.msra.mxu0 %v1640
    %1688 = vmatprep.subr.bf16.mxu0 %v1644
    %1689 = vmatpush1.bf16.msra.mxu0 %v1643
    %1690 = vmatprep.subr.bf16.mxu0 %v1647
    %1691 = vmatpush1.bf16.msra.mxu0 %v1646
    %1692 = vmatprep.subr.bf16.mxu0 %v1650
    %1693 = vmatpush1.bf16.msra.mxu0 %v1649
    %1694 = vmatprep.subr.bf16.mxu0 %v1653
    %1695 = vmatpush1.bf16.msra.mxu0 %v1652
    %1696 = vmatprep.subr.bf16.mxu0 %v1656
    %1697 = vmatpush1.bf16.msra.mxu0 %v1655
    %1698 = vmatprep.subr.bf16.mxu0 0
    %1699 = vmatpush1.bf16.msra.mxu0 0
    %1700 = vmatprep.subr.bf16.mxu0 0
    %1701 = vmatpush1.bf16.msra.mxu0 0
    %1702 = vmatprep.subr.bf16.mxu0 0
    %1703 = vmatpush1.bf16.msra.mxu0 0
    %1704 = vmatprep.subr.bf16.mxu0 0
    %1705 = vmatpush1.bf16.msra.mxu0 0
    %1706 = vmatprep.subr.bf16.mxu0 0
    %1707 = vmatpush1.bf16.msra.mxu0 0
    %1708 = vmatprep.subr.bf16.mxu0 0
    %1709 = vmatpush1.bf16.msra.mxu0 0
    %1710 = vmatprep.subr.bf16.mxu0 0
    %1711 = vmatpush1.bf16.msra.mxu0 0
    %1712 = vmatprep.subr.bf16.mxu0 0
    %1713 = vmatpush1.bf16.msra.mxu0 0
    %1714 = vmatprep.mubr.bf16.mxu0 0
    %1715 = vmatmul.mubr.bf16.gmra.mrb[0].mxu0 %v1501
    %v1716 = vpop.f32.mrb[0].mxu0
    %v1717 = vadd.f32 %v1542, %v1716
    %v1718 = vpop.f32.mrb[0].mxu0
    %v1719 = vadd.f32 %v1546, %v1718
    %v1720 = vpop.f32.mrb[0].mxu0
    %v1721 = vadd.f32 %v1542, %v1720
    %v1722 = vpop.f32.mrb[0].mxu0
    %v1723 = vadd.f32 %v1546, %v1722
    %1724 = vmatprep.mubr.bf16.mxu0 0
    %1725 = vmatmul.mubr.bf16.gmra.mrb[0].mxu0 %v1502
    %v1726 = vpop.f32.mrb[0].mxu0
    %v1727 = vadd.f32 %v1542, %v1726
    %v1728 = vpop.f32.mrb[0].mxu0
    %v1729 = vadd.f32 %v1546, %v1728
    %v1730 = vpop.f32.mrb[0].mxu0
    %v1731 = vadd.f32 %v1542, %v1730
    %v1732 = vpop.f32.mrb[0].mxu0
    %v1733 = vadd.f32 %v1546, %v1732
    %1734 = vmatprep.mubr.bf16.mxu0 0
    %1735 = vmatmul.mubr.bf16.gmra.mrb[0].mxu0 %v1503
    %v1736 = vpop.f32.mrb[0].mxu0
    %v1737 = vadd.f32 %v1542, %v1736
    %v1738 = vpop.f32.mrb[0].mxu0
    %v1739 = vadd.f32 %v1546, %v1738
    %v1740 = vpop.f32.mrb[0].mxu0
    %v1741 = vadd.f32 %v1542, %v1740
    %v1742 = vpop.f32.mrb[0].mxu0
    %v1743 = vadd.f32 %v1546, %v1742
    %1744 = vmatprep.mubr.bf16.mxu0 0
    %1745 = vmatmul.mubr.bf16.gmra.mrb[0].mxu0 %v1504
    %v1746 = vpop.f32.mrb[0].mxu0
    %v1747 = vadd.f32 %v1542, %v1746
    %v1748 = vpop.f32.mrb[0].mxu0
    %v1749 = vadd.f32 %v1546, %v1748
    %v1750 = vpop.f32.mrb[0].mxu0
    %v1751 = vadd.f32 %v1542, %v1750
    %v1752 = vpop.f32.mrb[0].mxu0
    %v1753 = vadd.f32 %v1546, %v1752
    %1754 = vdwg.mxu0
    %1755 = vmatprep.subr.bf16.mxu0 0
    %1756 = vmatpush1.bf16.msra.mxu0 %v1636
    %1757 = vmatprep.subr.bf16.mxu0 0
    %1758 = vmatpush1.bf16.msra.mxu0 %v1639
    %1759 = vmatprep.subr.bf16.mxu0 0
    %1760 = vmatpush1.bf16.msra.mxu0 %v1642
    %1761 = vmatprep.subr.bf16.mxu0 0
    %1762 = vmatpush1.bf16.msra.mxu0 %v1645
    %1763 = vmatprep.subr.bf16.mxu0 0
    %1764 = vmatpush1.bf16.msra.mxu0 %v1648
    %1765 = vmatprep.subr.bf16.mxu0 0
    %1766 = vmatpush1.bf16.msra.mxu0 %v1651
    %1767 = vmatprep.subr.bf16.mxu0 0
    %1768 = vmatpush1.bf16.msra.mxu0 %v1654
    %1769 = vmatprep.subr.bf16.mxu0 0
    %1770 = vmatpush1.bf16.msra.mxu0 %v1657
    %1771 = vmatprep.subr.bf16.mxu0 0
    %1772 = vmatpush1.bf16.msra.mxu0 0
    %1773 = vmatprep.subr.bf16.mxu0 0
    %1774 = vmatpush1.bf16.msra.mxu0 0
    %1775 = vmatprep.subr.bf16.mxu0 0
    %1776 = vmatpush1.bf16.msra.mxu0 0
    %1777 = vmatprep.subr.bf16.mxu0 0
    %1778 = vmatpush1.bf16.msra.mxu0 0
    %1779 = vmatprep.subr.bf16.mxu0 0
    %1780 = vmatpush1.bf16.msra.mxu0 0
    %1781 = vmatprep.subr.bf16.mxu0 0
    %1782 = vmatpush1.bf16.msra.mxu0 0
    %1783 = vmatprep.subr.bf16.mxu0 0
    %1784 = vmatpush1.bf16.msra.mxu0 0
    %1785 = vmatprep.subr.bf16.mxu0 0
    %1786 = vmatpush1.bf16.msra.mxu0 0
    %1787 = vmatprep.mubr.bf16.mxu0 0
    %1788 = vmatmul.mubr.bf16.gmra.mrb[0].mxu0 %v1501
    %v1789 = vpop.f32.mrb[0].mxu0
    %v1790 = vadd.f32 %v1550, %v1789
    %v1791 = vpop.f32.mrb[0].mxu0
    %v1792 = vpop.f32.mrb[0].mxu0
    %v1793 = vadd.f32 %v1550, %v1792
    %v1794 = vpop.f32.mrb[0].mxu0
    %1795 = vmatprep.mubr.bf16.mxu0 0
    %1796 = vmatmul.mubr.bf16.gmra.mrb[0].mxu0 %v1502
    %v1797 = vpop.f32.mrb[0].mxu0
    %v1798 = vadd.f32 %v1550, %v1797
    %v1799 = vpop.f32.mrb[0].mxu0
    %v1800 = vpop.f32.mrb[0].mxu0
    %v1801 = vadd.f32 %v1550, %v1800
    %v1802 = vpop.f32.mrb[0].mxu0
    %1803 = vmatprep.mubr.bf16.mxu0 0
    %1804 = vmatmul.mubr.bf16.gmra.mrb[0].mxu0 %v1503
    %v1805 = vpop.f32.mrb[0].mxu0
    %v1806 = vadd.f32 %v1550, %v1805
    %v1807 = vpop.f32.mrb[0].mxu0
    %v1808 = vpop.f32.mrb[0].mxu0
    %v1809 = vadd.f32 %v1550, %v1808
    %v1810 = vpop.f32.mrb[0].mxu0
    %1811 = vmatprep.mubr.bf16.mxu0 0
    %1812 = vmatmul.mubr.bf16.gmra.mrb[0].mxu0 %v1504
    %v1813 = vpop.f32.mrb[0].mxu0
    %v1814 = vadd.f32 %v1550, %v1813
    %v1815 = vpop.f32.mrb[0].mxu0
    %v1816 = vpop.f32.mrb[0].mxu0
    %v1817 = vadd.f32 %v1550, %v1816
    %v1818 = vpop.f32.mrb[0].mxu0
    %1819 = vdwg.mxu0
    %1820 = vst [vmem:[#allocation3] sm:$0xff] %v1717
    %1821 = vst [vmem:[#allocation3 + $0x8] sm:$0xff] %v1719
    %1822 = vst [vmem:[#allocation3 + $0x10] sm:$0xff] %v1790
    %1823 = vst [vmem:[#allocation3 + $0x18] sm:$0xff] %v1721
    %1824 = vst [vmem:[#allocation3 + $0x20] sm:$0xff] %v1723
    %1825 = vst [vmem:[#allocation3 + $0x28] sm:$0xff] %v1793
    %1826 = vst [vmem:[#allocation3 + $0x30] sm:$0xff] %v1727
    %1827 = vst [vmem:[#allocation3 + $0x38] sm:$0xff] %v1729
    %1828 = vst [vmem:[#allocation3 + $0x40] sm:$0xff] %v1798
    %1829 = vst [vmem:[#allocation3 + $0x48] sm:$0xff] %v1731
    %1830 = vst [vmem:[#allocation3 + $0x50] sm:$0xff] %v1733
    %1831 = vst [vmem:[#allocation3 + $0x58] sm:$0xff] %v1801
    %1832 = vst [vmem:[#allocation3 + $0x60] sm:$0xff] %v1737
    %1833 = vst [vmem:[#allocation3 + $0x68] sm:$0xff] %v1739
    %1834 = vst [vmem:[#allocation3 + $0x70] sm:$0xff] %v1806
    %1835 = vst [vmem:[#allocation3 + $0x78] sm:$0xff] %v1741
    %1836 = vst [vmem:[#allocation3 + $0x80] sm:$0xff] %v1743
    %1837 = vst [vmem:[#allocation3 + $0x88] sm:$0xff] %v1809
    %1838 = vst [vmem:[#allocation3 + $0x90] sm:$0xff] %v1747
    %1839 = vst [vmem:[#allocation3 + $0x98] sm:$0xff] %v1749
    %1840 = vst [vmem:[#allocation3 + $0xa0] sm:$0xff] %v1814
    %1841 = vst [vmem:[#allocation3 + $0xa8] sm:$0xff] %v1751
    %1842 = vst [vmem:[#allocation3 + $0xb0] sm:$0xff] %v1753
    %1843 = vst [vmem:[#allocation3 + $0xb8] sm:$0xff] %v1817
    %v1844 = vld [vmem:[#allocation8] sm:$0xff]
    %v1845 = vld [vmem:[#allocation8 + $0x8] sm:$0xf]
    %v1846 = vld [vmem:[#allocation8 + $0xc] sm:$0xff]
    %v1847 = vld [vmem:[#allocation8 + $0x14] sm:$0xf]
    %v1848 = vld [vmem:[#allocation8 + $0x18] sm:$0xff]
    %v1849 = vld [vmem:[#allocation8 + $0x20] sm:$0xf]
    %v1850 = vld [vmem:[#allocation8 + $0x24] sm:$0xff]
    %v1851 = vld [vmem:[#allocation8 + $0x2c] sm:$0xf]
    %v1852 = vld [vmem:[#allocation8 + $0x30] sm:$0xff]
    %v1853 = vld [vmem:[#allocation8 + $0x38] sm:$0xf]
    %v1854 = vld [vmem:[#allocation8 + $0x3c] sm:$0xff]
    %v1855 = vld [vmem:[#allocation8 + $0x44] sm:$0xf]
    %v1856 = vld [vmem:[#allocation8 + $0x48] sm:$0xff]
    %v1857 = vld [vmem:[#allocation8 + $0x50] sm:$0xf]
    %v1858 = vld [vmem:[#allocation8 + $0x54] sm:$0xff]
    %v1859 = vld [vmem:[#allocation8 + $0x5c] sm:$0xf]
    %v1860 = vld [vmem:[#allocation8 + $0x60] sm:$0xff]
    %v1861 = vld [vmem:[#allocation8 + $0x68] sm:$0xf]
    %v1862 = vld [vmem:[#allocation8 + $0x6c] sm:$0xff]
    %v1863 = vld [vmem:[#allocation8 + $0x74] sm:$0xf]
    %v1864 = vld [vmem:[#allocation8 + $0x78] sm:$0xff]
    %v1865 = vld [vmem:[#allocation8 + $0x80] sm:$0xf]
    %v1866 = vld [vmem:[#allocation8 + $0x84] sm:$0xff]
    %v1867 = vld [vmem:[#allocation8 + $0x8c] sm:$0xf]
    %v1868 = vld [vmem:[#allocation8 + $0x90] sm:$0xff]
    %v1869 = vld [vmem:[#allocation8 + $0x98] sm:$0xf]
    %v1870 = vld [vmem:[#allocation8 + $0x9c] sm:$0xff]
    %v1871 = vld [vmem:[#allocation8 + $0xa4] sm:$0xf]
    %v1872 = vld [vmem:[#allocation8 + $0xa8] sm:$0xff]
    %v1873 = vld [vmem:[#allocation8 + $0xb0] sm:$0xf]
    %v1874 = vld [vmem:[#allocation8 + $0xb4] sm:$0xff]
    %v1875 = vld [vmem:[#allocation8 + $0xbc] sm:$0xf]
    %v1876 = vld [vmem:[%s9] sm:$0x1]
    %v1877 = vld [vmem:[#allocation3] sm:$0xff]
    %v1878 = vld [vmem:[#allocation3 + $0x8] sm:$0xff]
    %v1879 = vld [vmem:[#allocation3 + $0x10] sm:$0xff]
    %v1880 = vld [vmem:[#allocation3 + $0x18] sm:$0xff]
    %v1881 = vld [vmem:[#allocation3 + $0x20] sm:$0xff]
    %v1882 = vld [vmem:[#allocation3 + $0x28] sm:$0xff]
    %v1915 = vunpack.c.l.b16 %v1844
    %v1916 = vunpack.c.h.b16 %v1844
    %v1917 = vunpack.c.l.b16 %v1845
    %v1918 = vunpack.c.l.b16 %v1846
    %v1919 = vunpack.c.h.b16 %v1846
    %v1920 = vunpack.c.l.b16 %v1847
    %v1921 = vunpack.c.l.b16 %v1848
    %v1922 = vunpack.c.h.b16 %v1848
    %v1923 = vunpack.c.l.b16 %v1849
    %v1924 = vunpack.c.l.b16 %v1850
    %v1925 = vunpack.c.h.b16 %v1850
    %v1926 = vunpack.c.l.b16 %v1851
    %v1927 = vunpack.c.l.b16 %v1852
    %v1928 = vunpack.c.h.b16 %v1852
    %v1929 = vunpack.c.l.b16 %v1853
    %v1930 = vunpack.c.l.b16 %v1854
    %v1931 = vunpack.c.h.b16 %v1854
    %v1932 = vunpack.c.l.b16 %v1855
    %v1933 = vunpack.c.l.b16 %v1856
    %v1934 = vunpack.c.h.b16 %v1856
    %v1935 = vunpack.c.l.b16 %v1857
    %v1936 = vunpack.c.l.b16 %v1858
    %v1937 = vunpack.c.h.b16 %v1858
    %v1938 = vunpack.c.l.b16 %v1859
    %v1939 = vunpack.c.l.b16 %v1860
    %v1940 = vunpack.c.h.b16 %v1860
    %v1941 = vunpack.c.l.b16 %v1861
    %v1942 = vunpack.c.l.b16 %v1862
    %v1943 = vunpack.c.h.b16 %v1862
    %v1944 = vunpack.c.l.b16 %v1863
    %v1945 = vunpack.c.l.b16 %v1864
    %v1946 = vunpack.c.h.b16 %v1864
    %v1947 = vunpack.c.l.b16 %v1865
    %v1948 = vunpack.c.l.b16 %v1866
    %v1949 = vunpack.c.h.b16 %v1866
    %v1950 = vunpack.c.l.b16 %v1867
    %v1951 = vunpack.c.l.b16 %v1868
    %v1952 = vunpack.c.h.b16 %v1868
    %v1953 = vunpack.c.l.b16 %v1869
    %v1954 = vunpack.c.l.b16 %v1870
    %v1955 = vunpack.c.h.b16 %v1870
    %v1956 = vunpack.c.l.b16 %v1871
    %v1957 = vunpack.c.l.b16 %v1872
    %v1958 = vunpack.c.h.b16 %v1872
    %v1959 = vunpack.c.l.b16 %v1873
    %v1960 = vunpack.c.l.b16 %v1874
    %v1961 = vunpack.c.h.b16 %v1874
    %v1962 = vunpack.c.l.b16 %v1875
    %v1963 = vpack.c.b16 %v1918, %v1915
    %v1964 = vpack.c.b16 %v1919, %v1916
    %v1965 = vpack.c.b16 %v1920, %v1917
    %v1966 = vpack.c.b16 %v1924, %v1921
    %v1967 = vpack.c.b16 %v1925, %v1922
    %v1968 = vpack.c.b16 %v1926, %v1923
    %v1969 = vpack.c.b16 %v1930, %v1927
    %v1970 = vpack.c.b16 %v1931, %v1928
    %v1971 = vpack.c.b16 %v1932, %v1929
    %v1972 = vpack.c.b16 %v1936, %v1933
    %v1973 = vpack.c.b16 %v1937, %v1934
    %v1974 = vpack.c.b16 %v1938, %v1935
    %v1975 = vpack.c.b16 %v1942, %v1939
    %v1976 = vpack.c.b16 %v1943, %v1940
    %v1977 = vpack.c.b16 %v1944, %v1941
    %v1978 = vpack.c.b16 %v1948, %v1945
    %v1979 = vpack.c.b16 %v1949, %v1946
    %v1980 = vpack.c.b16 %v1950, %v1947
    %v1981 = vpack.c.b16 %v1954, %v1951
    %v1982 = vpack.c.b16 %v1955, %v1952
    %v1983 = vpack.c.b16 %v1956, %v1953
    %v1984 = vpack.c.b16 %v1960, %v1957
    %v1985 = vpack.c.b16 %v1961, %v1958
    %v1986 = vpack.c.b16 %v1962, %v1959
    %2011 = vmatprep.subr.bf16.mxu0 %v1964
    %2012 = vmatpush1.bf16.msra.mxu0 %v1963
    %2013 = vmatprep.subr.bf16.mxu0 %v1967
    %2014 = vmatpush1.bf16.msra.mxu0 %v1966
    %2015 = vmatprep.subr.bf16.mxu0 %v1970
    %2016 = vmatpush1.bf16.msra.mxu0 %v1969
    %2017 = vmatprep.subr.bf16.mxu0 %v1973
    %2018 = vmatpush1.bf16.msra.mxu0 %v1972
    %2019 = vmatprep.subr.bf16.mxu0 %v1976
    %2020 = vmatpush1.bf16.msra.mxu0 %v1975
    %2021 = vmatprep.subr.bf16.mxu0 %v1979
    %2022 = vmatpush1.bf16.msra.mxu0 %v1978
    %2023 = vmatprep.subr.bf16.mxu0 %v1982
    %2024 = vmatpush1.bf16.msra.mxu0 %v1981
    %2025 = vmatprep.subr.bf16.mxu0 %v1985
    %2026 = vmatpush1.bf16.msra.mxu0 %v1984
    %2027 = vmatprep.subr.bf16.mxu0 0
    %2028 = vmatpush1.bf16.msra.mxu0 0
    %2029 = vmatprep.subr.bf16.mxu0 0
    %2030 = vmatpush1.bf16.msra.mxu0 0
    %2031 = vmatprep.subr.bf16.mxu0 0
    %2032 = vmatpush1.bf16.msra.mxu0 0
    %2033 = vmatprep.subr.bf16.mxu0 0
    %2034 = vmatpush1.bf16.msra.mxu0 0
    %2035 = vmatprep.subr.bf16.mxu0 0
    %2036 = vmatpush1.bf16.msra.mxu0 0
    %2037 = vmatprep.subr.bf16.mxu0 0
    %2038 = vmatpush1.bf16.msra.mxu0 0
    %2039 = vmatprep.subr.bf16.mxu0 0
    %2040 = vmatpush1.bf16.msra.mxu0 0
    %2041 = vmatprep.subr.bf16.mxu0 0
    %2042 = vmatpush1.bf16.msra.mxu0 0
    %2043 = vmatprep.mubr.bf16.mxu0 0
    %2044 = vmatmul.mubr.bf16.gmra.mrb[0].mxu0 0
    %v2045 = vpop.f32.mrb[0].mxu0
    %v2046 = vadd.f32 0.0, %v2045
    %v2047 = vpop.f32.mrb[0].mxu0
    %v2048 = vadd.f32 0.0, %v2047
    %v2049 = vpop.f32.mrb[0].mxu0
    %v2050 = vadd.f32 0.0, %v2049
    %v2051 = vpop.f32.mrb[0].mxu0
    %v2052 = vadd.f32 0.0, %v2051
    %2053 = vdwg.mxu0
    %2054 = vmatprep.subr.bf16.mxu0 0
    %2055 = vmatpush1.bf16.msra.mxu0 %v1965
    %2056 = vmatprep.subr.bf16.mxu0 0
    %2057 = vmatpush1.bf16.msra.mxu0 %v1968
    %2058 = vmatprep.subr.bf16.mxu0 0
    %2059 = vmatpush1.bf16.msra.mxu0 %v1971
    %2060 = vmatprep.subr.bf16.mxu0 0
    %2061 = vmatpush1.bf16.msra.mxu0 %v1974
    %2062 = vmatprep.subr.bf16.mxu0 0
    %2063 = vmatpush1.bf16.msra.mxu0 %v1977
    %2064 = vmatprep.subr.bf16.mxu0 0
    %2065 = vmatpush1.bf16.msra.mxu0 %v1980
    %2066 = vmatprep.subr.bf16.mxu0 0
    %2067 = vmatpush1.bf16.msra.mxu0 %v1983
    %2068 = vmatprep.subr.bf16.mxu0 0
    %2069 = vmatpush1.bf16.msra.mxu0 %v1986
    %2070 = vmatprep.subr.bf16.mxu0 0
    %2071 = vmatpush1.bf16.msra.mxu0 0
    %2072 = vmatprep.subr.bf16.mxu0 0
    %2073 = vmatpush1.bf16.msra.mxu0 0
    %2074 = vmatprep.subr.bf16.mxu0 0
    %2075 = vmatpush1.bf16.msra.mxu0 0
    %2076 = vmatprep.subr.bf16.mxu0 0
    %2077 = vmatpush1.bf16.msra.mxu0 0
    %2078 = vmatprep.subr.bf16.mxu0 0
    %2079 = vmatpush1.bf16.msra.mxu0 0
    %2080 = vmatprep.subr.bf16.mxu0 0
    %2081 = vmatpush1.bf16.msra.mxu0 0
    %2082 = vmatprep.subr.bf16.mxu0 0
    %2083 = vmatpush1.bf16.msra.mxu0 0
    %2084 = vmatprep.subr.bf16.mxu0 0
    %2085 = vmatpush1.bf16.msra.mxu0 0
    %2086 = vmatprep.mubr.bf16.mxu0 0
    %2087 = vmatmul.mubr.bf16.gmra.mrb[0].mxu0 0
    %v2088 = vpop.f32.mrb[0].mxu0
    %v2089 = vadd.f32 0.0, %v2088
    %v2090 = vpop.f32.mrb[0].mxu0
    %v2091 = vpop.f32.mrb[0].mxu0
    %v2092 = vadd.f32 0.0, %v2091
    %v2093 = vpop.f32.mrb[0].mxu0
    %2094 = vdwg.mxu0
    %v2095 = vadd.f32 %v1877, %v2046
    %v2096 = vadd.f32 %v1880, %v2050
    %v2097 = vxor.u32 %v2095, 2147483648
    %v2098 = vxor.u32 %v2096, 2147483648
    %v2099 = vmul.f32 %v2097, 1.442695
    %v2100 = vpow.pop %v2099
    %v2101 = vmul.f32 %v2098, 1.442695
    %v2102 = vpow.pop %v2101
    %v2103 = vadd.f32 %v2100, 1.0
    %v2104 = vadd.f32 %v2102, 1.0
    %v2105 = vrcp.pop %v2103
    %v2106 = vmul.f32 1.0, %v2105
    %v2107 = vrcp.pop %v2104
    %v2108 = vmul.f32 1.0, %v2107
    %v2109 = vadd.f32 %v1878, %v2048
    %v2110 = vadd.f32 %v1881, %v2052
    %v2111 = vxor.u32 %v2109, 2147483648
    %v2112 = vxor.u32 %v2110, 2147483648
    %v2113 = vmul.f32 %v2111, 1.442695
    %v2114 = vpow.pop %v2113
    %v2115 = vmul.f32 %v2112, 1.442695
    %v2116 = vpow.pop %v2115
    %v2117 = vadd.f32 %v2114, 1.0
    %v2118 = vadd.f32 %v2116, 1.0
    %v2119 = vrcp.pop %v2117
    %v2120 = vmul.f32 1.0, %v2119
    %v2121 = vrcp.pop %v2118
    %v2122 = vmul.f32 1.0, %v2121
    %v2124 = vlaneseq
    %v2125 = vshrl.u32 %v2124, 7
    %v2126 = vsub.s32 0, %v2125
    %v2127 = vrot.slane %v1876, %v2126
    %v2129 = vadd.f32 %v2089, %v2127
    %v2130 = vadd.f32 %v2092, %v2127
    %v2131 = vmul.f32 %v2106, %v2129
    %v2132 = vmul.f32 %v2108, %v2130
    %v2133 = vadd.f32 %v1879, %v2131
    %v2134 = vadd.f32 %v1882, %v2132
    %v2135 = vtanh.pop %v2133
    %v2136 = vtanh.pop %v2134
    %v2137 = vsub.f32 1.0, %v2120
    %v2138 = vsub.f32 1.0, %v2122
    %v2139 = vmul.f32 %v2137, %v2135
    %v2140 = vmul.f32 %v2138, %v2136
    %v2141 = vmul.f32 %v2120, 0.0
    %v2142 = vmul.f32 %v2122, 0.0
    %v2143 = vadd.f32 %v2139, %v2141
    %v2144 = vadd.f32 %v2140, %v2142
    %2145 = vst [vmem:[#allocation2] sm:$0xff] %v2143
    %2146 = vst [vmem:[#allocation2 + $0x8] sm:$0xff] %v2144
    %v2147 = vld [vmem:[#allocation3 + $0x30] sm:$0xff]
    %v2148 = vld [vmem:[#allocation3 + $0x38] sm:$0xff]
    %v2149 = vld [vmem:[#allocation3 + $0x40] sm:$0xff]
    %v2150 = vld [vmem:[#allocation3 + $0x48] sm:$0xff]
    %v2151 = vld [vmem:[#allocation3 + $0x50] sm:$0xff]
    %v2152 = vld [vmem:[#allocation3 + $0x58] sm:$0xff]
    %v2153 = vld [vmem:[#allocation2] sm:$0xff]
    %v2154 = vld [vmem:[#allocation2 + $0x8] sm:$0xff]
    %v2155 = vpack.c.bf16 %v2154, %v2153
    %2156 = vmatprep.subr.bf16.mxu0 %v1964
    %2157 = vmatpush1.bf16.msra.mxu0 %v1963
    %2158 = vmatprep.subr.bf16.mxu0 %v1967
    %2159 = vmatpush1.bf16.msra.mxu0 %v1966
    %2160 = vmatprep.subr.bf16.mxu0 %v1970
    %2161 = vmatpush1.bf16.msra.mxu0 %v1969
    %2162 = vmatprep.subr.bf16.mxu0 %v1973
    %2163 = vmatpush1.bf16.msra.mxu0 %v1972
    %2164 = vmatprep.subr.bf16.mxu0 %v1976
    %2165 = vmatpush1.bf16.msra.mxu0 %v1975
    %2166 = vmatprep.subr.bf16.mxu0 %v1979
    %2167 = vmatpush1.bf16.msra.mxu0 %v1978
    %2168 = vmatprep.subr.bf16.mxu0 %v1982
    %2169 = vmatpush1.bf16.msra.mxu0 %v1981
    %2170 = vmatprep.subr.bf16.mxu0 %v1985
    %2171 = vmatpush1.bf16.msra.mxu0 %v1984
    %2172 = vmatprep.subr.bf16.mxu0 0
    %2173 = vmatpush1.bf16.msra.mxu0 0
    %2174 = vmatprep.subr.bf16.mxu0 0
    %2175 = vmatpush1.bf16.msra.mxu0 0
    %2176 = vmatprep.subr.bf16.mxu0 0
    %2177 = vmatpush1.bf16.msra.mxu0 0
    %2178 = vmatprep.subr.bf16.mxu0 0
    %2179 = vmatpush1.bf16.msra.mxu0 0
    %2180 = vmatprep.subr.bf16.mxu0 0
    %2181 = vmatpush1.bf16.msra.mxu0 0
    %2182 = vmatprep.subr.bf16.mxu0 0
    %2183 = vmatpush1.bf16.msra.mxu0 0
    %2184 = vmatprep.subr.bf16.mxu0 0
    %2185 = vmatpush1.bf16.msra.mxu0 0
    %2186 = vmatprep.subr.bf16.mxu0 0
    %2187 = vmatpush1.bf16.msra.mxu0 0
    %2188 = vmatprep.mubr.bf16.mxu0 0
    %2189 = vmatmul.mubr.bf16.gmra.mrb[0].mxu0 %v2155
    %v2190 = vpop.f32.mrb[0].mxu0
    %v2191 = vadd.f32 0.0, %v2190
    %v2192 = vpop.f32.mrb[0].mxu0
    %v2193 = vadd.f32 0.0, %v2192
    %v2194 = vpop.f32.mrb[0].mxu0
    %v2195 = vadd.f32 0.0, %v2194
    %v2196 = vpop.f32.mrb[0].mxu0
    %v2197 = vadd.f32 0.0, %v2196
    %2198 = vdwg.mxu0
    %2199 = vmatprep.subr.bf16.mxu0 0
    %2200 = vmatpush1.bf16.msra.mxu0 %v1965
    %2201 = vmatprep.subr.bf16.mxu0 0
    %2202 = vmatpush1.bf16.msra.mxu0 %v1968
    %2203 = vmatprep.subr.bf16.mxu0 0
    %2204 = vmatpush1.bf16.msra.mxu0 %v1971
    %2205 = vmatprep.subr.bf16.mxu0 0
    %2206 = vmatpush1.bf16.msra.mxu0 %v1974
    %2207 = vmatprep.subr.bf16.mxu0 0
    %2208 = vmatpush1.bf16.msra.mxu0 %v1977
    %2209 = vmatprep.subr.bf16.mxu0 0
    %2210 = vmatpush1.bf16.msra.mxu0 %v1980
    %2211 = vmatprep.subr.bf16.mxu0 0
    %2212 = vmatpush1.bf16.msra.mxu0 %v1983
    %2213 = vmatprep.subr.bf16.mxu0 0
    %2214 = vmatpush1.bf16.msra.mxu0 %v1986
    %2215 = vmatprep.subr.bf16.mxu0 0
    %2216 = vmatpush1.bf16.msra.mxu0 0
    %2217 = vmatprep.subr.bf16.mxu0 0
    %2218 = vmatpush1.bf16.msra.mxu0 0
    %2219 = vmatprep.subr.bf16.mxu0 0
    %2220 = vmatpush1.bf16.msra.mxu0 0
    %2221 = vmatprep.subr.bf16.mxu0 0
    %2222 = vmatpush1.bf16.msra.mxu0 0
    %2223 = vmatprep.subr.bf16.mxu0 0
    %2224 = vmatpush1.bf16.msra.mxu0 0
    %2225 = vmatprep.subr.bf16.mxu0 0
    %2226 = vmatpush1.bf16.msra.mxu0 0
    %2227 = vmatprep.subr.bf16.mxu0 0
    %2228 = vmatpush1.bf16.msra.mxu0 0
    %2229 = vmatprep.subr.bf16.mxu0 0
    %2230 = vmatpush1.bf16.msra.mxu0 0
    %2231 = vmatprep.mubr.bf16.mxu0 0
    %2232 = vmatmul.mubr.bf16.gmra.mrb[0].mxu0 %v2155
    %v2233 = vpop.f32.mrb[0].mxu0
    %v2234 = vadd.f32 0.0, %v2233
    %v2235 = vpop.f32.mrb[0].mxu0
    %v2236 = vpop.f32.mrb[0].mxu0
    %v2237 = vadd.f32 0.0, %v2236
    %v2238 = vpop.f32.mrb[0].mxu0
    %2239 = vdwg.mxu0
    %v2240 = vadd.f32 %v2147, %v2191
    %v2241 = vadd.f32 %v2150, %v2195
    %v2242 = vxor.u32 %v2240, 2147483648
    %v2243 = vxor.u32 %v2241, 2147483648
    %v2244 = vmul.f32 %v2242, 1.442695
    %v2245 = vpow.pop %v2244
    %v2246 = vmul.f32 %v2243, 1.442695
    %v2247 = vpow.pop %v2246
    %v2248 = vadd.f32 %v2245, 1.0
    %v2249 = vadd.f32 %v2247, 1.0
    %v2250 = vrcp.pop %v2248
    %v2251 = vmul.f32 1.0, %v2250
    %v2252 = vrcp.pop %v2249
    %v2253 = vmul.f32 1.0, %v2252
    %v2254 = vadd.f32 %v2148, %v2193
    %v2255 = vadd.f32 %v2151, %v2197
    %v2256 = vxor.u32 %v2254, 2147483648
    %v2257 = vxor.u32 %v2255, 2147483648
    %v2258 = vmul.f32 %v2256, 1.442695
    %v2259 = vpow.pop %v2258
    %v2260 = vmul.f32 %v2257, 1.442695
    %v2261 = vpow.pop %v2260
    %v2262 = vadd.f32 %v2259, 1.0
    %v2263 = vadd.f32 %v2261, 1.0
    %v2264 = vrcp.pop %v2262
    %v2265 = vmul.f32 1.0, %v2264
    %v2266 = vrcp.pop %v2263
    %v2267 = vmul.f32 1.0, %v2266
    %v2268 = vadd.f32 %v2234, %v2127
    %v2269 = vadd.f32 %v2237, %v2127
    %v2270 = vmul.f32 %v2251, %v2268
    %v2271 = vmul.f32 %v2253, %v2269
    %v2272 = vadd.f32 %v2149, %v2270
    %v2273 = vadd.f32 %v2152, %v2271
    %v2274 = vtanh.pop %v2272
    %v2275 = vtanh.pop %v2273
    %v2276 = vsub.f32 1.0, %v2265
    %v2277 = vsub.f32 1.0, %v2267
    %v2278 = vmul.f32 %v2276, %v2274
    %v2279 = vmul.f32 %v2277, %v2275
    %v2280 = vmul.f32 %v2265, %v2153
    %v2281 = vmul.f32 %v2267, %v2154
    %v2282 = vadd.f32 %v2278, %v2280
    %v2283 = vadd.f32 %v2279, %v2281
    %2284 = vst [vmem:[#allocation2 + $0x10] sm:$0xff] %v2282
    %2285 = vst [vmem:[#allocation2 + $0x18] sm:$0xff] %v2283
    %v2286 = vld [vmem:[#allocation3 + $0x60] sm:$0xff]
    %v2287 = vld [vmem:[#allocation3 + $0x68] sm:$0xff]
    %v2288 = vld [vmem:[#allocation3 + $0x70] sm:$0xff]
    %v2289 = vld [vmem:[#allocation3 + $0x78] sm:$0xff]
    %v2290 = vld [vmem:[#allocation3 + $0x80] sm:$0xff]
    %v2291 = vld [vmem:[#allocation3 + $0x88] sm:$0xff]
    %v2292 = vld [vmem:[#allocation2 + $0x10] sm:$0xff]
    %v2293 = vld [vmem:[#allocation2 + $0x18] sm:$0xff]
    %v2294 = vpack.c.bf16 %v2293, %v2292
    %2295 = vmatprep.subr.bf16.mxu0 %v1964
    %2296 = vmatpush1.bf16.msra.mxu0 %v1963
    %2297 = vmatprep.subr.bf16.mxu0 %v1967
    %2298 = vmatpush1.bf16.msra.mxu0 %v1966
    %2299 = vmatprep.subr.bf16.mxu0 %v1970
    %2300 = vmatpush1.bf16.msra.mxu0 %v1969
    %2301 = vmatprep.subr.bf16.mxu0 %v1973
    %2302 = vmatpush1.bf16.msra.mxu0 %v1972
    %2303 = vmatprep.subr.bf16.mxu0 %v1976
    %2304 = vmatpush1.bf16.msra.mxu0 %v1975
    %2305 = vmatprep.subr.bf16.mxu0 %v1979
    %2306 = vmatpush1.bf16.msra.mxu0 %v1978
    %2307 = vmatprep.subr.bf16.mxu0 %v1982
    %2308 = vmatpush1.bf16.msra.mxu0 %v1981
    %2309 = vmatprep.subr.bf16.mxu0 %v1985
    %2310 = vmatpush1.bf16.msra.mxu0 %v1984
    %2311 = vmatprep.subr.bf16.mxu0 0
    %2312 = vmatpush1.bf16.msra.mxu0 0
    %2313 = vmatprep.subr.bf16.mxu0 0
    %2314 = vmatpush1.bf16.msra.mxu0 0
    %2315 = vmatprep.subr.bf16.mxu0 0
    %2316 = vmatpush1.bf16.msra.mxu0 0
    %2317 = vmatprep.subr.bf16.mxu0 0
    %2318 = vmatpush1.bf16.msra.mxu0 0
    %2319 = vmatprep.subr.bf16.mxu0 0
    %2320 = vmatpush1.bf16.msra.mxu0 0
    %2321 = vmatprep.subr.bf16.mxu0 0
    %2322 = vmatpush1.bf16.msra.mxu0 0
    %2323 = vmatprep.subr.bf16.mxu0 0
    %2324 = vmatpush1.bf16.msra.mxu0 0
    %2325 = vmatprep.subr.bf16.mxu0 0
    %2326 = vmatpush1.bf16.msra.mxu0 0
    %2327 = vmatprep.mubr.bf16.mxu0 0
    %2328 = vmatmul.mubr.bf16.gmra.mrb[0].mxu0 %v2294
    %v2329 = vpop.f32.mrb[0].mxu0
    %v2330 = vadd.f32 0.0, %v2329
    %v2331 = vpop.f32.mrb[0].mxu0
    %v2332 = vadd.f32 0.0, %v2331
    %v2333 = vpop.f32.mrb[0].mxu0
    %v2334 = vadd.f32 0.0, %v2333
    %v2335 = vpop.f32.mrb[0].mxu0
    %v2336 = vadd.f32 0.0, %v2335
    %2337 = vdwg.mxu0
    %2338 = vmatprep.subr.bf16.mxu0 0
    %2339 = vmatpush1.bf16.msra.mxu0 %v1965
    %2340 = vmatprep.subr.bf16.mxu0 0
    %2341 = vmatpush1.bf16.msra.mxu0 %v1968
    %2342 = vmatprep.subr.bf16.mxu0 0
    %2343 = vmatpush1.bf16.msra.mxu0 %v1971
    %2344 = vmatprep.subr.bf16.mxu0 0
    %2345 = vmatpush1.bf16.msra.mxu0 %v1974
    %2346 = vmatprep.subr.bf16.mxu0 0
    %2347 = vmatpush1.bf16.msra.mxu0 %v1977
    %2348 = vmatprep.subr.bf16.mxu0 0
    %2349 = vmatpush1.bf16.msra.mxu0 %v1980
    %2350 = vmatprep.subr.bf16.mxu0 0
    %2351 = vmatpush1.bf16.msra.mxu0 %v1983
    %2352 = vmatprep.subr.bf16.mxu0 0
    %2353 = vmatpush1.bf16.msra.mxu0 %v1986
    %2354 = vmatprep.subr.bf16.mxu0 0
    %2355 = vmatpush1.bf16.msra.mxu0 0
    %2356 = vmatprep.subr.bf16.mxu0 0
    %2357 = vmatpush1.bf16.msra.mxu0 0
    %2358 = vmatprep.subr.bf16.mxu0 0
    %2359 = vmatpush1.bf16.msra.mxu0 0
    %2360 = vmatprep.subr.bf16.mxu0 0
    %2361 = vmatpush1.bf16.msra.mxu0 0
    %2362 = vmatprep.subr.bf16.mxu0 0
    %2363 = vmatpush1.bf16.msra.mxu0 0
    %2364 = vmatprep.subr.bf16.mxu0 0
    %2365 = vmatpush1.bf16.msra.mxu0 0
    %2366 = vmatprep.subr.bf16.mxu0 0
    %2367 = vmatpush1.bf16.msra.mxu0 0
    %2368 = vmatprep.subr.bf16.mxu0 0
    %2369 = vmatpush1.bf16.msra.mxu0 0
    %2370 = vmatprep.mubr.bf16.mxu0 0
    %2371 = vmatmul.mubr.bf16.gmra.mrb[0].mxu0 %v2294
    %v2372 = vpop.f32.mrb[0].mxu0
    %v2373 = vadd.f32 0.0, %v2372
    %v2374 = vpop.f32.mrb[0].mxu0
    %v2375 = vpop.f32.mrb[0].mxu0
    %v2376 = vadd.f32 0.0, %v2375
    %v2377 = vpop.f32.mrb[0].mxu0
    %2378 = vdwg.mxu0
    %v2379 = vadd.f32 %v2286, %v2330
    %v2380 = vadd.f32 %v2289, %v2334
    %v2381 = vxor.u32 %v2379, 2147483648
    %v2382 = vxor.u32 %v2380, 2147483648
    %v2383 = vmul.f32 %v2381, 1.442695
    %v2384 = vpow.pop %v2383
    %v2385 = vmul.f32 %v2382, 1.442695
    %v2386 = vpow.pop %v2385
    %v2387 = vadd.f32 %v2384, 1.0
    %v2388 = vadd.f32 %v2386, 1.0
    %v2389 = vrcp.pop %v2387
    %v2390 = vmul.f32 1.0, %v2389
    %v2391 = vrcp.pop %v2388
    %v2392 = vmul.f32 1.0, %v2391
    %v2393 = vadd.f32 %v2287, %v2332
    %v2394 = vadd.f32 %v2290, %v2336
    %v2395 = vxor.u32 %v2393, 2147483648
    %v2396 = vxor.u32 %v2394, 2147483648
    %v2397 = vmul.f32 %v2395, 1.442695
    %v2398 = vpow.pop %v2397
    %v2399 = vmul.f32 %v2396, 1.442695
    %v2400 = vpow.pop %v2399
    %v2401 = vadd.f32 %v2398, 1.0
    %v2402 = vadd.f32 %v2400, 1.0
    %v2403 = vrcp.pop %v2401
    %v2404 = vmul.f32 1.0, %v2403
    %v2405 = vrcp.pop %v2402
    %v2406 = vmul.f32 1.0, %v2405
    %v2407 = vadd.f32 %v2373, %v2127
    %v2408 = vadd.f32 %v2376, %v2127
    %v2409 = vmul.f32 %v2390, %v2407
    %v2410 = vmul.f32 %v2392, %v2408
    %v2411 = vadd.f32 %v2288, %v2409
    %v2412 = vadd.f32 %v2291, %v2410
    %v2413 = vtanh.pop %v2411
    %v2414 = vtanh.pop %v2412
    %v2415 = vsub.f32 1.0, %v2404
    %v2416 = vsub.f32 1.0, %v2406
    %v2417 = vmul.f32 %v2415, %v2413
    %v2418 = vmul.f32 %v2416, %v2414
    %v2419 = vmul.f32 %v2404, %v2292
    %v2420 = vmul.f32 %v2406, %v2293
    %v2421 = vadd.f32 %v2417, %v2419
    %v2422 = vadd.f32 %v2418, %v2420
    %2423 = vst [vmem:[#allocation2 + $0x20] sm:$0xff] %v2421
    %2424 = vst [vmem:[#allocation2 + $0x28] sm:$0xff] %v2422
    %v2425 = vld [vmem:[#allocation3 + $0x90] sm:$0xff]
    %v2426 = vld [vmem:[#allocation3 + $0x98] sm:$0xff]
    %v2427 = vld [vmem:[#allocation3 + $0xa0] sm:$0xff]
    %v2428 = vld [vmem:[#allocation3 + $0xa8] sm:$0xff]
    %v2429 = vld [vmem:[#allocation3 + $0xb0] sm:$0xff]
    %v2430 = vld [vmem:[#allocation3 + $0xb8] sm:$0xff]
    %v2431 = vld [vmem:[#allocation2 + $0x20] sm:$0xff]
    %v2432 = vld [vmem:[#allocation2 + $0x28] sm:$0xff]
    %v2433 = vpack.c.bf16 %v2432, %v2431
    %2434 = vmatprep.subr.bf16.mxu0 %v1964
    %2435 = vmatpush1.bf16.msra.mxu0 %v1963
    %2436 = vmatprep.subr.bf16.mxu0 %v1967
    %2437 = vmatpush1.bf16.msra.mxu0 %v1966
    %2438 = vmatprep.subr.bf16.mxu0 %v1970
    %2439 = vmatpush1.bf16.msra.mxu0 %v1969
    %2440 = vmatprep.subr.bf16.mxu0 %v1973
    %2441 = vmatpush1.bf16.msra.mxu0 %v1972
    %2442 = vmatprep.subr.bf16.mxu0 %v1976
    %2443 = vmatpush1.bf16.msra.mxu0 %v1975
    %2444 = vmatprep.subr.bf16.mxu0 %v1979
    %2445 = vmatpush1.bf16.msra.mxu0 %v1978
    %2446 = vmatprep.subr.bf16.mxu0 %v1982
    %2447 = vmatpush1.bf16.msra.mxu0 %v1981
    %2448 = vmatprep.subr.bf16.mxu0 %v1985
    %2449 = vmatpush1.bf16.msra.mxu0 %v1984
    %2450 = vmatprep.subr.bf16.mxu0 0
    %2451 = vmatpush1.bf16.msra.mxu0 0
    %2452 = vmatprep.subr.bf16.mxu0 0
    %2453 = vmatpush1.bf16.msra.mxu0 0
    %2454 = vmatprep.subr.bf16.mxu0 0
    %2455 = vmatpush1.bf16.msra.mxu0 0
    %2456 = vmatprep.subr.bf16.mxu0 0
    %2457 = vmatpush1.bf16.msra.mxu0 0
    %2458 = vmatprep.subr.bf16.mxu0 0
    %2459 = vmatpush1.bf16.msra.mxu0 0
    %2460 = vmatprep.subr.bf16.mxu0 0
    %2461 = vmatpush1.bf16.msra.mxu0 0
    %2462 = vmatprep.subr.bf16.mxu0 0
    %2463 = vmatpush1.bf16.msra.mxu0 0
    %2464 = vmatprep.subr.bf16.mxu0 0
    %2465 = vmatpush1.bf16.msra.mxu0 0
    %2466 = vmatprep.mubr.bf16.mxu0 0
    %2467 = vmatmul.mubr.bf16.gmra.mrb[0].mxu0 %v2433
    %v2468 = vpop.f32.mrb[0].mxu0
    %v2469 = vadd.f32 0.0, %v2468
    %v2470 = vpop.f32.mrb[0].mxu0
    %v2471 = vadd.f32 0.0, %v2470
    %v2472 = vpop.f32.mrb[0].mxu0
    %v2473 = vadd.f32 0.0, %v2472
    %v2474 = vpop.f32.mrb[0].mxu0
    %v2475 = vadd.f32 0.0, %v2474
    %2476 = vdwg.mxu0
    %2477 = vmatprep.subr.bf16.mxu0 0
    %2478 = vmatpush1.bf16.msra.mxu0 %v1965
    %2479 = vmatprep.subr.bf16.mxu0 0
    %2480 = vmatpush1.bf16.msra.mxu0 %v1968
    %2481 = vmatprep.subr.bf16.mxu0 0
    %2482 = vmatpush1.bf16.msra.mxu0 %v1971
    %2483 = vmatprep.subr.bf16.mxu0 0
    %2484 = vmatpush1.bf16.msra.mxu0 %v1974
    %2485 = vmatprep.subr.bf16.mxu0 0
    %2486 = vmatpush1.bf16.msra.mxu0 %v1977
    %2487 = vmatprep.subr.bf16.mxu0 0
    %2488 = vmatpush1.bf16.msra.mxu0 %v1980
    %2489 = vmatprep.subr.bf16.mxu0 0
    %2490 = vmatpush1.bf16.msra.mxu0 %v1983
    %2491 = vmatprep.subr.bf16.mxu0 0
    %2492 = vmatpush1.bf16.msra.mxu0 %v1986
    %2493 = vmatprep.subr.bf16.mxu0 0
    %2494 = vmatpush1.bf16.msra.mxu0 0
    %2495 = vmatprep.subr.bf16.mxu0 0
    %2496 = vmatpush1.bf16.msra.mxu0 0
    %2497 = vmatprep.subr.bf16.mxu0 0
    %2498 = vmatpush1.bf16.msra.mxu0 0
    %2499 = vmatprep.subr.bf16.mxu0 0
    %2500 = vmatpush1.bf16.msra.mxu0 0
    %2501 = vmatprep.subr.bf16.mxu0 0
    %2502 = vmatpush1.bf16.msra.mxu0 0
    %2503 = vmatprep.subr.bf16.mxu0 0
    %2504 = vmatpush1.bf16.msra.mxu0 0
    %2505 = vmatprep.subr.bf16.mxu0 0
    %2506 = vmatpush1.bf16.msra.mxu0 0
    %2507 = vmatprep.subr.bf16.mxu0 0
    %2508 = vmatpush1.bf16.msra.mxu0 0
    %2509 = vmatprep.mubr.bf16.mxu0 0
    %2510 = vmatmul.mubr.bf16.gmra.mrb[0].mxu0 %v2433
    %v2511 = vpop.f32.mrb[0].mxu0
    %v2512 = vadd.f32 0.0, %v2511
    %v2513 = vpop.f32.mrb[0].mxu0
    %v2514 = vpop.f32.mrb[0].mxu0
    %v2515 = vadd.f32 0.0, %v2514
    %v2516 = vpop.f32.mrb[0].mxu0
    %2517 = vdwg.mxu0
    %v2518 = vadd.f32 %v2425, %v2469
    %v2519 = vadd.f32 %v2428, %v2473
    %v2520 = vxor.u32 %v2518, 2147483648
    %v2521 = vxor.u32 %v2519, 2147483648
    %v2522 = vmul.f32 %v2520, 1.442695
    %v2523 = vpow.pop %v2522
    %v2524 = vmul.f32 %v2521, 1.442695
    %v2525 = vpow.pop %v2524
    %v2526 = vadd.f32 %v2523, 1.0
    %v2527 = vadd.f32 %v2525, 1.0
    %v2528 = vrcp.pop %v2526
    %v2529 = vmul.f32 1.0, %v2528
    %v2530 = vrcp.pop %v2527
    %v2531 = vmul.f32 1.0, %v2530
    %v2532 = vadd.f32 %v2426, %v2471
    %v2533 = vadd.f32 %v2429, %v2475
    %v2534 = vxor.u32 %v2532, 2147483648
    %v2535 = vxor.u32 %v2533, 2147483648
    %v2536 = vmul.f32 %v2534, 1.442695
    %v2537 = vpow.pop %v2536
    %v2538 = vmul.f32 %v2535, 1.442695
    %v2539 = vpow.pop %v2538
    %v2540 = vadd.f32 %v2537, 1.0
    %v2541 = vadd.f32 %v2539, 1.0
    %v2542 = vrcp.pop %v2540
    %v2543 = vmul.f32 1.0, %v2542
    %v2544 = vrcp.pop %v2541
    %v2545 = vmul.f32 1.0, %v2544
    %v2546 = vadd.f32 %v2512, %v2127
    %v2547 = vadd.f32 %v2515, %v2127
    %v2548 = vmul.f32 %v2529, %v2546
    %v2549 = vmul.f32 %v2531, %v2547
    %v2550 = vadd.f32 %v2427, %v2548
    %v2551 = vadd.f32 %v2430, %v2549
    %v2552 = vtanh.pop %v2550
    %v2553 = vtanh.pop %v2551
    %v2554 = vsub.f32 1.0, %v2543
    %v2555 = vsub.f32 1.0, %v2545
    %v2556 = vmul.f32 %v2554, %v2552
    %v2557 = vmul.f32 %v2555, %v2553
    %v2558 = vmul.f32 %v2543, %v2431
    %v2559 = vmul.f32 %v2545, %v2432
    %v2560 = vadd.f32 %v2556, %v2558
    %v2561 = vadd.f32 %v2557, %v2559
    %2562 = vst [vmem:[#allocation2 + $0x30] sm:$0xff] %v2560
    %2563 = vst [vmem:[#allocation2 + $0x38] sm:$0xff] %v2561
    %v2564 = vld [vmem:[#allocation2] sm:$0xff]
    %v2565 = vld [vmem:[#allocation2 + $0x8] sm:$0xff]
    %v2566 = vld [vmem:[#allocation2 + $0x10] sm:$0xff]
    %v2567 = vld [vmem:[#allocation2 + $0x18] sm:$0xff]
    %v2568 = vld [vmem:[#allocation2 + $0x20] sm:$0xff]
    %v2569 = vld [vmem:[#allocation2 + $0x28] sm:$0xff]
    %v2570 = vld [vmem:[#allocation2 + $0x30] sm:$0xff]
    %v2571 = vld [vmem:[#allocation2 + $0x38] sm:$0xff]
    %v2572 = vld [vmem:[%s1] sm:$0xff]
    %v2573 = vld [vmem:[%s1 + $0x8] sm:$0xff]
    %v2574 = vld [vmem:[%s1 + $0x10] sm:$0xff]
    %v2575 = vld [vmem:[%s1 + $0x18] sm:$0xff]
    %v2576 = vld [vmem:[%s1 + $0x20] sm:$0xff]
    %v2577 = vld [vmem:[%s1 + $0x28] sm:$0xff]
    %v2578 = vld [vmem:[%s1 + $0x30] sm:$0xff]
    %v2579 = vld [vmem:[%s1 + $0x38] sm:$0xff]
    %2581 = vset.pattern.permute.xlu0 0
    %2582 = vperm.xlu0 %2581, %v2572
    %v2583 = vpop.permute.xlu0 %2582
    %2586 = vset.pattern.permute.xlu0 0
    %2587 = vperm.xlu0 %2586, %v2573
    %v2588 = vpop.permute.xlu0 %2587
    %2591 = vset.pattern.permute.xlu0 0
    %2592 = vperm.xlu0 %2591, %v2574
    %v2593 = vpop.permute.xlu0 %2592
    %2596 = vset.pattern.permute.xlu0 0
    %2597 = vperm.xlu0 %2596, %v2575
    %v2598 = vpop.permute.xlu0 %2597
    %2601 = vset.pattern.permute.xlu0 0
    %2602 = vperm.xlu0 %2601, %v2576
    %v2603 = vpop.permute.xlu0 %2602
    %2606 = vset.pattern.permute.xlu0 0
    %2607 = vperm.xlu0 %2606, %v2577
    %v2608 = vpop.permute.xlu0 %2607
    %2611 = vset.pattern.permute.xlu0 0
    %2612 = vperm.xlu0 %2611, %v2578
    %v2613 = vpop.permute.xlu0 %2612
    %2616 = vset.pattern.permute.xlu0 0
    %2617 = vperm.xlu0 %2616, %v2579
    %v2618 = vpop.permute.xlu0 %2617
    %v2620 = vmul.f32 %v2564, %v2583
    %v2621 = vmul.f32 %v2565, %v2588
    %v2622 = vmul.f32 %v2566, %v2593
    %v2623 = vmul.f32 %v2567, %v2598
    %v2624 = vmul.f32 %v2568, %v2603
    %v2625 = vmul.f32 %v2569, %v2608
    %v2626 = vmul.f32 %v2570, %v2613
    %v2627 = vmul.f32 %v2571, %v2618
    %2628 = vst [vmem:[%s10] sm:$0xff] %v2620
    %2629 = vst [vmem:[%s10 + $0x8] sm:$0xff] %v2621
    %2630 = vst [vmem:[%s10 + $0x10] sm:$0xff] %v2622
    %2631 = vst [vmem:[%s10 + $0x18] sm:$0xff] %v2623
    %2632 = vst [vmem:[%s10 + $0x20] sm:$0xff] %v2624
    %2633 = vst [vmem:[%s10 + $0x28] sm:$0xff] %v2625
    %2634 = vst [vmem:[%s10 + $0x30] sm:$0xff] %v2626
    %2635 = vst [vmem:[%s10 + $0x38] sm:$0xff] %v2627
    // Predicated region
    $region54: #{encoder_drnn_forward.1} parent=1 // pred_check
      _
    $region55: #{encoder_drnn_forward.1} parent=1 // pred_check_branch
      %2637 = sbr.rel (0) target = $region57
    $region56: #{encoder_drnn_forward.1} parent=1 // pred_region
      _
    $region57: #{encoder_drnn_forward.1} parent=1 // pred_fallthru
      _
    // Predicated region
    $region58: #{encoder_drnn_forward.1} parent=1 // pred_check
      _
    $region59: #{encoder_drnn_forward.1} parent=1 // pred_check_branch
      %2639 = sbr.rel (0) target = $region61
    $region60: #{encoder_drnn_forward.1} parent=1 // pred_region
      _
    $region61: #{encoder_drnn_forward.1} parent=1 // pred_fallthru
      _
    %2640 = vsyncpa [#allocation5], 1
    %2641 = vsyncpa [#allocation7], 1

</llo_original>
